<compile_context>
chip_gen: v7x
topology: tpu7x:2x2x1
jax: 0.10.0
libtpu: 0.0.40
codegen_flags: <defaults>
</compile_context>

<pallas_src>
import functools

import jax
import jax.numpy as jnp
from jax.experimental import pallas as pl
from jax.experimental.pallas import tpu as pltpu

BN_EPS = 1e-5
K_TILE = 512                       # contraction tile; larger K is split over a grid axis
TM_MAX = 512                       # max rows per tile
VMEM_CAP = 48 * 1024 * 1024        # never request more than 48 MiB (v7x: 64 MiB physical)


def _round_up(x, m):
    return ((x + m - 1) // m) * m


# ----------------------------- Pallas kernels -----------------------------

def _matmul_bn_kernel(x_ref, w_ref, scale_ref, bias_ref, o_ref, acc_ref, *, relu):
    k = pl.program_id(2)

    @pl.when(k == 0)
    def _():
        acc_ref[...] = jnp.zeros_like(acc_ref)

    acc_ref[...] += jnp.dot(x_ref[...], w_ref[...], preferred_element_type=jnp.float32)

    @pl.when(k == pl.num_programs(2) - 1)
    def _():
        out = acc_ref[...] * scale_ref[...] + bias_ref[...]
        if relu:
            out = jnp.maximum(out, 0.0)
        o_ref[...] = out.astype(o_ref.dtype)


def _matmul_bn_add_kernel(x_ref, w_ref, scale_ref, bias_ref, sc_ref, o_ref, acc_ref, *,
                          relu):
    k = pl.program_id(2)

    @pl.when(k == 0)
    def _():
        acc_ref[...] = jnp.zeros_like(acc_ref)

    acc_ref[...] += jnp.dot(x_ref[...], w_ref[...], preferred_element_type=jnp.float32)

    @pl.when(k == pl.num_programs(2) - 1)
    def _():
        out = (acc_ref[...] * scale_ref[...] + bias_ref[...]
               + sc_ref[...].astype(jnp.float32))
        if relu:
            out = jnp.maximum(out, 0.0)
        o_ref[...] = out.astype(o_ref.dtype)


def _maxpool9_kernel(*refs):
    # 9 window taps (each (tr, lw)) -> elementwise max.
    o_ref = refs[-1]
    m = refs[0][...]
    for r in refs[1:-1]:
        m = jnp.maximum(m, r[...])
    o_ref[...] = m


def _avgpool_fc_kernel(x_ref, w_ref, b_ref, o_ref):
    # x_ref: (tb, H*W, C); global average pool (f32 accumulate), then Linear (bf16 dot).
    pooled = jnp.mean(x_ref[...].astype(jnp.float32), axis=1)           # (tb, C)
    o_ref[...] = (jnp.dot(pooled.astype(jnp.bfloat16), w_ref[...],
                          preferred_element_type=jnp.float32) + b_ref[...])


# ----------------------------- fused conv matmul -----------------------------

def fused_matmul_bn(x, w, scale, bias, *, relu, shortcut=None):
    """x:(M,K) bf16, w:(K,Np) bf16, scale/bias:(1,Np) f32, shortcut:(M,Np) bf16 | None.

    Np must be a multiple of 128 (lane-dense output).  Returns (M, Np) bf16.
    """
    M, K = x.shape
    Np = w.shape[1]

    # --- contraction tiling (bounds VMEM on v7x; single step for most layers) ---
    if K <= K_TILE:
        tk, Kp = K, K
    else:
        tk = K_TILE
        Kp = _round_up(K, tk)
        x = jnp.pad(x, ((0, 0), (0, Kp - K)))
        w = jnp.pad(w, ((0, Kp - K), (0, 0)))
    nk = Kp // tk

    # --- output tiling; tm a multiple of 16 (bf16 sublane packing) ---
    tn = 512 if Np % 512 == 0 else (256 if Np % 256 == 0 else 128)
    tm = min(TM_MAX, _round_up(M, 16))
    # expose >= 2 blocks on a parallel axis where cheaply possible (v7x has 2 TCs)
    if _round_up(M, tm) // tm == 1 and Np // tn == 1 and M >= 32:
        tm = _round_up(pl.cdiv(M, 2), 16)
    Mp = _round_up(M, tm)
    if Mp != M:
        x = jnp.pad(x, ((0, Mp - M), (0, 0)))
        if shortcut is not None:
            shortcut = jnp.pad(shortcut, ((0, Mp - M), (0, 0)))
    nm, nn = Mp // tm, Np // tn

    # --- grid order: keep the cheaper-to-restream operand on the inner loop.
    # With nk == 1, block-index revisiting loads the outer-axis operand exactly once.
    n_outer = (nm - 1) * Kp * Np > (nn - 1) * Mp * Kp
    if n_outer:
        grid = (nn, nm, nk)
        x_map = lambda j, i, k: (i, k)
        w_map = lambda j, i, k: (k, j)
        s_map = lambda j, i, k: (0, j)
        o_map = lambda j, i, k: (i, j)
    else:
        grid = (nm, nn, nk)
        x_map = lambda i, j, k: (i, k)
        w_map = lambda i, j, k: (k, j)
        s_map = lambda i, j, k: (0, j)
        o_map = lambda i, j, k: (i, j)

    in_specs = [
        pl.BlockSpec((tm, tk), x_map),
        pl.BlockSpec((tk, tn), w_map),
        pl.BlockSpec((1, tn), s_map),
        pl.BlockSpec((1, tn), s_map),
    ]
    args = [x, w, scale, bias]
    if shortcut is not None:
        in_specs.append(pl.BlockSpec((tm, tn), o_map))
        args.append(shortcut)
        kernel = functools.partial(_matmul_bn_add_kernel, relu=relu)
    else:
        kernel = functools.partial(_matmul_bn_kernel, relu=relu)

    # --- HBM traffic estimate, including re-streamed operands ---
    if nk == 1:
        x_passes, w_passes = (nn, 1) if n_outer else (1, nm)
    else:
        x_passes, w_passes = nn, nm
    bytes_accessed = (Mp * Kp * 2 * x_passes + Kp * Np * 2 * w_passes
                      + Mp * Np * 2 + 2 * Np * 4
                      + (Mp * Np * 2 if shortcut is not None else 0))

    # --- VMEM budget: actual double-buffered footprint, capped below v7x physical ---
    vmem_bytes = (2 * (tm * tk + tk * tn) * 2          # bf16 matmul operands (x2 buffers)
                  + 2 * tm * tn * 2                    # bf16 output          (x2 buffers)
                  + tm * tn * 4                        # f32 accumulator scratch
                  + (2 * tm * tn * 2 if shortcut is not None else 0)
                  + 4 * tn * 4)                        # scale + bias
    vmem_limit = int(min(VMEM_CAP, max(2 * vmem_bytes, 16 * 1024 * 1024)))

    out = pl.pallas_call(
        kernel,
        out_shape=jax.ShapeDtypeStruct((Mp, Np), jnp.bfloat16),
        grid=grid,
        in_specs=in_specs,
        out_specs=pl.BlockSpec((tm, tn), o_map),
        scratch_shapes=[pltpu.VMEM((tm, tn), jnp.float32)],
        compiler_params=pltpu.CompilerParams(
            dimension_semantics=("parallel", "parallel", "arbitrary"),
            vmem_limit_bytes=vmem_limit),
        cost_estimate=pl.CostEstimate(
            flops=2 * Mp * Kp * Np, transcendentals=0,
            bytes_accessed=bytes_accessed),
    )(*args)
    return out[:M] if Mp != M else out


# ----------------------------- glue (im2col, layers) -----------------------------

def extract_patches(x, kh, kw, stride, padding):
    """x: (N, H, W, C) -> (N, Ho, Wo, kh*kw*C) bf16 patches (tap order: kh, kw, C)."""
    Nb, H, W, C = x.shape
    Ho = (H + 2 * padding - kh) // stride + 1
    Wo = (W + 2 * padding - kw) // stride + 1
    xp = jnp.pad(x.astype(jnp.bfloat16),
                 ((0, 0), (padding, padding), (padding, padding), (0, 0)))
    slices = []
    for i in range(kh):
        for j in range(kw):
            slices.append(
                xp[:, i:i + stride * (Ho - 1) + 1:stride,
                      j:j + stride * (Wo - 1) + 1:stride, :])
    return jnp.concatenate(slices, axis=-1), Ho, Wo


def conv_bn(x, p, *, stride, padding, relu, shortcut=None):
    """ConvBNRelu (eval-mode BN folded), optionally with a fused residual add."""
    w = p["w"]                          # (Cout, Cin, kh, kw)
    Cout, Cin, kh, kw = w.shape
    Nb = x.shape[0]

    patches, Ho, Wo = extract_patches(x, kh, kw, stride, padding)
    M = Nb * Ho * Wo
    K = kh * kw * Cin
    X = patches.reshape(M, K)                                           # bf16

    Np = _round_up(Cout, 128)
    W2 = jnp.transpose(w, (2, 3, 1, 0)).reshape(K, Cout)
    if Np != Cout:
        W2 = jnp.pad(W2, ((0, 0), (0, Np - Cout)))
    W2 = W2.astype(jnp.bfloat16)

    inv_std = 1.0 / jnp.sqrt(p["var"] + BN_EPS)
    scale = p["gamma"] * inv_std
    bias = p["beta"] - p["mean"] * p["gamma"] * inv_std
    if Np != Cout:
        scale = jnp.pad(scale, (0, Np - Cout))
        bias = jnp.pad(bias, (0, Np - Cout))
    scale = scale.reshape(1, Np).astype(jnp.float32)
    bias = bias.reshape(1, Np).astype(jnp.float32)

    sc2d = None
    if shortcut is not None:
        sc2d = shortcut.reshape(M, Cout).astype(jnp.bfloat16)
        if Np != Cout:
            sc2d = jnp.pad(sc2d, ((0, 0), (0, Np - Cout)))

    y = fused_matmul_bn(X, W2, scale, bias, relu=relu, shortcut=sc2d)
    return y[:, :Cout].reshape(Nb, Ho, Wo, Cout)


def maxpool_3x3_s2(x):
    """MaxPool2d(kernel_size=3, stride=2, padding=1) on NHWC, lane-dense tiling."""
    Nb, H, W, C = x.shape
    k, stride, pad = 3, 2, 1
    Ho = (H + 2 * pad - k) // stride + 1
    Wo = (W + 2 * pad - k) // stride + 1
    xp = jnp.pad(x, ((0, 0), (pad, pad), (pad, pad), (0, 0)),
                 constant_values=-jnp.inf)
    # 9 shifted taps, flattened; elementwise max is reshape-invariant so we pick a
    # lane-dense (rows, lw) layout (lw a multiple of 128 -> unmasked vector stores).
    taps = [
        xp[:, i:i + stride * (Ho - 1) + 1:stride,
              j:j + stride * (Wo - 1) + 1:stride, :].reshape(-1)
        for i in range(k) for j in range(k)
    ]
    E = Nb * Ho * Wo * C
    lw = 512 if E >= 512 * 8 else (256 if E >= 256 * 8 else 128)
    R = pl.cdiv(E, lw)
    tr = min(512, _round_up(R, 8))
    Rp = _round_up(R, tr)
    Ep = Rp * lw
    taps = [jnp.pad(t, (0, Ep - E)).reshape(Rp, lw) for t in taps]

    spec = pl.BlockSpec((tr, lw), lambda i: (i, 0))
    out = pl.pallas_call(
        _maxpool9_kernel,
        out_shape=jax.ShapeDtypeStruct((Rp, lw), x.dtype),
        grid=(Rp // tr,),
        in_specs=[spec] * 9,
        out_specs=spec,
        compiler_params=pltpu.CompilerParams(dimension_semantics=("parallel",)),
    )(*taps)
    return out.reshape(-1)[:E].reshape(Nb, Ho, Wo, C)


def residual_block(x, bp):
    stride = 2 if bp["downsample"] else 1
    main = conv_bn(x, bp["conv_a"], stride=stride, padding=1, relu=True)
    if bp["proj"] is not None:
        sc = conv_bn(x, bp["proj"], stride=stride, padding=0, relu=False)
    else:
        sc = x
    # Second conv with the residual add + post-add ReLU fused into its epilogue.
    return conv_bn(main, bp["conv_b"], stride=1, padding=1, relu=True, shortcut=sc)


def avgpool_fc(x, fc_w, fc_b):
    Nb, H, W, C = x.shape
    num_classes = fc_w.shape[0]
    Np = _round_up(num_classes, 128)

    Nbp = _round_up(Nb, 8)
    if Nbp <= 128:
        tb = Nbp
    else:
        tb = 128
        Nbp = _round_up(Nbp, tb)

    xr = x.reshape(Nb, H * W, C)
    if Nbp != Nb:
        xr = jnp.pad(xr, ((0, Nbp - Nb), (0, 0), (0, 0)))
    wt = fc_w.T
    b = fc_b.astype(jnp.float32)
    if Np != num_classes:
        wt = jnp.pad(wt, ((0, 0), (0, Np - num_classes)))
        b = jnp.pad(b, (0, Np - num_classes))
    wt = wt.astype(jnp.bfloat16)
    b = b.reshape(1, Np)

    out = pl.pallas_call(
        _avgpool_fc_kernel,
        out_shape=jax.ShapeDtypeStruct((Nbp, Np), jnp.float32),
        grid=(Nbp // tb,),
        in_specs=[
            pl.BlockSpec((tb, H * W, C), lambda i: (i, 0, 0)),
            pl.BlockSpec((C, Np), lambda i: (0, 0)),
            pl.BlockSpec((1, Np), lambda i: (0, 0)),
        ],
        out_specs=pl.BlockSpec((tb, Np), lambda i: (i, 0)),
        compiler_params=pltpu.CompilerParams(dimension_semantics=("parallel",)),
    )(xr, wt, b)
    return out[:Nb, :num_classes]


# ----------------------------- parameter init -----------------------------

def _kaiming_conv(key, cout, cin, kh, kw):
    fan_in = cin * kh * kw
    std = (2.0 / fan_in) ** 0.5
    return jax.random.normal(key, (cout, cin, kh, kw), jnp.float32) * std


def _bn(c):
    return dict(gamma=jnp.ones((c,), jnp.float32),
                beta=jnp.zeros((c,), jnp.float32),
                mean=jnp.zeros((c,), jnp.float32),
                var=jnp.ones((c,), jnp.float32))


def _conv_bn_params(key, cin, cout, k):
    p = dict(w=_kaiming_conv(key, cout, cin, k, k))
    p.update(_bn(cout))
    return p


def init_resnet_params(key, module_sizes, module_channels, num_classes, width=1):
    keys = iter(jax.random.split(key, 64))
    c0 = module_channels[0]
    params = dict(
        conv1=_conv_bn_params(next(keys), 3, c0 // 2, 3),
        conv2=_conv_bn_params(next(keys), c0 // 2, c0 // 2, 3),
        conv3=_conv_bn_params(next(keys), c0 // 2, c0, 3),
        blocks=[],
    )
    out_channels = c0
    for module_idx, (num_layers, mid) in enumerate(zip(module_sizes, module_channels)):
        mid = mid * width
        for i in range(num_layers):
            in_channels = out_channels
            downsample = (i == 0 and module_idx > 0)
            need_proj = downsample or (in_channels != mid)
            bp = dict(
                downsample=downsample,
                conv_a=_conv_bn_params(next(keys), in_channels, mid, 3),
                conv_b=_conv_bn_params(next(keys), mid, mid, 3),
                proj=_conv_bn_params(next(keys), in_channels, mid, 1) if need_proj else None,
            )
            params["blocks"].append(bp)
            out_channels = mid
    fan_in = out_channels
    params["fc_w"] = jax.random.normal(next(keys), (num_classes, out_channels),
                                       jnp.float32) * (2.0 / fan_in) ** 0.5
    params["fc_b"] = jnp.zeros((num_classes,), jnp.float32)
    return params


# ----------------------------- forward -----------------------------

def resnet_forward(params, x_nchw):
    x = jnp.transpose(x_nchw, (0, 2, 3, 1)).astype(jnp.float32)   # NCHW -> NHWC
    # conv1 has K = 27 (Cin = 3); tiny FLOP fraction, left on the generic path.
    x = conv_bn(x, params["conv1"], stride=2, padding=1, relu=True)
    x = conv_bn(x, params["conv2"], stride=1, padding=1, relu=True)
    x = conv_bn(x, params["conv3"], stride=1, padding=1, relu=True)
    x = maxpool_3x3_s2(x)
    for bp in params["blocks"]:
        x = residual_block(x, bp)
    return avgpool_fc(x, params["fc_w"], params["fc_b"])


if __name__ == "__main__":
    key = jax.random.PRNGKey(0)
    k_param, k_x = jax.random.split(key)

    module_sizes = (1, 1)
    module_channels = (32, 64)
    num_classes = 10

    params = init_resnet_params(k_param, module_sizes, module_channels, num_classes)

    # Small ImageNet-style input: NCHW (batch=2, channels=3, 16x16 spatial).
    x = jax.random.normal(k_x, (2, 3, 16, 16), jnp.float32)

    fwd = jax.jit(lambda inp: resnet_forward(params, inp))
    out = jax.block_until_ready(fwd(x))
    assert out.shape == (2, num_classes), out.shape
    print("KERNEL_OK")
</pallas_src>

<mosaic_0001>
module attributes {stable_mosaic.version = 11 : i64} {
  func.func @_matmul_bn_kernel(%arg0: i32, %arg1: i32, %arg2: i32, %arg3: memref<64x27xbf16, #tpu.memory_space<vmem>>, %arg4: memref<27x128xbf16, #tpu.memory_space<vmem>>, %arg5: memref<1x128xf32, #tpu.memory_space<vmem>>, %arg6: memref<1x128xf32, #tpu.memory_space<vmem>>, %arg7: memref<64x128xbf16, #tpu.memory_space<vmem>>, %arg8: memref<64x128xf32, #tpu.memory_space<vmem>>) attributes {dimension_semantics = [#tpu.dimension_semantics<parallel>, #tpu.dimension_semantics<parallel>, #tpu.dimension_semantics<arbitrary>], iteration_bounds = array<i64: 1, 2, 1>, scalar_prefetch = 0 : i64, scratch_operands = 1 : i64, tpu.core_type = #tpu.core_type<tc>, window_params = [{transform_indices = @transform_0, window_bounds = array<i64: 64, 27>}, {transform_indices = @transform_1, window_bounds = array<i64: 27, 128>}, {transform_indices = @transform_2, window_bounds = array<i64: 1, 128>}, {transform_indices = @transform_3, window_bounds = array<i64: 1, 128>}, {transform_indices = @transform_4, window_bounds = array<i64: 64, 128>}]} {
    %c0_i32 = arith.constant 0 : i32
    %0 = arith.cmpi eq, %arg2, %c0_i32 : i32
    %1 = arith.extui %0 : i1 to i32
    %c0_i32_0 = arith.constant 0 : i32
    %2 = arith.cmpi ne, %1, %c0_i32_0 : i32
    scf.if %2 {
      %cst_10 = arith.constant 0.000000e+00 : f32
      %12 = vector.broadcast %cst_10 : f32 to vector<64x128xf32>
      %c0_11 = arith.constant 0 : index
      %c0_12 = arith.constant 0 : index
      %13 = vector.load %arg8[%c0_11, %c0_12] : memref<64x128xf32, #tpu.memory_space<vmem>>, vector<64x128xf32>
      tpu.vector_store %arg8[%c0_11, %c0_12], %12 {strides = array<i32>} : memref<64x128xf32, #tpu.memory_space<vmem>>, vector<64x128xf32>,
    } else {
    }
    %c0 = arith.constant 0 : index
    %c0_1 = arith.constant 0 : index
    %3 = vector.load %arg8[%c0, %c0_1] : memref<64x128xf32, #tpu.memory_space<vmem>>, vector<64x128xf32>
    %c0_2 = arith.constant 0 : index
    %c0_3 = arith.constant 0 : index
    %4 = vector.load %arg3[%c0_2, %c0_3] : memref<64x27xbf16, #tpu.memory_space<vmem>>, vector<64x27xbf16>
    %c0_4 = arith.constant 0 : index
    %c0_5 = arith.constant 0 : index
    %5 = vector.load %arg4[%c0_4, %c0_5] : memref<27x128xbf16, #tpu.memory_space<vmem>>, vector<27x128xbf16>
    %cst = arith.constant dense<0.000000e+00> : vector<64x128xf32>
    %6 = tpu.matmul %4, %5, %cst {dimension_numbers = #tpu.dot_dimension_numbers<[1], [0], [0], [1], [0, 0, 1, 1], [], []>} : vector<64x27xbf16>, vector<27x128xbf16>, vector<64x128xf32> -> vector<64x128xf32>
    %7 = arith.addf %3, %6 : vector<64x128xf32>
    %c0_6 = arith.constant 0 : index
    %c0_7 = arith.constant 0 : index
    %8 = vector.load %arg8[%c0_6, %c0_7] : memref<64x128xf32, #tpu.memory_space<vmem>>, vector<64x128xf32>
    tpu.vector_store %arg8[%c0_6, %c0_7], %7 {strides = array<i32>} : memref<64x128xf32, #tpu.memory_space<vmem>>, vector<64x128xf32>,
    %c0_i32_8 = arith.constant 0 : i32
    %9 = arith.cmpi eq, %arg2, %c0_i32_8 : i32
    %10 = arith.extui %9 : i1 to i32
    %c0_i32_9 = arith.constant 0 : i32
    %11 = arith.cmpi ne, %10, %c0_i32_9 : i32
    scf.if %11 {
      %c0_10 = arith.constant 0 : index
      %c0_11 = arith.constant 0 : index
      %12 = vector.load %arg8[%c0_10, %c0_11] : memref<64x128xf32, #tpu.memory_space<vmem>>, vector<64x128xf32>
      %c0_12 = arith.constant 0 : index
      %c0_13 = arith.constant 0 : index
      %13 = vector.load %arg5[%c0_12, %c0_13] : memref<1x128xf32, #tpu.memory_space<vmem>>, vector<1x128xf32>
      %14 = vector.broadcast %13 : vector<1x128xf32> to vector<64x128xf32>
      %15 = arith.mulf %12, %14 : vector<64x128xf32>
      %c0_14 = arith.constant 0 : index
      %c0_15 = arith.constant 0 : index
      %16 = vector.load %arg6[%c0_14, %c0_15] : memref<1x128xf32, #tpu.memory_space<vmem>>, vector<1x128xf32>
      %17 = vector.broadcast %16 : vector<1x128xf32> to vector<64x128xf32>
      %18 = arith.addf %15, %17 : vector<64x128xf32>
      %cst_16 = arith.constant 0.000000e+00 : f32
      %19 = vector.broadcast %cst_16 : f32 to vector<64x128xf32>
      %20 = arith.maximumf %18, %19 : vector<64x128xf32>
      %21 = arith.truncf %20 : vector<64x128xf32> to vector<64x128xbf16>
      %c0_17 = arith.constant 0 : index
      %c0_18 = arith.constant 0 : index
      %22 = vector.load %arg7[%c0_17, %c0_18] : memref<64x128xbf16, #tpu.memory_space<vmem>>, vector<64x128xbf16>
      tpu.vector_store %arg7[%c0_17, %c0_18], %21 {strides = array<i32>} : memref<64x128xbf16, #tpu.memory_space<vmem>>, vector<64x128xbf16>,
    } else {
    }
    return
  }
  func.func @transform_0(%arg0: i32, %arg1: i32, %arg2: i32) -> (i32, i32) {
    %c0_i32 = arith.constant 0 : i32
    return %arg1, %arg2 : i32, i32
  }
  func.func @transform_1(%arg0: i32, %arg1: i32, %arg2: i32) -> (i32, i32) {
    %c0_i32 = arith.constant 0 : i32
    return %arg2, %arg0 : i32, i32
  }
  func.func @transform_2(%arg0: i32, %arg1: i32, %arg2: i32) -> (i32, i32) {
    %c0_i32 = arith.constant 0 : i32
    %c0_i32_0 = arith.constant 0 : i32
    return %c0_i32, %arg0 : i32, i32
  }
  func.func @transform_3(%arg0: i32, %arg1: i32, %arg2: i32) -> (i32, i32) {
    %c0_i32 = arith.constant 0 : i32
    %c0_i32_0 = arith.constant 0 : i32
    return %c0_i32, %arg0 : i32, i32
  }
  func.func @transform_4(%arg0: i32, %arg1: i32, %arg2: i32) -> (i32, i32) {
    %c0_i32 = arith.constant 0 : i32
    return %arg1, %arg0 : i32, i32
  }
}

module attributes {stable_mosaic.version = 11 : i64} {
  func.func @_matmul_bn_kernel(%arg0: i32, %arg1: i32, %arg2: i32, %arg3: memref<64x144xbf16, #tpu.memory_space<vmem>>, %arg4: memref<144x128xbf16, #tpu.memory_space<vmem>>, %arg5: memref<1x128xf32, #tpu.memory_space<vmem>>, %arg6: memref<1x128xf32, #tpu.memory_space<vmem>>, %arg7: memref<64x128xbf16, #tpu.memory_space<vmem>>, %arg8: memref<64x128xf32, #tpu.memory_space<vmem>>) attributes {dimension_semantics = [#tpu.dimension_semantics<parallel>, #tpu.dimension_semantics<parallel>, #tpu.dimension_semantics<arbitrary>], iteration_bounds = array<i64: 1, 2, 1>, scalar_prefetch = 0 : i64, scratch_operands = 1 : i64, tpu.core_type = #tpu.core_type<tc>, window_params = [{transform_indices = @transform_0, window_bounds = array<i64: 64, 144>}, {transform_indices = @transform_1, window_bounds = array<i64: 144, 128>}, {transform_indices = @transform_2, window_bounds = array<i64: 1, 128>}, {transform_indices = @transform_3, window_bounds = array<i64: 1, 128>}, {transform_indices = @transform_4, window_bounds = array<i64: 64, 128>}]} {
    %c0_i32 = arith.constant 0 : i32
    %0 = arith.cmpi eq, %arg2, %c0_i32 : i32
    %1 = arith.extui %0 : i1 to i32
    %c0_i32_0 = arith.constant 0 : i32
    %2 = arith.cmpi ne, %1, %c0_i32_0 : i32
    scf.if %2 {
      %cst_10 = arith.constant 0.000000e+00 : f32
      %12 = vector.broadcast %cst_10 : f32 to vector<64x128xf32>
      %c0_11 = arith.constant 0 : index
      %c0_12 = arith.constant 0 : index
      %13 = vector.load %arg8[%c0_11, %c0_12] : memref<64x128xf32, #tpu.memory_space<vmem>>, vector<64x128xf32>
      tpu.vector_store %arg8[%c0_11, %c0_12], %12 {strides = array<i32>} : memref<64x128xf32, #tpu.memory_space<vmem>>, vector<64x128xf32>,
    } else {
    }
    %c0 = arith.constant 0 : index
    %c0_1 = arith.constant 0 : index
    %3 = vector.load %arg8[%c0, %c0_1] : memref<64x128xf32, #tpu.memory_space<vmem>>, vector<64x128xf32>
    %c0_2 = arith.constant 0 : index
    %c0_3 = arith.constant 0 : index
    %4 = vector.load %arg3[%c0_2, %c0_3] : memref<64x144xbf16, #tpu.memory_space<vmem>>, vector<64x144xbf16>
    %c0_4 = arith.constant 0 : index
    %c0_5 = arith.constant 0 : index
    %5 = vector.load %arg4[%c0_4, %c0_5] : memref<144x128xbf16, #tpu.memory_space<vmem>>, vector<144x128xbf16>
    %cst = arith.constant dense<0.000000e+00> : vector<64x128xf32>
    %6 = tpu.matmul %4, %5, %cst {dimension_numbers = #tpu.dot_dimension_numbers<[1], [0], [0], [1], [0, 0, 1, 1], [], []>} : vector<64x144xbf16>, vector<144x128xbf16>, vector<64x128xf32> -> vector<64x128xf32>
    %7 = arith.addf %3, %6 : vector<64x128xf32>
    %c0_6 = arith.constant 0 : index
    %c0_7 = arith.constant 0 : index
    %8 = vector.load %arg8[%c0_6, %c0_7] : memref<64x128xf32, #tpu.memory_space<vmem>>, vector<64x128xf32>
    tpu.vector_store %arg8[%c0_6, %c0_7], %7 {strides = array<i32>} : memref<64x128xf32, #tpu.memory_space<vmem>>, vector<64x128xf32>,
    %c0_i32_8 = arith.constant 0 : i32
    %9 = arith.cmpi eq, %arg2, %c0_i32_8 : i32
    %10 = arith.extui %9 : i1 to i32
    %c0_i32_9 = arith.constant 0 : i32
    %11 = arith.cmpi ne, %10, %c0_i32_9 : i32
    scf.if %11 {
      %c0_10 = arith.constant 0 : index
      %c0_11 = arith.constant 0 : index
      %12 = vector.load %arg8[%c0_10, %c0_11] : memref<64x128xf32, #tpu.memory_space<vmem>>, vector<64x128xf32>
      %c0_12 = arith.constant 0 : index
      %c0_13 = arith.constant 0 : index
      %13 = vector.load %arg5[%c0_12, %c0_13] : memref<1x128xf32, #tpu.memory_space<vmem>>, vector<1x128xf32>
      %14 = vector.broadcast %13 : vector<1x128xf32> to vector<64x128xf32>
      %15 = arith.mulf %12, %14 : vector<64x128xf32>
      %c0_14 = arith.constant 0 : index
      %c0_15 = arith.constant 0 : index
      %16 = vector.load %arg6[%c0_14, %c0_15] : memref<1x128xf32, #tpu.memory_space<vmem>>, vector<1x128xf32>
      %17 = vector.broadcast %16 : vector<1x128xf32> to vector<64x128xf32>
      %18 = arith.addf %15, %17 : vector<64x128xf32>
      %cst_16 = arith.constant 0.000000e+00 : f32
      %19 = vector.broadcast %cst_16 : f32 to vector<64x128xf32>
      %20 = arith.maximumf %18, %19 : vector<64x128xf32>
      %21 = arith.truncf %20 : vector<64x128xf32> to vector<64x128xbf16>
      %c0_17 = arith.constant 0 : index
      %c0_18 = arith.constant 0 : index
      %22 = vector.load %arg7[%c0_17, %c0_18] : memref<64x128xbf16, #tpu.memory_space<vmem>>, vector<64x128xbf16>
      tpu.vector_store %arg7[%c0_17, %c0_18], %21 {strides = array<i32>} : memref<64x128xbf16, #tpu.memory_space<vmem>>, vector<64x128xbf16>,
    } else {
    }
    return
  }
  func.func @transform_0(%arg0: i32, %arg1: i32, %arg2: i32) -> (i32, i32) {
    %c0_i32 = arith.constant 0 : i32
    return %arg1, %arg2 : i32, i32
  }
  func.func @transform_1(%arg0: i32, %arg1: i32, %arg2: i32) -> (i32, i32) {
    %c0_i32 = arith.constant 0 : i32
    return %arg2, %arg0 : i32, i32
  }
  func.func @transform_2(%arg0: i32, %arg1: i32, %arg2: i32) -> (i32, i32) {
    %c0_i32 = arith.constant 0 : i32
    %c0_i32_0 = arith.constant 0 : i32
    return %c0_i32, %arg0 : i32, i32
  }
  func.func @transform_3(%arg0: i32, %arg1: i32, %arg2: i32) -> (i32, i32) {
    %c0_i32 = arith.constant 0 : i32
    %c0_i32_0 = arith.constant 0 : i32
    return %c0_i32, %arg0 : i32, i32
  }
  func.func @transform_4(%arg0: i32, %arg1: i32, %arg2: i32) -> (i32, i32) {
    %c0_i32 = arith.constant 0 : i32
    return %arg1, %arg0 : i32, i32
  }
}

module attributes {stable_mosaic.version = 11 : i64} {
  func.func @_maxpool9_kernel(%arg0: i32, %arg1: memref<8x128xbf16, #tpu.memory_space<vmem>>, %arg2: memref<8x128xbf16, #tpu.memory_space<vmem>>, %arg3: memref<8x128xbf16, #tpu.memory_space<vmem>>, %arg4: memref<8x128xbf16, #tpu.memory_space<vmem>>, %arg5: memref<8x128xbf16, #tpu.memory_space<vmem>>, %arg6: memref<8x128xbf16, #tpu.memory_space<vmem>>, %arg7: memref<8x128xbf16, #tpu.memory_space<vmem>>, %arg8: memref<8x128xbf16, #tpu.memory_space<vmem>>, %arg9: memref<8x128xbf16, #tpu.memory_space<vmem>>, %arg10: memref<8x128xbf16, #tpu.memory_space<vmem>>) attributes {dimension_semantics = [#tpu.dimension_semantics<parallel>], iteration_bounds = array<i64: 1>, scalar_prefetch = 0 : i64, scratch_operands = 0 : i64, tpu.core_type = #tpu.core_type<tc>, window_params = [{transform_indices = @transform_0, window_bounds = array<i64: 8, 128>}, {transform_indices = @transform_1, window_bounds = array<i64: 8, 128>}, {transform_indices = @transform_2, window_bounds = array<i64: 8, 128>}, {transform_indices = @transform_3, window_bounds = array<i64: 8, 128>}, {transform_indices = @transform_4, window_bounds = array<i64: 8, 128>}, {transform_indices = @transform_5, window_bounds = array<i64: 8, 128>}, {transform_indices = @transform_6, window_bounds = array<i64: 8, 128>}, {transform_indices = @transform_7, window_bounds = array<i64: 8, 128>}, {transform_indices = @transform_8, window_bounds = array<i64: 8, 128>}, {transform_indices = @transform_9, window_bounds = array<i64: 8, 128>}]} {
    %c0 = arith.constant 0 : index
    %c0_0 = arith.constant 0 : index
    %0 = vector.load %arg1[%c0, %c0_0] : memref<8x128xbf16, #tpu.memory_space<vmem>>, vector<8x128xbf16>
    %c0_1 = arith.constant 0 : index
    %c0_2 = arith.constant 0 : index
    %1 = vector.load %arg2[%c0_1, %c0_2] : memref<8x128xbf16, #tpu.memory_space<vmem>>, vector<8x128xbf16>
    %2 = arith.maximumf %0, %1 : vector<8x128xbf16>
    %c0_3 = arith.constant 0 : index
    %c0_4 = arith.constant 0 : index
    %3 = vector.load %arg3[%c0_3, %c0_4] : memref<8x128xbf16, #tpu.memory_space<vmem>>, vector<8x128xbf16>
    %4 = arith.maximumf %2, %3 : vector<8x128xbf16>
    %c0_5 = arith.constant 0 : index
    %c0_6 = arith.constant 0 : index
    %5 = vector.load %arg4[%c0_5, %c0_6] : memref<8x128xbf16, #tpu.memory_space<vmem>>, vector<8x128xbf16>
    %6 = arith.maximumf %4, %5 : vector<8x128xbf16>
    %c0_7 = arith.constant 0 : index
    %c0_8 = arith.constant 0 : index
    %7 = vector.load %arg5[%c0_7, %c0_8] : memref<8x128xbf16, #tpu.memory_space<vmem>>, vector<8x128xbf16>
    %8 = arith.maximumf %6, %7 : vector<8x128xbf16>
    %c0_9 = arith.constant 0 : index
    %c0_10 = arith.constant 0 : index
    %9 = vector.load %arg6[%c0_9, %c0_10] : memref<8x128xbf16, #tpu.memory_space<vmem>>, vector<8x128xbf16>
    %10 = arith.maximumf %8, %9 : vector<8x128xbf16>
    %c0_11 = arith.constant 0 : index
    %c0_12 = arith.constant 0 : index
    %11 = vector.load %arg7[%c0_11, %c0_12] : memref<8x128xbf16, #tpu.memory_space<vmem>>, vector<8x128xbf16>
    %12 = arith.maximumf %10, %11 : vector<8x128xbf16>
    %c0_13 = arith.constant 0 : index
    %c0_14 = arith.constant 0 : index
    %13 = vector.load %arg8[%c0_13, %c0_14] : memref<8x128xbf16, #tpu.memory_space<vmem>>, vector<8x128xbf16>
    %14 = arith.maximumf %12, %13 : vector<8x128xbf16>
    %c0_15 = arith.constant 0 : index
    %c0_16 = arith.constant 0 : index
    %15 = vector.load %arg9[%c0_15, %c0_16] : memref<8x128xbf16, #tpu.memory_space<vmem>>, vector<8x128xbf16>
    %16 = arith.maximumf %14, %15 : vector<8x128xbf16>
    %c0_17 = arith.constant 0 : index
    %c0_18 = arith.constant 0 : index
    %17 = vector.load %arg10[%c0_17, %c0_18] : memref<8x128xbf16, #tpu.memory_space<vmem>>, vector<8x128xbf16>
    tpu.vector_store %arg10[%c0_17, %c0_18], %16 {strides = array<i32>} : memref<8x128xbf16, #tpu.memory_space<vmem>>, vector<8x128xbf16>,
    return
  }
  func.func @transform_0(%arg0: i32) -> (i32, i32) {
    %c0_i32 = arith.constant 0 : i32
    %c0_i32_0 = arith.constant 0 : i32
    return %arg0, %c0_i32 : i32, i32
  }
  func.func @transform_1(%arg0: i32) -> (i32, i32) {
    %c0_i32 = arith.constant 0 : i32
    %c0_i32_0 = arith.constant 0 : i32
    return %arg0, %c0_i32 : i32, i32
  }
  func.func @transform_2(%arg0: i32) -> (i32, i32) {
    %c0_i32 = arith.constant 0 : i32
    %c0_i32_0 = arith.constant 0 : i32
    return %arg0, %c0_i32 : i32, i32
  }
  func.func @transform_3(%arg0: i32) -> (i32, i32) {
    %c0_i32 = arith.constant 0 : i32
    %c0_i32_0 = arith.constant 0 : i32
    return %arg0, %c0_i32 : i32, i32
  }
  func.func @transform_4(%arg0: i32) -> (i32, i32) {
    %c0_i32 = arith.constant 0 : i32
    %c0_i32_0 = arith.constant 0 : i32
    return %arg0, %c0_i32 : i32, i32
  }
  func.func @transform_5(%arg0: i32) -> (i32, i32) {
    %c0_i32 = arith.constant 0 : i32
    %c0_i32_0 = arith.constant 0 : i32
    return %arg0, %c0_i32 : i32, i32
  }
  func.func @transform_6(%arg0: i32) -> (i32, i32) {
    %c0_i32 = arith.constant 0 : i32
    %c0_i32_0 = arith.constant 0 : i32
    return %arg0, %c0_i32 : i32, i32
  }
  func.func @transform_7(%arg0: i32) -> (i32, i32) {
    %c0_i32 = arith.constant 0 : i32
    %c0_i32_0 = arith.constant 0 : i32
    return %arg0, %c0_i32 : i32, i32
  }
  func.func @transform_8(%arg0: i32) -> (i32, i32) {
    %c0_i32 = arith.constant 0 : i32
    %c0_i32_0 = arith.constant 0 : i32
    return %arg0, %c0_i32 : i32, i32
  }
  func.func @transform_9(%arg0: i32) -> (i32, i32) {
    %c0_i32 = arith.constant 0 : i32
    %c0_i32_0 = arith.constant 0 : i32
    return %arg0, %c0_i32 : i32, i32
  }
}

module attributes {stable_mosaic.version = 11 : i64} {
  func.func @_matmul_bn_add_kernel(%arg0: i32, %arg1: i32, %arg2: i32, %arg3: memref<16x288xbf16, #tpu.memory_space<vmem>>, %arg4: memref<288x128xbf16, #tpu.memory_space<vmem>>, %arg5: memref<1x128xf32, #tpu.memory_space<vmem>>, %arg6: memref<1x128xf32, #tpu.memory_space<vmem>>, %arg7: memref<16x128xbf16, #tpu.memory_space<vmem>>, %arg8: memref<16x128xbf16, #tpu.memory_space<vmem>>, %arg9: memref<16x128xf32, #tpu.memory_space<vmem>>) attributes {dimension_semantics = [#tpu.dimension_semantics<parallel>, #tpu.dimension_semantics<parallel>, #tpu.dimension_semantics<arbitrary>], iteration_bounds = array<i64: 1, 2, 1>, scalar_prefetch = 0 : i64, scratch_operands = 1 : i64, tpu.core_type = #tpu.core_type<tc>, window_params = [{transform_indices = @transform_0, window_bounds = array<i64: 16, 288>}, {transform_indices = @transform_1, window_bounds = array<i64: 288, 128>}, {transform_indices = @transform_2, window_bounds = array<i64: 1, 128>}, {transform_indices = @transform_3, window_bounds = array<i64: 1, 128>}, {transform_indices = @transform_4, window_bounds = array<i64: 16, 128>}, {transform_indices = @transform_5, window_bounds = array<i64: 16, 128>}]} {
    %c0_i32 = arith.constant 0 : i32
    %0 = arith.cmpi eq, %arg2, %c0_i32 : i32
    %1 = arith.extui %0 : i1 to i32
    %c0_i32_0 = arith.constant 0 : i32
    %2 = arith.cmpi ne, %1, %c0_i32_0 : i32
    scf.if %2 {
      %cst_10 = arith.constant 0.000000e+00 : f32
      %12 = vector.broadcast %cst_10 : f32 to vector<16x128xf32>
      %c0_11 = arith.constant 0 : index
      %c0_12 = arith.constant 0 : index
      %13 = vector.load %arg9[%c0_11, %c0_12] : memref<16x128xf32, #tpu.memory_space<vmem>>, vector<16x128xf32>
      tpu.vector_store %arg9[%c0_11, %c0_12], %12 {strides = array<i32>} : memref<16x128xf32, #tpu.memory_space<vmem>>, vector<16x128xf32>,
    } else {
    }
    %c0 = arith.constant 0 : index
    %c0_1 = arith.constant 0 : index
    %3 = vector.load %arg9[%c0, %c0_1] : memref<16x128xf32, #tpu.memory_space<vmem>>, vector<16x128xf32>
    %c0_2 = arith.constant 0 : index
    %c0_3 = arith.constant 0 : index
    %4 = vector.load %arg3[%c0_2, %c0_3] : memref<16x288xbf16, #tpu.memory_space<vmem>>, vector<16x288xbf16>
    %c0_4 = arith.constant 0 : index
    %c0_5 = arith.constant 0 : index
    %5 = vector.load %arg4[%c0_4, %c0_5] : memref<288x128xbf16, #tpu.memory_space<vmem>>, vector<288x128xbf16>
    %cst = arith.constant dense<0.000000e+00> : vector<16x128xf32>
    %6 = tpu.matmul %4, %5, %cst {dimension_numbers = #tpu.dot_dimension_numbers<[1], [0], [0], [1], [0, 0, 1, 1], [], []>} : vector<16x288xbf16>, vector<288x128xbf16>, vector<16x128xf32> -> vector<16x128xf32>
    %7 = arith.addf %3, %6 : vector<16x128xf32>
    %c0_6 = arith.constant 0 : index
    %c0_7 = arith.constant 0 : index
    %8 = vector.load %arg9[%c0_6, %c0_7] : memref<16x128xf32, #tpu.memory_space<vmem>>, vector<16x128xf32>
    tpu.vector_store %arg9[%c0_6, %c0_7], %7 {strides = array<i32>} : memref<16x128xf32, #tpu.memory_space<vmem>>, vector<16x128xf32>,
    %c0_i32_8 = arith.constant 0 : i32
    %9 = arith.cmpi eq, %arg2, %c0_i32_8 : i32
    %10 = arith.extui %9 : i1 to i32
    %c0_i32_9 = arith.constant 0 : i32
    %11 = arith.cmpi ne, %10, %c0_i32_9 : i32
    scf.if %11 {
      %c0_10 = arith.constant 0 : index
      %c0_11 = arith.constant 0 : index
      %12 = vector.load %arg9[%c0_10, %c0_11] : memref<16x128xf32, #tpu.memory_space<vmem>>, vector<16x128xf32>
      %c0_12 = arith.constant 0 : index
      %c0_13 = arith.constant 0 : index
      %13 = vector.load %arg5[%c0_12, %c0_13] : memref<1x128xf32, #tpu.memory_space<vmem>>, vector<1x128xf32>
      %14 = vector.broadcast %13 : vector<1x128xf32> to vector<16x128xf32>
      %15 = arith.mulf %12, %14 : vector<16x128xf32>
      %c0_14 = arith.constant 0 : index
      %c0_15 = arith.constant 0 : index
      %16 = vector.load %arg6[%c0_14, %c0_15] : memref<1x128xf32, #tpu.memory_space<vmem>>, vector<1x128xf32>
      %17 = vector.broadcast %16 : vector<1x128xf32> to vector<16x128xf32>
      %18 = arith.addf %15, %17 : vector<16x128xf32>
      %c0_16 = arith.constant 0 : index
      %c0_17 = arith.constant 0 : index
      %19 = vector.load %arg7[%c0_16, %c0_17] : memref<16x128xbf16, #tpu.memory_space<vmem>>, vector<16x128xbf16>
      %20 = arith.extf %19 : vector<16x128xbf16> to vector<16x128xf32>
      %21 = arith.addf %18, %20 : vector<16x128xf32>
      %cst_18 = arith.constant 0.000000e+00 : f32
      %22 = vector.broadcast %cst_18 : f32 to vector<16x128xf32>
      %23 = arith.maximumf %21, %22 : vector<16x128xf32>
      %24 = arith.truncf %23 : vector<16x128xf32> to vector<16x128xbf16>
      %c0_19 = arith.constant 0 : index
      %c0_20 = arith.constant 0 : index
      %25 = vector.load %arg8[%c0_19, %c0_20] : memref<16x128xbf16, #tpu.memory_space<vmem>>, vector<16x128xbf16>
      tpu.vector_store %arg8[%c0_19, %c0_20], %24 {strides = array<i32>} : memref<16x128xbf16, #tpu.memory_space<vmem>>, vector<16x128xbf16>,
    } else {
    }
    return
  }
  func.func @transform_0(%arg0: i32, %arg1: i32, %arg2: i32) -> (i32, i32) {
    %c0_i32 = arith.constant 0 : i32
    return %arg1, %arg2 : i32, i32
  }
  func.func @transform_1(%arg0: i32, %arg1: i32, %arg2: i32) -> (i32, i32) {
    %c0_i32 = arith.constant 0 : i32
    return %arg2, %arg0 : i32, i32
  }
  func.func @transform_2(%arg0: i32, %arg1: i32, %arg2: i32) -> (i32, i32) {
    %c0_i32 = arith.constant 0 : i32
    %c0_i32_0 = arith.constant 0 : i32
    return %c0_i32, %arg0 : i32, i32
  }
  func.func @transform_3(%arg0: i32, %arg1: i32, %arg2: i32) -> (i32, i32) {
    %c0_i32 = arith.constant 0 : i32
    %c0_i32_0 = arith.constant 0 : i32
    return %c0_i32, %arg0 : i32, i32
  }
  func.func @transform_4(%arg0: i32, %arg1: i32, %arg2: i32) -> (i32, i32) {
    %c0_i32 = arith.constant 0 : i32
    return %arg1, %arg0 : i32, i32
  }
  func.func @transform_5(%arg0: i32, %arg1: i32, %arg2: i32) -> (i32, i32) {
    %c0_i32 = arith.constant 0 : i32
    return %arg1, %arg0 : i32, i32
  }
}

module attributes {stable_mosaic.version = 11 : i64} {
  func.func @_matmul_bn_kernel(%arg0: i32, %arg1: i32, %arg2: i32, %arg3: memref<16x288xbf16, #tpu.memory_space<vmem>>, %arg4: memref<288x128xbf16, #tpu.memory_space<vmem>>, %arg5: memref<1x128xf32, #tpu.memory_space<vmem>>, %arg6: memref<1x128xf32, #tpu.memory_space<vmem>>, %arg7: memref<16x128xbf16, #tpu.memory_space<vmem>>, %arg8: memref<16x128xf32, #tpu.memory_space<vmem>>) attributes {dimension_semantics = [#tpu.dimension_semantics<parallel>, #tpu.dimension_semantics<parallel>, #tpu.dimension_semantics<arbitrary>], iteration_bounds = array<i64: 1, 2, 1>, scalar_prefetch = 0 : i64, scratch_operands = 1 : i64, tpu.core_type = #tpu.core_type<tc>, window_params = [{transform_indices = @transform_0, window_bounds = array<i64: 16, 288>}, {transform_indices = @transform_1, window_bounds = array<i64: 288, 128>}, {transform_indices = @transform_2, window_bounds = array<i64: 1, 128>}, {transform_indices = @transform_3, window_bounds = array<i64: 1, 128>}, {transform_indices = @transform_4, window_bounds = array<i64: 16, 128>}]} {
    %c0_i32 = arith.constant 0 : i32
    %0 = arith.cmpi eq, %arg2, %c0_i32 : i32
    %1 = arith.extui %0 : i1 to i32
    %c0_i32_0 = arith.constant 0 : i32
    %2 = arith.cmpi ne, %1, %c0_i32_0 : i32
    scf.if %2 {
      %cst_10 = arith.constant 0.000000e+00 : f32
      %12 = vector.broadcast %cst_10 : f32 to vector<16x128xf32>
      %c0_11 = arith.constant 0 : index
      %c0_12 = arith.constant 0 : index
      %13 = vector.load %arg8[%c0_11, %c0_12] : memref<16x128xf32, #tpu.memory_space<vmem>>, vector<16x128xf32>
      tpu.vector_store %arg8[%c0_11, %c0_12], %12 {strides = array<i32>} : memref<16x128xf32, #tpu.memory_space<vmem>>, vector<16x128xf32>,
    } else {
    }
    %c0 = arith.constant 0 : index
    %c0_1 = arith.constant 0 : index
    %3 = vector.load %arg8[%c0, %c0_1] : memref<16x128xf32, #tpu.memory_space<vmem>>, vector<16x128xf32>
    %c0_2 = arith.constant 0 : index
    %c0_3 = arith.constant 0 : index
    %4 = vector.load %arg3[%c0_2, %c0_3] : memref<16x288xbf16, #tpu.memory_space<vmem>>, vector<16x288xbf16>
    %c0_4 = arith.constant 0 : index
    %c0_5 = arith.constant 0 : index
    %5 = vector.load %arg4[%c0_4, %c0_5] : memref<288x128xbf16, #tpu.memory_space<vmem>>, vector<288x128xbf16>
    %cst = arith.constant dense<0.000000e+00> : vector<16x128xf32>
    %6 = tpu.matmul %4, %5, %cst {dimension_numbers = #tpu.dot_dimension_numbers<[1], [0], [0], [1], [0, 0, 1, 1], [], []>} : vector<16x288xbf16>, vector<288x128xbf16>, vector<16x128xf32> -> vector<16x128xf32>
    %7 = arith.addf %3, %6 : vector<16x128xf32>
    %c0_6 = arith.constant 0 : index
    %c0_7 = arith.constant 0 : index
    %8 = vector.load %arg8[%c0_6, %c0_7] : memref<16x128xf32, #tpu.memory_space<vmem>>, vector<16x128xf32>
    tpu.vector_store %arg8[%c0_6, %c0_7], %7 {strides = array<i32>} : memref<16x128xf32, #tpu.memory_space<vmem>>, vector<16x128xf32>,
    %c0_i32_8 = arith.constant 0 : i32
    %9 = arith.cmpi eq, %arg2, %c0_i32_8 : i32
    %10 = arith.extui %9 : i1 to i32
    %c0_i32_9 = arith.constant 0 : i32
    %11 = arith.cmpi ne, %10, %c0_i32_9 : i32
    scf.if %11 {
      %c0_10 = arith.constant 0 : index
      %c0_11 = arith.constant 0 : index
      %12 = vector.load %arg8[%c0_10, %c0_11] : memref<16x128xf32, #tpu.memory_space<vmem>>, vector<16x128xf32>
      %c0_12 = arith.constant 0 : index
      %c0_13 = arith.constant 0 : index
      %13 = vector.load %arg5[%c0_12, %c0_13] : memref<1x128xf32, #tpu.memory_space<vmem>>, vector<1x128xf32>
      %14 = vector.broadcast %13 : vector<1x128xf32> to vector<16x128xf32>
      %15 = arith.mulf %12, %14 : vector<16x128xf32>
      %c0_14 = arith.constant 0 : index
      %c0_15 = arith.constant 0 : index
      %16 = vector.load %arg6[%c0_14, %c0_15] : memref<1x128xf32, #tpu.memory_space<vmem>>, vector<1x128xf32>
      %17 = vector.broadcast %16 : vector<1x128xf32> to vector<16x128xf32>
      %18 = arith.addf %15, %17 : vector<16x128xf32>
      %cst_16 = arith.constant 0.000000e+00 : f32
      %19 = vector.broadcast %cst_16 : f32 to vector<16x128xf32>
      %20 = arith.maximumf %18, %19 : vector<16x128xf32>
      %21 = arith.truncf %20 : vector<16x128xf32> to vector<16x128xbf16>
      %c0_17 = arith.constant 0 : index
      %c0_18 = arith.constant 0 : index
      %22 = vector.load %arg7[%c0_17, %c0_18] : memref<16x128xbf16, #tpu.memory_space<vmem>>, vector<16x128xbf16>
      tpu.vector_store %arg7[%c0_17, %c0_18], %21 {strides = array<i32>} : memref<16x128xbf16, #tpu.memory_space<vmem>>, vector<16x128xbf16>,
    } else {
    }
    return
  }
  func.func @transform_0(%arg0: i32, %arg1: i32, %arg2: i32) -> (i32, i32) {
    %c0_i32 = arith.constant 0 : i32
    return %arg1, %arg2 : i32, i32
  }
  func.func @transform_1(%arg0: i32, %arg1: i32, %arg2: i32) -> (i32, i32) {
    %c0_i32 = arith.constant 0 : i32
    return %arg2, %arg0 : i32, i32
  }
  func.func @transform_2(%arg0: i32, %arg1: i32, %arg2: i32) -> (i32, i32) {
    %c0_i32 = arith.constant 0 : i32
    %c0_i32_0 = arith.constant 0 : i32
    return %c0_i32, %arg0 : i32, i32
  }
  func.func @transform_3(%arg0: i32, %arg1: i32, %arg2: i32) -> (i32, i32) {
    %c0_i32 = arith.constant 0 : i32
    %c0_i32_0 = arith.constant 0 : i32
    return %c0_i32, %arg0 : i32, i32
  }
  func.func @transform_4(%arg0: i32, %arg1: i32, %arg2: i32) -> (i32, i32) {
    %c0_i32 = arith.constant 0 : i32
    return %arg1, %arg0 : i32, i32
  }
}

module attributes {stable_mosaic.version = 11 : i64} {
  func.func @_matmul_bn_add_kernel(%arg0: i32, %arg1: i32, %arg2: i32, %arg3: memref<16x512xbf16, #tpu.memory_space<vmem>>, %arg4: memref<512x128xbf16, #tpu.memory_space<vmem>>, %arg5: memref<1x128xf32, #tpu.memory_space<vmem>>, %arg6: memref<1x128xf32, #tpu.memory_space<vmem>>, %arg7: memref<16x128xbf16, #tpu.memory_space<vmem>>, %arg8: memref<16x128xbf16, #tpu.memory_space<vmem>>, %arg9: memref<16x128xf32, #tpu.memory_space<vmem>>) attributes {dimension_semantics = [#tpu.dimension_semantics<parallel>, #tpu.dimension_semantics<parallel>, #tpu.dimension_semantics<arbitrary>], iteration_bounds = array<i64: 1, 1, 2>, scalar_prefetch = 0 : i64, scratch_operands = 1 : i64, tpu.core_type = #tpu.core_type<tc>, window_params = [{transform_indices = @transform_0, window_bounds = array<i64: 16, 512>}, {transform_indices = @transform_1, window_bounds = array<i64: 512, 128>}, {transform_indices = @transform_2, window_bounds = array<i64: 1, 128>}, {transform_indices = @transform_3, window_bounds = array<i64: 1, 128>}, {transform_indices = @transform_4, window_bounds = array<i64: 16, 128>}, {transform_indices = @transform_5, window_bounds = array<i64: 16, 128>}]} {
    %c0_i32 = arith.constant 0 : i32
    %0 = arith.cmpi eq, %arg2, %c0_i32 : i32
    %1 = arith.extui %0 : i1 to i32
    %c0_i32_0 = arith.constant 0 : i32
    %2 = arith.cmpi ne, %1, %c0_i32_0 : i32
    scf.if %2 {
      %cst_9 = arith.constant 0.000000e+00 : f32
      %12 = vector.broadcast %cst_9 : f32 to vector<16x128xf32>
      %c0_10 = arith.constant 0 : index
      %c0_11 = arith.constant 0 : index
      %13 = vector.load %arg9[%c0_10, %c0_11] : memref<16x128xf32, #tpu.memory_space<vmem>>, vector<16x128xf32>
      tpu.vector_store %arg9[%c0_10, %c0_11], %12 {strides = array<i32>} : memref<16x128xf32, #tpu.memory_space<vmem>>, vector<16x128xf32>,
    } else {
    }
    %c0 = arith.constant 0 : index
    %c0_1 = arith.constant 0 : index
    %3 = vector.load %arg9[%c0, %c0_1] : memref<16x128xf32, #tpu.memory_space<vmem>>, vector<16x128xf32>
    %c0_2 = arith.constant 0 : index
    %c0_3 = arith.constant 0 : index
    %4 = vector.load %arg3[%c0_2, %c0_3] : memref<16x512xbf16, #tpu.memory_space<vmem>>, vector<16x512xbf16>
    %c0_4 = arith.constant 0 : index
    %c0_5 = arith.constant 0 : index
    %5 = vector.load %arg4[%c0_4, %c0_5] : memref<512x128xbf16, #tpu.memory_space<vmem>>, vector<512x128xbf16>
    %cst = arith.constant dense<0.000000e+00> : vector<16x128xf32>
    %6 = tpu.matmul %4, %5, %cst {dimension_numbers = #tpu.dot_dimension_numbers<[1], [0], [0], [1], [0, 0, 1, 1], [], []>} : vector<16x512xbf16>, vector<512x128xbf16>, vector<16x128xf32> -> vector<16x128xf32>
    %7 = arith.addf %3, %6 : vector<16x128xf32>
    %c0_6 = arith.constant 0 : index
    %c0_7 = arith.constant 0 : index
    %8 = vector.load %arg9[%c0_6, %c0_7] : memref<16x128xf32, #tpu.memory_space<vmem>>, vector<16x128xf32>
    tpu.vector_store %arg9[%c0_6, %c0_7], %7 {strides = array<i32>} : memref<16x128xf32, #tpu.memory_space<vmem>>, vector<16x128xf32>,
    %c1_i32 = arith.constant 1 : i32
    %9 = arith.cmpi eq, %arg2, %c1_i32 : i32
    %10 = arith.extui %9 : i1 to i32
    %c0_i32_8 = arith.constant 0 : i32
    %11 = arith.cmpi ne, %10, %c0_i32_8 : i32
    scf.if %11 {
      %c0_9 = arith.constant 0 : index
      %c0_10 = arith.constant 0 : index
      %12 = vector.load %arg9[%c0_9, %c0_10] : memref<16x128xf32, #tpu.memory_space<vmem>>, vector<16x128xf32>
      %c0_11 = arith.constant 0 : index
      %c0_12 = arith.constant 0 : index
      %13 = vector.load %arg5[%c0_11, %c0_12] : memref<1x128xf32, #tpu.memory_space<vmem>>, vector<1x128xf32>
      %14 = vector.broadcast %13 : vector<1x128xf32> to vector<16x128xf32>
      %15 = arith.mulf %12, %14 : vector<16x128xf32>
      %c0_13 = arith.constant 0 : index
      %c0_14 = arith.constant 0 : index
      %16 = vector.load %arg6[%c0_13, %c0_14] : memref<1x128xf32, #tpu.memory_space<vmem>>, vector<1x128xf32>
      %17 = vector.broadcast %16 : vector<1x128xf32> to vector<16x128xf32>
      %18 = arith.addf %15, %17 : vector<16x128xf32>
      %c0_15 = arith.constant 0 : index
      %c0_16 = arith.constant 0 : index
      %19 = vector.load %arg7[%c0_15, %c0_16] : memref<16x128xbf16, #tpu.memory_space<vmem>>, vector<16x128xbf16>
      %20 = arith.extf %19 : vector<16x128xbf16> to vector<16x128xf32>
      %21 = arith.addf %18, %20 : vector<16x128xf32>
      %cst_17 = arith.constant 0.000000e+00 : f32
      %22 = vector.broadcast %cst_17 : f32 to vector<16x128xf32>
      %23 = arith.maximumf %21, %22 : vector<16x128xf32>
      %24 = arith.truncf %23 : vector<16x128xf32> to vector<16x128xbf16>
      %c0_18 = arith.constant 0 : index
      %c0_19 = arith.constant 0 : index
      %25 = vector.load %arg8[%c0_18, %c0_19] : memref<16x128xbf16, #tpu.memory_space<vmem>>, vector<16x128xbf16>
      tpu.vector_store %arg8[%c0_18, %c0_19], %24 {strides = array<i32>} : memref<16x128xbf16, #tpu.memory_space<vmem>>, vector<16x128xbf16>,
    } else {
    }
    return
  }
  func.func @transform_0(%arg0: i32, %arg1: i32, %arg2: i32) -> (i32, i32) {
    %c0_i32 = arith.constant 0 : i32
    return %arg0, %arg2 : i32, i32
  }
  func.func @transform_1(%arg0: i32, %arg1: i32, %arg2: i32) -> (i32, i32) {
    %c0_i32 = arith.constant 0 : i32
    return %arg2, %arg1 : i32, i32
  }
  func.func @transform_2(%arg0: i32, %arg1: i32, %arg2: i32) -> (i32, i32) {
    %c0_i32 = arith.constant 0 : i32
    %c0_i32_0 = arith.constant 0 : i32
    return %c0_i32, %arg1 : i32, i32
  }
  func.func @transform_3(%arg0: i32, %arg1: i32, %arg2: i32) -> (i32, i32) {
    %c0_i32 = arith.constant 0 : i32
    %c0_i32_0 = arith.constant 0 : i32
    return %c0_i32, %arg1 : i32, i32
  }
  func.func @transform_4(%arg0: i32, %arg1: i32, %arg2: i32) -> (i32, i32) {
    %c0_i32 = arith.constant 0 : i32
    return %arg0, %arg1 : i32, i32
  }
  func.func @transform_5(%arg0: i32, %arg1: i32, %arg2: i32) -> (i32, i32) {
    %c0_i32 = arith.constant 0 : i32
    return %arg0, %arg1 : i32, i32
  }
}

module attributes {stable_mosaic.version = 11 : i64} {
  func.func @_matmul_bn_kernel(%arg0: i32, %arg1: i32, %arg2: i32, %arg3: memref<16x288xbf16, #tpu.memory_space<vmem>>, %arg4: memref<288x128xbf16, #tpu.memory_space<vmem>>, %arg5: memref<1x128xf32, #tpu.memory_space<vmem>>, %arg6: memref<1x128xf32, #tpu.memory_space<vmem>>, %arg7: memref<16x128xbf16, #tpu.memory_space<vmem>>, %arg8: memref<16x128xf32, #tpu.memory_space<vmem>>) attributes {dimension_semantics = [#tpu.dimension_semantics<parallel>, #tpu.dimension_semantics<parallel>, #tpu.dimension_semantics<arbitrary>], iteration_bounds = array<i64: 1, 1, 1>, scalar_prefetch = 0 : i64, scratch_operands = 1 : i64, tpu.core_type = #tpu.core_type<tc>, window_params = [{transform_indices = @transform_0, window_bounds = array<i64: 16, 288>}, {transform_indices = @transform_1, window_bounds = array<i64: 288, 128>}, {transform_indices = @transform_2, window_bounds = array<i64: 1, 128>}, {transform_indices = @transform_3, window_bounds = array<i64: 1, 128>}, {transform_indices = @transform_4, window_bounds = array<i64: 16, 128>}]} {
    %c0_i32 = arith.constant 0 : i32
    %0 = arith.cmpi eq, %arg2, %c0_i32 : i32
    %1 = arith.extui %0 : i1 to i32
    %c0_i32_0 = arith.constant 0 : i32
    %2 = arith.cmpi ne, %1, %c0_i32_0 : i32
    scf.if %2 {
      %cst_10 = arith.constant 0.000000e+00 : f32
      %12 = vector.broadcast %cst_10 : f32 to vector<16x128xf32>
      %c0_11 = arith.constant 0 : index
      %c0_12 = arith.constant 0 : index
      %13 = vector.load %arg8[%c0_11, %c0_12] : memref<16x128xf32, #tpu.memory_space<vmem>>, vector<16x128xf32>
      tpu.vector_store %arg8[%c0_11, %c0_12], %12 {strides = array<i32>} : memref<16x128xf32, #tpu.memory_space<vmem>>, vector<16x128xf32>,
    } else {
    }
    %c0 = arith.constant 0 : index
    %c0_1 = arith.constant 0 : index
    %3 = vector.load %arg8[%c0, %c0_1] : memref<16x128xf32, #tpu.memory_space<vmem>>, vector<16x128xf32>
    %c0_2 = arith.constant 0 : index
    %c0_3 = arith.constant 0 : index
    %4 = vector.load %arg3[%c0_2, %c0_3] : memref<16x288xbf16, #tpu.memory_space<vmem>>, vector<16x288xbf16>
    %c0_4 = arith.constant 0 : index
    %c0_5 = arith.constant 0 : index
    %5 = vector.load %arg4[%c0_4, %c0_5] : memref<288x128xbf16, #tpu.memory_space<vmem>>, vector<288x128xbf16>
    %cst = arith.constant dense<0.000000e+00> : vector<16x128xf32>
    %6 = tpu.matmul %4, %5, %cst {dimension_numbers = #tpu.dot_dimension_numbers<[1], [0], [0], [1], [0, 0, 1, 1], [], []>} : vector<16x288xbf16>, vector<288x128xbf16>, vector<16x128xf32> -> vector<16x128xf32>
    %7 = arith.addf %3, %6 : vector<16x128xf32>
    %c0_6 = arith.constant 0 : index
    %c0_7 = arith.constant 0 : index
    %8 = vector.load %arg8[%c0_6, %c0_7] : memref<16x128xf32, #tpu.memory_space<vmem>>, vector<16x128xf32>
    tpu.vector_store %arg8[%c0_6, %c0_7], %7 {strides = array<i32>} : memref<16x128xf32, #tpu.memory_space<vmem>>, vector<16x128xf32>,
    %c0_i32_8 = arith.constant 0 : i32
    %9 = arith.cmpi eq, %arg2, %c0_i32_8 : i32
    %10 = arith.extui %9 : i1 to i32
    %c0_i32_9 = arith.constant 0 : i32
    %11 = arith.cmpi ne, %10, %c0_i32_9 : i32
    scf.if %11 {
      %c0_10 = arith.constant 0 : index
      %c0_11 = arith.constant 0 : index
      %12 = vector.load %arg8[%c0_10, %c0_11] : memref<16x128xf32, #tpu.memory_space<vmem>>, vector<16x128xf32>
      %c0_12 = arith.constant 0 : index
      %c0_13 = arith.constant 0 : index
      %13 = vector.load %arg5[%c0_12, %c0_13] : memref<1x128xf32, #tpu.memory_space<vmem>>, vector<1x128xf32>
      %14 = vector.broadcast %13 : vector<1x128xf32> to vector<16x128xf32>
      %15 = arith.mulf %12, %14 : vector<16x128xf32>
      %c0_14 = arith.constant 0 : index
      %c0_15 = arith.constant 0 : index
      %16 = vector.load %arg6[%c0_14, %c0_15] : memref<1x128xf32, #tpu.memory_space<vmem>>, vector<1x128xf32>
      %17 = vector.broadcast %16 : vector<1x128xf32> to vector<16x128xf32>
      %18 = arith.addf %15, %17 : vector<16x128xf32>
      %cst_16 = arith.constant 0.000000e+00 : f32
      %19 = vector.broadcast %cst_16 : f32 to vector<16x128xf32>
      %20 = arith.maximumf %18, %19 : vector<16x128xf32>
      %21 = arith.truncf %20 : vector<16x128xf32> to vector<16x128xbf16>
      %c0_17 = arith.constant 0 : index
      %c0_18 = arith.constant 0 : index
      %22 = vector.load %arg7[%c0_17, %c0_18] : memref<16x128xbf16, #tpu.memory_space<vmem>>, vector<16x128xbf16>
      tpu.vector_store %arg7[%c0_17, %c0_18], %21 {strides = array<i32>} : memref<16x128xbf16, #tpu.memory_space<vmem>>, vector<16x128xbf16>,
    } else {
    }
    return
  }
  func.func @transform_0(%arg0: i32, %arg1: i32, %arg2: i32) -> (i32, i32) {
    %c0_i32 = arith.constant 0 : i32
    return %arg0, %arg2 : i32, i32
  }
  func.func @transform_1(%arg0: i32, %arg1: i32, %arg2: i32) -> (i32, i32) {
    %c0_i32 = arith.constant 0 : i32
    return %arg2, %arg1 : i32, i32
  }
  func.func @transform_2(%arg0: i32, %arg1: i32, %arg2: i32) -> (i32, i32) {
    %c0_i32 = arith.constant 0 : i32
    %c0_i32_0 = arith.constant 0 : i32
    return %c0_i32, %arg1 : i32, i32
  }
  func.func @transform_3(%arg0: i32, %arg1: i32, %arg2: i32) -> (i32, i32) {
    %c0_i32 = arith.constant 0 : i32
    %c0_i32_0 = arith.constant 0 : i32
    return %c0_i32, %arg1 : i32, i32
  }
  func.func @transform_4(%arg0: i32, %arg1: i32, %arg2: i32) -> (i32, i32) {
    %c0_i32 = arith.constant 0 : i32
    return %arg0, %arg1 : i32, i32
  }
}

module attributes {stable_mosaic.version = 11 : i64} {
  func.func @_matmul_bn_kernel(%arg0: i32, %arg1: i32, %arg2: i32, %arg3: memref<16x32xbf16, #tpu.memory_space<vmem>>, %arg4: memref<32x128xbf16, #tpu.memory_space<vmem>>, %arg5: memref<1x128xf32, #tpu.memory_space<vmem>>, %arg6: memref<1x128xf32, #tpu.memory_space<vmem>>, %arg7: memref<16x128xbf16, #tpu.memory_space<vmem>>, %arg8: memref<16x128xf32, #tpu.memory_space<vmem>>) attributes {dimension_semantics = [#tpu.dimension_semantics<parallel>, #tpu.dimension_semantics<parallel>, #tpu.dimension_semantics<arbitrary>], iteration_bounds = array<i64: 1, 1, 1>, scalar_prefetch = 0 : i64, scratch_operands = 1 : i64, tpu.core_type = #tpu.core_type<tc>, window_params = [{transform_indices = @transform_0, window_bounds = array<i64: 16, 32>}, {transform_indices = @transform_1, window_bounds = array<i64: 32, 128>}, {transform_indices = @transform_2, window_bounds = array<i64: 1, 128>}, {transform_indices = @transform_3, window_bounds = array<i64: 1, 128>}, {transform_indices = @transform_4, window_bounds = array<i64: 16, 128>}]} {
    %c0_i32 = arith.constant 0 : i32
    %0 = arith.cmpi eq, %arg2, %c0_i32 : i32
    %1 = arith.extui %0 : i1 to i32
    %c0_i32_0 = arith.constant 0 : i32
    %2 = arith.cmpi ne, %1, %c0_i32_0 : i32
    scf.if %2 {
      %cst_10 = arith.constant 0.000000e+00 : f32
      %12 = vector.broadcast %cst_10 : f32 to vector<16x128xf32>
      %c0_11 = arith.constant 0 : index
      %c0_12 = arith.constant 0 : index
      %13 = vector.load %arg8[%c0_11, %c0_12] : memref<16x128xf32, #tpu.memory_space<vmem>>, vector<16x128xf32>
      tpu.vector_store %arg8[%c0_11, %c0_12], %12 {strides = array<i32>} : memref<16x128xf32, #tpu.memory_space<vmem>>, vector<16x128xf32>,
    } else {
    }
    %c0 = arith.constant 0 : index
    %c0_1 = arith.constant 0 : index
    %3 = vector.load %arg8[%c0, %c0_1] : memref<16x128xf32, #tpu.memory_space<vmem>>, vector<16x128xf32>
    %c0_2 = arith.constant 0 : index
    %c0_3 = arith.constant 0 : index
    %4 = vector.load %arg3[%c0_2, %c0_3] : memref<16x32xbf16, #tpu.memory_space<vmem>>, vector<16x32xbf16>
    %c0_4 = arith.constant 0 : index
    %c0_5 = arith.constant 0 : index
    %5 = vector.load %arg4[%c0_4, %c0_5] : memref<32x128xbf16, #tpu.memory_space<vmem>>, vector<32x128xbf16>
    %cst = arith.constant dense<0.000000e+00> : vector<16x128xf32>
    %6 = tpu.matmul %4, %5, %cst {dimension_numbers = #tpu.dot_dimension_numbers<[1], [0], [0], [1], [0, 0, 1, 1], [], []>} : vector<16x32xbf16>, vector<32x128xbf16>, vector<16x128xf32> -> vector<16x128xf32>
    %7 = arith.addf %3, %6 : vector<16x128xf32>
    %c0_6 = arith.constant 0 : index
    %c0_7 = arith.constant 0 : index
    %8 = vector.load %arg8[%c0_6, %c0_7] : memref<16x128xf32, #tpu.memory_space<vmem>>, vector<16x128xf32>
    tpu.vector_store %arg8[%c0_6, %c0_7], %7 {strides = array<i32>} : memref<16x128xf32, #tpu.memory_space<vmem>>, vector<16x128xf32>,
    %c0_i32_8 = arith.constant 0 : i32
    %9 = arith.cmpi eq, %arg2, %c0_i32_8 : i32
    %10 = arith.extui %9 : i1 to i32
    %c0_i32_9 = arith.constant 0 : i32
    %11 = arith.cmpi ne, %10, %c0_i32_9 : i32
    scf.if %11 {
      %c0_10 = arith.constant 0 : index
      %c0_11 = arith.constant 0 : index
      %12 = vector.load %arg8[%c0_10, %c0_11] : memref<16x128xf32, #tpu.memory_space<vmem>>, vector<16x128xf32>
      %c0_12 = arith.constant 0 : index
      %c0_13 = arith.constant 0 : index
      %13 = vector.load %arg5[%c0_12, %c0_13] : memref<1x128xf32, #tpu.memory_space<vmem>>, vector<1x128xf32>
      %14 = vector.broadcast %13 : vector<1x128xf32> to vector<16x128xf32>
      %15 = arith.mulf %12, %14 : vector<16x128xf32>
      %c0_14 = arith.constant 0 : index
      %c0_15 = arith.constant 0 : index
      %16 = vector.load %arg6[%c0_14, %c0_15] : memref<1x128xf32, #tpu.memory_space<vmem>>, vector<1x128xf32>
      %17 = vector.broadcast %16 : vector<1x128xf32> to vector<16x128xf32>
      %18 = arith.addf %15, %17 : vector<16x128xf32>
      %19 = arith.truncf %18 : vector<16x128xf32> to vector<16x128xbf16>
      %c0_16 = arith.constant 0 : index
      %c0_17 = arith.constant 0 : index
      %20 = vector.load %arg7[%c0_16, %c0_17] : memref<16x128xbf16, #tpu.memory_space<vmem>>, vector<16x128xbf16>
      tpu.vector_store %arg7[%c0_16, %c0_17], %19 {strides = array<i32>} : memref<16x128xbf16, #tpu.memory_space<vmem>>, vector<16x128xbf16>,
    } else {
    }
    return
  }
  func.func @transform_0(%arg0: i32, %arg1: i32, %arg2: i32) -> (i32, i32) {
    %c0_i32 = arith.constant 0 : i32
    return %arg0, %arg2 : i32, i32
  }
  func.func @transform_1(%arg0: i32, %arg1: i32, %arg2: i32) -> (i32, i32) {
    %c0_i32 = arith.constant 0 : i32
    return %arg2, %arg1 : i32, i32
  }
  func.func @transform_2(%arg0: i32, %arg1: i32, %arg2: i32) -> (i32, i32) {
    %c0_i32 = arith.constant 0 : i32
    %c0_i32_0 = arith.constant 0 : i32
    return %c0_i32, %arg1 : i32, i32
  }
  func.func @transform_3(%arg0: i32, %arg1: i32, %arg2: i32) -> (i32, i32) {
    %c0_i32 = arith.constant 0 : i32
    %c0_i32_0 = arith.constant 0 : i32
    return %c0_i32, %arg1 : i32, i32
  }
  func.func @transform_4(%arg0: i32, %arg1: i32, %arg2: i32) -> (i32, i32) {
    %c0_i32 = arith.constant 0 : i32
    return %arg0, %arg1 : i32, i32
  }
}

module attributes {stable_mosaic.version = 11 : i64} {
  func.func @_avgpool_fc_kernel(%arg0: i32, %arg1: memref<8x4x64xbf16, #tpu.memory_space<vmem>>, %arg2: memref<64x128xbf16, #tpu.memory_space<vmem>>, %arg3: memref<1x128xf32, #tpu.memory_space<vmem>>, %arg4: memref<8x128xf32, #tpu.memory_space<vmem>>) attributes {dimension_semantics = [#tpu.dimension_semantics<parallel>], iteration_bounds = array<i64: 1>, scalar_prefetch = 0 : i64, scratch_operands = 0 : i64, tpu.core_type = #tpu.core_type<tc>, window_params = [{transform_indices = @transform_0, window_bounds = array<i64: 8, 4, 64>}, {pipeline_mode = #tpu.pipeline_mode<synchronous>, transform_indices = @transform_1, window_bounds = array<i64: 64, 128>}, {pipeline_mode = #tpu.pipeline_mode<synchronous>, transform_indices = @transform_2, window_bounds = array<i64: 1, 128>}, {transform_indices = @transform_3, window_bounds = array<i64: 8, 128>}]} {
    %c0 = arith.constant 0 : index
    %c0_0 = arith.constant 0 : index
    %c0_1 = arith.constant 0 : index
    %0 = vector.load %arg1[%c0, %c0_0, %c0_1] : memref<8x4x64xbf16, #tpu.memory_space<vmem>>, vector<8x4x64xbf16>
    %1 = arith.extf %0 : vector<8x4x64xbf16> to vector<8x4x64xf32>
    %cst = arith.constant dense<0.000000e+00> : vector<8x64xf32>
    %2 = vector.multi_reduction <add>, %1, %cst [1] : vector<8x4x64xf32> to vector<8x64xf32>
    %cst_2 = arith.constant 4.000000e+00 : f32
    %3 = vector.broadcast %cst_2 : f32 to vector<8x64xf32>
    %4 = arith.divf %2, %3 : vector<8x64xf32>
    %5 = arith.truncf %4 : vector<8x64xf32> to vector<8x64xbf16>
    %c0_3 = arith.constant 0 : index
    %c0_4 = arith.constant 0 : index
    %6 = vector.load %arg2[%c0_3, %c0_4] : memref<64x128xbf16, #tpu.memory_space<vmem>>, vector<64x128xbf16>
    %cst_5 = arith.constant dense<0.000000e+00> : vector<8x128xf32>
    %7 = tpu.matmul %5, %6, %cst_5 {dimension_numbers = #tpu.dot_dimension_numbers<[1], [0], [0], [1], [0, 0, 1, 1], [], []>} : vector<8x64xbf16>, vector<64x128xbf16>, vector<8x128xf32> -> vector<8x128xf32>
    %c0_6 = arith.constant 0 : index
    %c0_7 = arith.constant 0 : index
    %8 = vector.load %arg3[%c0_6, %c0_7] : memref<1x128xf32, #tpu.memory_space<vmem>>, vector<1x128xf32>
    %9 = vector.broadcast %8 : vector<1x128xf32> to vector<8x128xf32>
    %10 = arith.addf %7, %9 : vector<8x128xf32>
    %c0_8 = arith.constant 0 : index
    %c0_9 = arith.constant 0 : index
    %11 = vector.load %arg4[%c0_8, %c0_9] : memref<8x128xf32, #tpu.memory_space<vmem>>, vector<8x128xf32>
    tpu.vector_store %arg4[%c0_8, %c0_9], %10 {strides = array<i32>} : memref<8x128xf32, #tpu.memory_space<vmem>>, vector<8x128xf32>,
    return
  }
  func.func @transform_0(%arg0: i32) -> (i32, i32, i32) {
    %c0_i32 = arith.constant 0 : i32
    %c0_i32_0 = arith.constant 0 : i32
    %c0_i32_1 = arith.constant 0 : i32
    return %arg0, %c0_i32, %c0_i32_0 : i32, i32, i32
  }
  func.func @transform_1(%arg0: i32) -> (i32, i32) {
    %c0_i32 = arith.constant 0 : i32
    %c0_i32_0 = arith.constant 0 : i32
    %c0_i32_1 = arith.constant 0 : i32
    return %c0_i32, %c0_i32_0 : i32, i32
  }
  func.func @transform_2(%arg0: i32) -> (i32, i32) {
    %c0_i32 = arith.constant 0 : i32
    %c0_i32_0 = arith.constant 0 : i32
    %c0_i32_1 = arith.constant 0 : i32
    return %c0_i32, %c0_i32_0 : i32, i32
  }
  func.func @transform_3(%arg0: i32) -> (i32, i32) {
    %c0_i32 = arith.constant 0 : i32
    %c0_i32_0 = arith.constant 0 : i32
    return %arg0, %c0_i32 : i32, i32
  }
}

</mosaic_0001>

<llo_original>
// kernel: _lambda_.10
$region0: #{_lambda_.10}
  #allocation0 [shape = 'u32[]', space=smem, size = 0x4, offset = 0x4, fixed_abs, tag = 'smem constant byte address 0x4 - core index']
  #allocation1 [shape = 'u32[144,128]{1,0:T(1,128)}', space=vmem, size = 0x12000, scoped, tag = 'internal scratch']
  #allocation2 [shape = 'f32[64,128]{1,0:T(8,128)}', space=vmem, size = 0x8000, scoped, tag = 'scratch operand']
  %s0 = inlined_call_operand.vmem [shape: bf16[128,27], index: 0, kind: input, shape index: {}]
  %s1 = inlined_call_operand.vmem [shape: bf16[27,128], index: 1, kind: input, shape index: {}]
  %s2 = inlined_call_operand.vmem [shape: f32[1,128], index: 2, kind: input, shape index: {}]
  %s3 = inlined_call_operand.vmem [shape: f32[1,128], index: 3, kind: input, shape index: {}]
  %s4 = inlined_call_operand.vmem [shape: bf16[128,128], index: 4, kind: output, shape index: {}]
  %s5 = sld [smem:[#allocation0]]
  $region57: #{_lambda_.10} parent=0
    _
  %s7 = ssub.s32 1, %s5
  %s8 = scalar_select 0, %s7, %s5
  loop: start=0, step=1, limit=4
  $region2: #{_lambda_.10} parent=0 // loop_pre_header
    _
  $region3: #{_lambda_.10} parent=0 // loop_header
    %s10 = sphi 0, %s14
    %p11 = scmp.ge.s32.totalorder %s10, 4
    %s17 = sphi 0, %s36
    %s18 = sphi 0, %s32
    %s19 = sphi 0, %s28
    %s20 = sphi 0, %s17
    %s21 = sphi 0, %s18
    %s22 = sphi 0, %s19
    %s23 = sphi 0, %s20
    %s24 = sphi 0, %s21
    %s25 = sphi 0, %s22
    %s41 = sphi 0, %s43
    %s44 = sphi 0, %s41
    %s45 = sphi 0, %s44
    %s61 = sphi 0, %s45
    %s69 = sphi 0, %s71
    %s72 = sphi 0, %s69
    %s73 = sphi 0, %s72
    %s89 = sphi 0, %s73
    %s95 = sphi 0, %s97
    %s98 = sphi 0, %s95
    %s99 = sphi 0, %s98
    %s115 = sphi 0, %s99
    %s121 = sphi 0, %s123
    %s124 = sphi 0, %s121
    %s125 = sphi 0, %s124
    %s141 = sphi 0, %s125
    %s149 = sphi 0, %s151
    %s152 = sphi 0, %s149
    %s153 = sphi 0, %s152
    %s169 = sphi 0, %s153
  $region4: #{_lambda_.10} parent=0 // loop_header_branch
    %13 = sbr.rel (%p11) target = $region8
  $region5: #{_lambda_.10} parent=0 // loop_body
    %s15 = ssub.s32 %s10, 1
    %s16 = ssub.s32 %s10, 2
    %s26 = sadd.s32 1, %s19
    %p27 = scmp.ge.s32.totalorder %s26, 1
    %s28 = scalar_select %p27, 0, %s26
    %s29 = sadd.s32 1, %s18
    %s30 = scalar_select %p27, %s29, %s18
    %p31 = scmp.ge.s32.totalorder %s30, 2
    %s32 = scalar_select %p31, 0, %s30
    %s33 = sadd.s32 1, %s17
    %s34 = scalar_select %p31, %s33, %s17
    %p35 = scmp.ge.s32.totalorder %s34, 1
    %s36 = scalar_select %p35, 0, %s34
    %s37 = ssub.s32 %s18, %s32
    %s38 = ssub.s32 %s19, %s28
    %s39 = sor.u32 %s37, %s38
    %p40 = scmp.eq.s32.totalorder %s39, 0
    %s42 = sadd.s32 %s41, 1
    %s43 = scalar_select %p40, %s41, %s42
    %p46 = pneg %p40
    %p47 = scmp.eq.s32.totalorder %s10, 1
    %p48 = por %p46, %p47
    %p49 = scmp.ne.s32.totalorder %s41, %s44
    %p50 = scmp.eq.s32.totalorder %s10, 0
    %p51 = por %p49, %p50
    %p52 = scmp.ne.s32.totalorder %s41, %s44
    %p53 = scmp.eq.s32.totalorder %s15, 1
    %p54 = por %p52, %p53
    %p55 = scmp.ne.s32.totalorder %s44, %s45
    %p56 = scmp.eq.s32.totalorder %s15, 0
    %p57 = por %p55, %p56
    %p58 = scmp.ne.s32.totalorder %s44, %s45
    %p59 = scmp.eq.s32.totalorder %s16, 1
    %p60 = por %p58, %p59
    %p62 = scmp.ne.s32.totalorder %s45, %s61
    %p63 = scmp.eq.s32.totalorder %s16, 0
    %p64 = por %p62, %p63
    %s65 = ssub.s32 %s19, %s28
    %s66 = ssub.s32 %s17, %s36
    %s67 = sor.u32 %s65, %s66
    %p68 = scmp.eq.s32.totalorder %s67, 0
    %s70 = sadd.s32 %s69, 1
    %s71 = scalar_select %p68, %s69, %s70
    %p74 = pneg %p68
    %p75 = scmp.eq.s32.totalorder %s10, 1
    %p76 = por %p74, %p75
    %p77 = scmp.ne.s32.totalorder %s69, %s72
    %p78 = scmp.eq.s32.totalorder %s10, 0
    %p79 = por %p77, %p78
    %p80 = scmp.ne.s32.totalorder %s69, %s72
    %p81 = scmp.eq.s32.totalorder %s15, 1
    %p82 = por %p80, %p81
    %p83 = scmp.ne.s32.totalorder %s72, %s73
    %p84 = scmp.eq.s32.totalorder %s15, 0
    %p85 = por %p83, %p84
    %p86 = scmp.ne.s32.totalorder %s72, %s73
    %p87 = scmp.eq.s32.totalorder %s16, 1
    %p88 = por %p86, %p87
    %p90 = scmp.ne.s32.totalorder %s73, %s89
    %p91 = scmp.eq.s32.totalorder %s16, 0
    %p92 = por %p90, %p91
    %s93 = ssub.s32 %s17, %s36
    %p94 = scmp.eq.s32.totalorder %s93, 0
    %s96 = sadd.s32 %s95, 1
    %s97 = scalar_select %p94, %s95, %s96
    %p100 = pneg %p94
    %p101 = scmp.eq.s32.totalorder %s10, 1
    %p102 = por %p100, %p101
    %p103 = scmp.ne.s32.totalorder %s95, %s98
    %p104 = scmp.eq.s32.totalorder %s10, 0
    %p105 = por %p103, %p104
    %p106 = scmp.ne.s32.totalorder %s95, %s98
    %p107 = scmp.eq.s32.totalorder %s15, 1
    %p108 = por %p106, %p107
    %p109 = scmp.ne.s32.totalorder %s98, %s99
    %p110 = scmp.eq.s32.totalorder %s15, 0
    %p111 = por %p109, %p110
    %p112 = scmp.ne.s32.totalorder %s98, %s99
    %p113 = scmp.eq.s32.totalorder %s16, 1
    %p114 = por %p112, %p113
    %p116 = scmp.ne.s32.totalorder %s99, %s115
    %p117 = scmp.eq.s32.totalorder %s16, 0
    %p118 = por %p116, %p117
    %s119 = ssub.s32 %s17, %s36
    %p120 = scmp.eq.s32.totalorder %s119, 0
    %s122 = sadd.s32 %s121, 1
    %s123 = scalar_select %p120, %s121, %s122
    %p126 = pneg %p120
    %p127 = scmp.eq.s32.totalorder %s10, 1
    %p128 = por %p126, %p127
    %p129 = scmp.ne.s32.totalorder %s121, %s124
    %p130 = scmp.eq.s32.totalorder %s10, 0
    %p131 = por %p129, %p130
    %p132 = scmp.ne.s32.totalorder %s121, %s124
    %p133 = scmp.eq.s32.totalorder %s15, 1
    %p134 = por %p132, %p133
    %p135 = scmp.ne.s32.totalorder %s124, %s125
    %p136 = scmp.eq.s32.totalorder %s15, 0
    %p137 = por %p135, %p136
    %p138 = scmp.ne.s32.totalorder %s124, %s125
    %p139 = scmp.eq.s32.totalorder %s16, 1
    %p140 = por %p138, %p139
    %p142 = scmp.ne.s32.totalorder %s125, %s141
    %p143 = scmp.eq.s32.totalorder %s16, 0
    %p144 = por %p142, %p143
    %s145 = ssub.s32 %s18, %s32
    %s146 = ssub.s32 %s17, %s36
    %s147 = sor.u32 %s145, %s146
    %p148 = scmp.eq.s32.totalorder %s147, 0
    %s150 = sadd.s32 %s149, 1
    %s151 = scalar_select %p148, %s149, %s150
    %p154 = pneg %p148
    %p155 = scmp.eq.s32.totalorder %s10, 1
    %p156 = por %p154, %p155
    %p157 = scmp.ne.s32.totalorder %s149, %s152
    %p158 = scmp.eq.s32.totalorder %s10, 0
    %p159 = por %p157, %p158
    %p160 = scmp.ne.s32.totalorder %s149, %s152
    %p161 = scmp.eq.s32.totalorder %s15, 1
    %p162 = por %p160, %p161
    %p163 = scmp.ne.s32.totalorder %s152, %s153
    %p164 = scmp.eq.s32.totalorder %s15, 0
    %p165 = por %p163, %p164
    %p166 = scmp.ne.s32.totalorder %s152, %s153
    %p167 = scmp.eq.s32.totalorder %s16, 1
    %p168 = por %p166, %p167
    %p170 = scmp.ne.s32.totalorder %s153, %s169
    %p171 = scmp.eq.s32.totalorder %s16, 0
    %p172 = por %p170, %p171
    %p173 = scmp.le.s32.totalorder 1, %s10
    %p174 = scmp.lt.s32.totalorder %s10, 3
    %p175 = pnand %p173, %p174
    %p176 = pneg %p175
    // Predicated region
    $region9: #{_lambda_.10} parent=5 // pred_check
      _
    $region10: #{_lambda_.10} parent=5 // pred_check_branch
      %178 = sbr.rel (%p175) target = $region12
    $region11: #{_lambda_.10} parent=5 // pred_region
      %s179 = ssub.s32 %s10, 1
      // Predicated region
      $region13: #{_lambda_.10} parent=11 // pred_check
        %p180 = pneg %p85
      $region14: #{_lambda_.10} parent=11 // pred_check_branch
        %182 = sbr.rel (%p180) target = $region16
      $region15: #{_lambda_.10} parent=11 // pred_region
        %s183 = smul.u32 4, %s22
        %p184 = scmp.lt.s32.totalorder %s183, 3
        %s185 = scalar_select %p184, %s183, 3
        %p186 = scmp.lt.s32.totalorder %s20, 0
        %s187 = scalar_select %p186, %s20, 0
        %s188 = sadd.s32 %s187, %s185
        %s189 = smul.addr %s188, 4
        %s190 = scalar_lea.vmem %s1, %s189
        %s191 = smul.u32 4, %s22
      $region16: #{_lambda_.10} parent=11 // pred_fallthru
        _
      // Predicated region
      $region17: #{_lambda_.10} parent=11 // pred_check
        %p192 = pneg %p111
      $region18: #{_lambda_.10} parent=11 // pred_check_branch
        %194 = sbr.rel (%p192) target = $region20
      $region19: #{_lambda_.10} parent=11 // pred_region
        %p195 = scmp.lt.s32.totalorder %s20, 0
        %s196 = scalar_select %p195, %s20, 0
        %s197 = scalar_lea.vmem %s2, %s196
      $region20: #{_lambda_.10} parent=11 // pred_fallthru
        _
      // Predicated region
      $region21: #{_lambda_.10} parent=11 // pred_check
        %p198 = pneg %p137
      $region22: #{_lambda_.10} parent=11 // pred_check_branch
        %200 = sbr.rel (%p198) target = $region24
      $region23: #{_lambda_.10} parent=11 // pred_region
        %p201 = scmp.lt.s32.totalorder %s20, 0
        %s202 = scalar_select %p201, %s20, 0
        %s203 = scalar_lea.vmem %s3, %s202
      $region24: #{_lambda_.10} parent=11 // pred_fallthru
        _
    $region12: #{_lambda_.10} parent=5 // pred_fallthru
      _
    %p204 = scmp.lt.s32.totalorder %s10, 2
    // Predicated region
    $region25: #{_lambda_.10} parent=5 // pred_check
      %p205 = pneg %p204
    $region26: #{_lambda_.10} parent=5 // pred_check_branch
      %207 = sbr.rel (%p205) target = $region28
    $region27: #{_lambda_.10} parent=5 // pred_region
      // Predicated region
      $region29: #{_lambda_.10} parent=27 // pred_check
        %p208 = pneg %p51
      $region30: #{_lambda_.10} parent=27 // pred_check_branch
        %210 = sbr.rel (%p208) target = $region32
      $region31: #{_lambda_.10} parent=27 // pred_region
        %s211 = smul.u32 8, %s18
        %p212 = scmp.lt.s32.totalorder %s211, 15
        %s213 = scalar_select %p212, %s211, 15
        %p214 = scmp.lt.s32.totalorder %s19, 0
        %s215 = scalar_select %p214, %s19, 0
        %s216 = sadd.s32 %s215, %s213
        %s217 = smul.addr %s216, 4
        %s218 = scalar_lea.vmem %s0, %s217
        %s219 = smul.u32 8, %s18
      $region32: #{_lambda_.10} parent=27 // pred_fallthru
        _
    $region28: #{_lambda_.10} parent=5 // pred_fallthru
      _
    %p220 = scmp.le.s32.totalorder 1, %s10
    %p221 = scmp.lt.s32.totalorder %s10, 3
    %p222 = pnand %p220, %p221
    %p223 = pneg %p222
    // Predicated region
    $region33: #{_lambda_.10} parent=5 // pred_check
      _
    $region34: #{_lambda_.10} parent=5 // pred_check_branch
      %225 = sbr.rel (%p222) target = $region36
    $region35: #{_lambda_.10} parent=5 // pred_region
      %s226 = ssub.s32 %s10, 1
      %s227 = smul.u32 8, %s21
      %p228 = scmp.lt.s32.totalorder %s227, 15
      %s229 = scalar_select %p228, %s227, 15
      %p230 = scmp.lt.s32.totalorder %s22, 0
      %s231 = scalar_select %p230, %s22, 0
      %s232 = sadd.s32 %s231, %s229
      %s233 = smul.addr %s232, 4
      %s234 = scalar_lea.vmem %s0, %s233
      %p235 = pneg %p57
      %p236 = pneg %p54
      %s237 = smul.u32 4, %s22
      %p238 = scmp.lt.s32.totalorder %s237, 3
      %s239 = scalar_select %p238, %s237, 3
      %p240 = scmp.lt.s32.totalorder %s20, 0
      %s241 = scalar_select %p240, %s20, 0
      %s242 = sadd.s32 %s241, %s239
      %s243 = smul.addr %s242, 4
      %s244 = scalar_lea.vmem %s1, %s243
      %p245 = pneg %p85
      %p246 = pneg %p82
      %p247 = scmp.lt.s32.totalorder %s20, 0
      %s248 = scalar_select %p247, %s20, 0
      %s249 = scalar_lea.vmem %s2, %s248
      %p250 = pneg %p111
      %p251 = pneg %p108
      %p252 = scmp.lt.s32.totalorder %s20, 0
      %s253 = scalar_select %p252, %s20, 0
      %s254 = scalar_lea.vmem %s3, %s253
      %p255 = pneg %p137
      %p256 = pneg %p134
      %p257 = pneg %p165
      %p258 = pneg %p162
      %s259 = smul.u32 8, %s21
      %p260 = scmp.lt.s32.totalorder %s259, 15
      %s261 = scalar_select %p260, %s259, 15
      %p262 = scmp.lt.s32.totalorder %s20, 0
      %s263 = scalar_select %p262, %s20, 0
      %s264 = sadd.s32 %s263, %s261
      %s265 = smul.addr %s264, 4
      %s266 = scalar_lea.vmem %s4, %s265
      %s267 = smul.u32 8, %s21
      %p268 = scmp.lt.s32.totalorder %s267, 15
      %s269 = scalar_select %p268, %s267, 15
      %p270 = scmp.lt.s32.totalorder %s22, 0
      %s271 = scalar_select %p270, %s22, 0
      %s272 = sadd.s32 %s271, %s269
      %s273 = smul.addr %s272, 4
      %s274 = scalar_lea.vmem %s0, %s273
      %s275 = smul.u32 8, %s21
      %s276 = smul.u32 4, %s22
      %p277 = scmp.lt.s32.totalorder %s276, 3
      %s278 = scalar_select %p277, %s276, 3
      %p279 = scmp.lt.s32.totalorder %s20, 0
      %s280 = scalar_select %p279, %s20, 0
      %s281 = sadd.s32 %s280, %s278
      %s282 = smul.addr %s281, 4
      %s283 = scalar_lea.vmem %s1, %s282
      %s284 = smul.u32 4, %s22
      %p285 = scmp.lt.s32.totalorder %s20, 0
      %s286 = scalar_select %p285, %s20, 0
      %s287 = scalar_lea.vmem %s2, %s286
      %p288 = scmp.lt.s32.totalorder %s20, 0
      %s289 = scalar_select %p288, %s20, 0
      %s290 = scalar_lea.vmem %s3, %s289
      %s291 = smul.u32 8, %s21
      %p292 = scmp.lt.s32.totalorder %s291, 15
      %s293 = scalar_select %p292, %s291, 15
      %p294 = scmp.lt.s32.totalorder %s20, 0
      %s295 = scalar_select %p294, %s20, 0
      %s296 = sadd.s32 %s295, %s293
      %s297 = smul.addr %s296, 4
      %s298 = scalar_lea.vmem %s4, %s297
      %s299 = smul.u32 8, %s21
      %p301 = scmp.eq.s32.totalorder %s22, 0
      // Predicated region
      $region37: #{_lambda_.10} parent=35 // pred_check
        %p302 = pneg %p301
      $region38: #{_lambda_.10} parent=35 // pred_check_branch
        %304 = sbr.rel (%p302) target = $region40
      $region39: #{_lambda_.10} parent=35 // pred_region
        %305 = vst [vmem:[#allocation2] sm:$0xff] 0.0
        %306 = vst [vmem:[#allocation2 + $0x8] sm:$0xff] 0.0
        %307 = vst [vmem:[#allocation2 + $0x10] sm:$0xff] 0.0
        %308 = vst [vmem:[#allocation2 + $0x18] sm:$0xff] 0.0
        %309 = vst [vmem:[#allocation2 + $0x20] sm:$0xff] 0.0
        %310 = vst [vmem:[#allocation2 + $0x28] sm:$0xff] 0.0
        %311 = vst [vmem:[#allocation2 + $0x30] sm:$0xff] 0.0
        %312 = vst [vmem:[#allocation2 + $0x38] sm:$0xff] 0.0
      $region40: #{_lambda_.10} parent=35 // pred_fallthru
        _
      %v313 = vld [vmem:[#allocation2] sm:$0xff]
      %v314 = vld [vmem:[#allocation2 + $0x8] sm:$0xff]
      %v315 = vld [vmem:[#allocation2 + $0x10] sm:$0xff]
      %v316 = vld [vmem:[#allocation2 + $0x18] sm:$0xff]
      %v317 = vld [vmem:[#allocation2 + $0x20] sm:$0xff]
      %v318 = vld [vmem:[#allocation2 + $0x28] sm:$0xff]
      %v319 = vld [vmem:[#allocation2 + $0x30] sm:$0xff]
      %v320 = vld [vmem:[#allocation2 + $0x38] sm:$0xff]
      %v321 = vld [vmem:[%s274] sm:$0xf]
      %v322 = vld [vmem:[%s274 + $0x4] sm:$0xf]
      %v323 = vld [vmem:[%s274 + $0x8] sm:$0xf]
      %v324 = vld [vmem:[%s274 + $0xc] sm:$0xf]
      %v325 = vld [vmem:[%s274 + $0x10] sm:$0xf]
      %v326 = vld [vmem:[%s274 + $0x14] sm:$0xf]
      %v327 = vld [vmem:[%s274 + $0x18] sm:$0xf]
      %v328 = vld [vmem:[%s274 + $0x1c] sm:$0xf]
      %v329 = vld [vmem:[%s283] sm:$0xf]
      %v330 = vld [vmem:[%s283 + $0x4] sm:$0xf]
      %v331 = vld [vmem:[%s283 + $0x8] sm:$0xf]
      %v332 = vld [vmem:[%s283 + $0xc] sm:$0x3]
      %v341 = vunpack.c.l.b16 %v321
      %v342 = vunpack.c.l.b16 %v322
      %v343 = vunpack.c.l.b16 %v323
      %v344 = vunpack.c.l.b16 %v324
      %v345 = vunpack.c.l.b16 %v325
      %v346 = vunpack.c.l.b16 %v326
      %v347 = vunpack.c.l.b16 %v327
      %v348 = vunpack.c.l.b16 %v328
      %v349 = vpack.c.b16 %v342, %v341
      %v350 = vpack.c.b16 %v344, %v343
      %v351 = vpack.c.b16 %v346, %v345
      %v352 = vpack.c.b16 %v348, %v347
      %v357 = vunpack.c.l.b16 %v329
      %v358 = vunpack.c.l.b16 %v330
      %v359 = vunpack.c.l.b16 %v331
      %v360 = vunpack.c.l.b16 %v332
      %v361 = vpack.c.b16 %v358, %v357
      %v362 = vpack.c.b16 %v360, %v359
      %vm364 = vcmask 220160
      %v366 = vsel %vm364, %v349, 0
      %v369 = vsel %vm364, %v350, 0
      %v372 = vsel %vm364, %v351, 0
      %v375 = vsel %vm364, %v352, 0
      %vm377 = vcmask 1044480
      %vm378 = vcmask 1045504
      %v379 = vsel %vm377, 4294967295, 65535
      %v380 = vsel %vm378, %v379, 0
      %v382 = vand.u32 %v362, %v380
      %384 = vmatprep.subr.bf16.mxu0 0
      %385 = vmatpush1.bf16.msra.mxu0 %v361
      %386 = vmatprep.subr.bf16.mxu0 0
      %387 = vmatpush1.bf16.msra.mxu0 %v382
      %388 = vmatprep.subr.bf16.mxu0 0
      %389 = vmatpush1.bf16.msra.mxu0 0
      %390 = vmatprep.subr.bf16.mxu0 0
      %391 = vmatpush1.bf16.msra.mxu0 0
      %392 = vmatprep.subr.bf16.mxu0 0
      %393 = vmatpush1.bf16.msra.mxu0 0
      %394 = vmatprep.subr.bf16.mxu0 0
      %395 = vmatpush1.bf16.msra.mxu0 0
      %396 = vmatprep.subr.bf16.mxu0 0
      %397 = vmatpush1.bf16.msra.mxu0 0
      %398 = vmatprep.subr.bf16.mxu0 0
      %399 = vmatpush1.bf16.msra.mxu0 0
      %400 = vmatprep.subr.bf16.mxu0 0
      %401 = vmatpush1.bf16.msra.mxu0 0
      %402 = vmatprep.subr.bf16.mxu0 0
      %403 = vmatpush1.bf16.msra.mxu0 0
      %404 = vmatprep.subr.bf16.mxu0 0
      %405 = vmatpush1.bf16.msra.mxu0 0
      %406 = vmatprep.subr.bf16.mxu0 0
      %407 = vmatpush1.bf16.msra.mxu0 0
      %408 = vmatprep.subr.bf16.mxu0 0
      %409 = vmatpush1.bf16.msra.mxu0 0
      %410 = vmatprep.subr.bf16.mxu0 0
      %411 = vmatpush1.bf16.msra.mxu0 0
      %412 = vmatprep.subr.bf16.mxu0 0
      %413 = vmatpush1.bf16.msra.mxu0 0
      %414 = vmatprep.subr.bf16.mxu0 0
      %415 = vmatpush1.bf16.msra.mxu0 0
      %416 = vmatprep.mubr.bf16.mxu0 0
      %417 = vmatmul.mubr.bf16.gmra.mrb[0].mxu0 %v366
      %v418 = vpop.f32.mrb[0].mxu0
      %v419 = vadd.f32 0.0, %v418
      %v420 = vpop.f32.mrb[0].mxu0
      %v421 = vpop.f32.mrb[0].mxu0
      %v422 = vadd.f32 0.0, %v421
      %v423 = vpop.f32.mrb[0].mxu0
      %424 = vmatprep.mubr.bf16.mxu0 0
      %425 = vmatmul.mubr.bf16.gmra.mrb[0].mxu0 %v369
      %v426 = vpop.f32.mrb[0].mxu0
      %v427 = vadd.f32 0.0, %v426
      %v428 = vpop.f32.mrb[0].mxu0
      %v429 = vpop.f32.mrb[0].mxu0
      %v430 = vadd.f32 0.0, %v429
      %v431 = vpop.f32.mrb[0].mxu0
      %432 = vmatprep.mubr.bf16.mxu0 0
      %433 = vmatmul.mubr.bf16.gmra.mrb[0].mxu0 %v372
      %v434 = vpop.f32.mrb[0].mxu0
      %v435 = vadd.f32 0.0, %v434
      %v436 = vpop.f32.mrb[0].mxu0
      %v437 = vpop.f32.mrb[0].mxu0
      %v438 = vadd.f32 0.0, %v437
      %v439 = vpop.f32.mrb[0].mxu0
      %440 = vmatprep.mubr.bf16.mxu0 0
      %441 = vmatmul.mubr.bf16.gmra.mrb[0].mxu0 %v375
      %v442 = vpop.f32.mrb[0].mxu0
      %v443 = vadd.f32 0.0, %v442
      %v444 = vpop.f32.mrb[0].mxu0
      %v445 = vpop.f32.mrb[0].mxu0
      %v446 = vadd.f32 0.0, %v445
      %v447 = vpop.f32.mrb[0].mxu0
      %448 = vdwg.mxu0
      %v449 = vadd.f32 %v313, %v419
      %v450 = vadd.f32 %v314, %v422
      %v451 = vadd.f32 %v315, %v427
      %v452 = vadd.f32 %v316, %v430
      %v453 = vadd.f32 %v317, %v435
      %v454 = vadd.f32 %v318, %v438
      %v455 = vadd.f32 %v319, %v443
      %v456 = vadd.f32 %v320, %v446
      %457 = vst [vmem:[#allocation2] sm:$0xff] %v449
      %458 = vst [vmem:[#allocation2 + $0x8] sm:$0xff] %v450
      %459 = vst [vmem:[#allocation2 + $0x10] sm:$0xff] %v451
      %460 = vst [vmem:[#allocation2 + $0x18] sm:$0xff] %v452
      %461 = vst [vmem:[#allocation2 + $0x20] sm:$0xff] %v453
      %462 = vst [vmem:[#allocation2 + $0x28] sm:$0xff] %v454
      %463 = vst [vmem:[#allocation2 + $0x30] sm:$0xff] %v455
      %464 = vst [vmem:[#allocation2 + $0x38] sm:$0xff] %v456
      // Predicated region
      $region41: #{_lambda_.10} parent=35 // pred_check
        %p465 = pneg %p301
      $region42: #{_lambda_.10} parent=35 // pred_check_branch
        %467 = sbr.rel (%p465) target = $region44
      $region43: #{_lambda_.10} parent=35 // pred_region
        %v468 = vld [vmem:[#allocation2] sm:$0xff]
        %v469 = vld [vmem:[#allocation2 + $0x8] sm:$0xff]
        %v470 = vld [vmem:[#allocation2 + $0x10] sm:$0xff]
        %v471 = vld [vmem:[#allocation2 + $0x18] sm:$0xff]
        %v472 = vld [vmem:[#allocation2 + $0x20] sm:$0xff]
        %v473 = vld [vmem:[#allocation2 + $0x28] sm:$0xff]
        %v474 = vld [vmem:[#allocation2 + $0x30] sm:$0xff]
        %v475 = vld [vmem:[#allocation2 + $0x38] sm:$0xff]
        %v476 = vld [vmem:[%s287] sm:$0x1]
        %v478 = vlaneseq
        %v479 = vshrl.u32 %v478, 7
        %v480 = vsub.s32 0, %v479
        %v481 = vrot.slane %v476, %v480
        %v483 = vmul.f32 %v468, %v481
        %v484 = vmul.f32 %v469, %v481
        %v485 = vmul.f32 %v470, %v481
        %v486 = vmul.f32 %v471, %v481
        %v487 = vmul.f32 %v472, %v481
        %v488 = vmul.f32 %v473, %v481
        %v489 = vmul.f32 %v474, %v481
        %v490 = vmul.f32 %v475, %v481
        %v491 = vld [vmem:[%s290] sm:$0x1]
        %v493 = vlaneseq
        %v494 = vshrl.u32 %v493, 7
        %v495 = vsub.s32 0, %v494
        %v496 = vrot.slane %v491, %v495
        %v498 = vadd.f32 %v483, %v496
        %v499 = vadd.f32 %v484, %v496
        %v500 = vadd.f32 %v485, %v496
        %v501 = vadd.f32 %v486, %v496
        %v502 = vadd.f32 %v487, %v496
        %v503 = vadd.f32 %v488, %v496
        %v504 = vadd.f32 %v489, %v496
        %v505 = vadd.f32 %v490, %v496
        %v506 = vmax.f32 %v498, 0.0
        %v507 = vmax.f32 %v499, 0.0
        %v508 = vmax.f32 %v500, 0.0
        %v509 = vmax.f32 %v501, 0.0
        %v510 = vmax.f32 %v502, 0.0
        %v511 = vmax.f32 %v503, 0.0
        %v512 = vmax.f32 %v504, 0.0
        %v513 = vmax.f32 %v505, 0.0
        %v514 = vpack.c.bf16 %v507, %v506
        %v515 = vpack.c.bf16 %v509, %v508
        %v516 = vpack.c.bf16 %v511, %v510
        %v517 = vpack.c.bf16 %v513, %v512
        %v522 = vunpack.c.l.b16 %v514
        %v523 = vunpack.c.h.b16 %v514
        %v524 = vunpack.c.l.b16 %v515
        %v525 = vunpack.c.h.b16 %v515
        %v526 = vunpack.c.l.b16 %v516
        %v527 = vunpack.c.h.b16 %v516
        %v528 = vunpack.c.l.b16 %v517
        %v529 = vunpack.c.h.b16 %v517
        %v530 = vpack.c.b16 %v522, %v522
        %v531 = vpack.c.b16 %v523, %v523
        %v532 = vpack.c.b16 %v524, %v524
        %v533 = vpack.c.b16 %v525, %v525
        %v534 = vpack.c.b16 %v526, %v526
        %v535 = vpack.c.b16 %v527, %v527
        %v536 = vpack.c.b16 %v528, %v528
        %v537 = vpack.c.b16 %v529, %v529
        %546 = vst [vmem:[%s298] sm:$0xf] %v530
        %547 = vst [vmem:[%s298 + $0x4] sm:$0xf] %v531
        %548 = vst [vmem:[%s298 + $0x8] sm:$0xf] %v532
        %549 = vst [vmem:[%s298 + $0xc] sm:$0xf] %v533
        %550 = vst [vmem:[%s298 + $0x10] sm:$0xf] %v534
        %551 = vst [vmem:[%s298 + $0x14] sm:$0xf] %v535
        %552 = vst [vmem:[%s298 + $0x18] sm:$0xf] %v536
        %553 = vst [vmem:[%s298 + $0x1c] sm:$0xf] %v537
      $region44: #{_lambda_.10} parent=35 // pred_fallthru
        _
      %s554 = smul.u32 8, %s21
      %p555 = scmp.lt.s32.totalorder %s554, 15
      %s556 = scalar_select %p555, %s554, 15
      %p557 = scmp.lt.s32.totalorder %s20, 0
      %s558 = scalar_select %p557, %s20, 0
      %s559 = sadd.s32 %s558, %s556
      %s560 = smul.addr %s559, 4
      %s561 = scalar_lea.vmem %s4, %s560
      // Predicated region
      $region45: #{_lambda_.10} parent=35 // pred_check
        %p562 = pneg %p162
      $region46: #{_lambda_.10} parent=35 // pred_check_branch
        %564 = sbr.rel (%p562) target = $region48
      $region47: #{_lambda_.10} parent=35 // pred_region
        %s565 = smul.u32 8, %s21
      $region48: #{_lambda_.10} parent=35 // pred_fallthru
        _
    $region36: #{_lambda_.10} parent=5 // pred_fallthru
      _
    %p566 = scmp.le.s32.totalorder 2, %s10
    // Predicated region
    $region49: #{_lambda_.10} parent=5 // pred_check
      %p567 = pneg %p566
    $region50: #{_lambda_.10} parent=5 // pred_check_branch
      %569 = sbr.rel (%p567) target = $region52
    $region51: #{_lambda_.10} parent=5 // pred_region
      %s570 = ssub.s32 %s10, 2
      // Predicated region
      $region53: #{_lambda_.10} parent=51 // pred_check
        %p571 = pneg %p168
      $region54: #{_lambda_.10} parent=51 // pred_check_branch
        %573 = sbr.rel (%p571) target = $region56
      $region55: #{_lambda_.10} parent=51 // pred_region
        %s574 = smul.u32 8, %s24
        %p575 = scmp.lt.s32.totalorder %s574, 15
        %s576 = scalar_select %p575, %s574, 15
        %p577 = scmp.lt.s32.totalorder %s23, 0
        %s578 = scalar_select %p577, %s23, 0
        %s579 = sadd.s32 %s578, %s576
        %s580 = smul.addr %s579, 4
        %s581 = scalar_lea.vmem %s4, %s580
      $region56: #{_lambda_.10} parent=51 // pred_fallthru
        _
    $region52: #{_lambda_.10} parent=5 // pred_fallthru
      _
  $region6: #{_lambda_.10} parent=0 // loop_footer
    %s14 = sadd.s32 1, %s10
  $region7: #{_lambda_.10} parent=0 // loop_footer_branch
    %9 = sbr.rel target = $region3
  $region8: #{_lambda_.10} parent=0 // loop_exit
    _

// kernel: _lambda_.11
$region0: #{_lambda_.11}
  #allocation0 [shape = 'u32[]', space=smem, size = 0x4, offset = 0x4, fixed_abs, tag = 'smem constant byte address 0x4 - core index']
  #allocation1 [shape = 'u32[144,128]{1,0:T(1,128)}', space=vmem, size = 0x12000, scoped, tag = 'internal scratch']
  #allocation2 [shape = 'f32[64,128]{1,0:T(8,128)}', space=vmem, size = 0x8000, scoped, tag = 'scratch operand']
  %s0 = inlined_call_operand.vmem [shape: bf16[128,144], index: 0, kind: input, shape index: {}]
  %s1 = inlined_call_operand.vmem [shape: bf16[144,128], index: 1, kind: input, shape index: {}]
  %s2 = inlined_call_operand.vmem [shape: f32[1,128], index: 2, kind: input, shape index: {}]
  %s3 = inlined_call_operand.vmem [shape: f32[1,128], index: 3, kind: input, shape index: {}]
  %s4 = inlined_call_operand.vmem [shape: bf16[128,128], index: 4, kind: output, shape index: {}]
  %s5 = sld [smem:[#allocation0]]
  $region57: #{_lambda_.11} parent=0
    _
  %s7 = ssub.s32 1, %s5
  %s8 = scalar_select 0, %s7, %s5
  loop: start=0, step=1, limit=4
  $region2: #{_lambda_.11} parent=0 // loop_pre_header
    _
  $region3: #{_lambda_.11} parent=0 // loop_header
    %s10 = sphi 0, %s14
    %p11 = scmp.ge.s32.totalorder %s10, 4
    %s17 = sphi 0, %s36
    %s18 = sphi 0, %s32
    %s19 = sphi 0, %s28
    %s20 = sphi 0, %s17
    %s21 = sphi 0, %s18
    %s22 = sphi 0, %s19
    %s23 = sphi 0, %s20
    %s24 = sphi 0, %s21
    %s25 = sphi 0, %s22
    %s41 = sphi 0, %s43
    %s44 = sphi 0, %s41
    %s45 = sphi 0, %s44
    %s61 = sphi 0, %s45
    %s69 = sphi 0, %s71
    %s72 = sphi 0, %s69
    %s73 = sphi 0, %s72
    %s89 = sphi 0, %s73
    %s95 = sphi 0, %s97
    %s98 = sphi 0, %s95
    %s99 = sphi 0, %s98
    %s115 = sphi 0, %s99
    %s121 = sphi 0, %s123
    %s124 = sphi 0, %s121
    %s125 = sphi 0, %s124
    %s141 = sphi 0, %s125
    %s149 = sphi 0, %s151
    %s152 = sphi 0, %s149
    %s153 = sphi 0, %s152
    %s169 = sphi 0, %s153
  $region4: #{_lambda_.11} parent=0 // loop_header_branch
    %13 = sbr.rel (%p11) target = $region8
  $region5: #{_lambda_.11} parent=0 // loop_body
    %s15 = ssub.s32 %s10, 1
    %s16 = ssub.s32 %s10, 2
    %s26 = sadd.s32 1, %s19
    %p27 = scmp.ge.s32.totalorder %s26, 1
    %s28 = scalar_select %p27, 0, %s26
    %s29 = sadd.s32 1, %s18
    %s30 = scalar_select %p27, %s29, %s18
    %p31 = scmp.ge.s32.totalorder %s30, 2
    %s32 = scalar_select %p31, 0, %s30
    %s33 = sadd.s32 1, %s17
    %s34 = scalar_select %p31, %s33, %s17
    %p35 = scmp.ge.s32.totalorder %s34, 1
    %s36 = scalar_select %p35, 0, %s34
    %s37 = ssub.s32 %s18, %s32
    %s38 = ssub.s32 %s19, %s28
    %s39 = sor.u32 %s37, %s38
    %p40 = scmp.eq.s32.totalorder %s39, 0
    %s42 = sadd.s32 %s41, 1
    %s43 = scalar_select %p40, %s41, %s42
    %p46 = pneg %p40
    %p47 = scmp.eq.s32.totalorder %s10, 1
    %p48 = por %p46, %p47
    %p49 = scmp.ne.s32.totalorder %s41, %s44
    %p50 = scmp.eq.s32.totalorder %s10, 0
    %p51 = por %p49, %p50
    %p52 = scmp.ne.s32.totalorder %s41, %s44
    %p53 = scmp.eq.s32.totalorder %s15, 1
    %p54 = por %p52, %p53
    %p55 = scmp.ne.s32.totalorder %s44, %s45
    %p56 = scmp.eq.s32.totalorder %s15, 0
    %p57 = por %p55, %p56
    %p58 = scmp.ne.s32.totalorder %s44, %s45
    %p59 = scmp.eq.s32.totalorder %s16, 1
    %p60 = por %p58, %p59
    %p62 = scmp.ne.s32.totalorder %s45, %s61
    %p63 = scmp.eq.s32.totalorder %s16, 0
    %p64 = por %p62, %p63
    %s65 = ssub.s32 %s19, %s28
    %s66 = ssub.s32 %s17, %s36
    %s67 = sor.u32 %s65, %s66
    %p68 = scmp.eq.s32.totalorder %s67, 0
    %s70 = sadd.s32 %s69, 1
    %s71 = scalar_select %p68, %s69, %s70
    %p74 = pneg %p68
    %p75 = scmp.eq.s32.totalorder %s10, 1
    %p76 = por %p74, %p75
    %p77 = scmp.ne.s32.totalorder %s69, %s72
    %p78 = scmp.eq.s32.totalorder %s10, 0
    %p79 = por %p77, %p78
    %p80 = scmp.ne.s32.totalorder %s69, %s72
    %p81 = scmp.eq.s32.totalorder %s15, 1
    %p82 = por %p80, %p81
    %p83 = scmp.ne.s32.totalorder %s72, %s73
    %p84 = scmp.eq.s32.totalorder %s15, 0
    %p85 = por %p83, %p84
    %p86 = scmp.ne.s32.totalorder %s72, %s73
    %p87 = scmp.eq.s32.totalorder %s16, 1
    %p88 = por %p86, %p87
    %p90 = scmp.ne.s32.totalorder %s73, %s89
    %p91 = scmp.eq.s32.totalorder %s16, 0
    %p92 = por %p90, %p91
    %s93 = ssub.s32 %s17, %s36
    %p94 = scmp.eq.s32.totalorder %s93, 0
    %s96 = sadd.s32 %s95, 1
    %s97 = scalar_select %p94, %s95, %s96
    %p100 = pneg %p94
    %p101 = scmp.eq.s32.totalorder %s10, 1
    %p102 = por %p100, %p101
    %p103 = scmp.ne.s32.totalorder %s95, %s98
    %p104 = scmp.eq.s32.totalorder %s10, 0
    %p105 = por %p103, %p104
    %p106 = scmp.ne.s32.totalorder %s95, %s98
    %p107 = scmp.eq.s32.totalorder %s15, 1
    %p108 = por %p106, %p107
    %p109 = scmp.ne.s32.totalorder %s98, %s99
    %p110 = scmp.eq.s32.totalorder %s15, 0
    %p111 = por %p109, %p110
    %p112 = scmp.ne.s32.totalorder %s98, %s99
    %p113 = scmp.eq.s32.totalorder %s16, 1
    %p114 = por %p112, %p113
    %p116 = scmp.ne.s32.totalorder %s99, %s115
    %p117 = scmp.eq.s32.totalorder %s16, 0
    %p118 = por %p116, %p117
    %s119 = ssub.s32 %s17, %s36
    %p120 = scmp.eq.s32.totalorder %s119, 0
    %s122 = sadd.s32 %s121, 1
    %s123 = scalar_select %p120, %s121, %s122
    %p126 = pneg %p120
    %p127 = scmp.eq.s32.totalorder %s10, 1
    %p128 = por %p126, %p127
    %p129 = scmp.ne.s32.totalorder %s121, %s124
    %p130 = scmp.eq.s32.totalorder %s10, 0
    %p131 = por %p129, %p130
    %p132 = scmp.ne.s32.totalorder %s121, %s124
    %p133 = scmp.eq.s32.totalorder %s15, 1
    %p134 = por %p132, %p133
    %p135 = scmp.ne.s32.totalorder %s124, %s125
    %p136 = scmp.eq.s32.totalorder %s15, 0
    %p137 = por %p135, %p136
    %p138 = scmp.ne.s32.totalorder %s124, %s125
    %p139 = scmp.eq.s32.totalorder %s16, 1
    %p140 = por %p138, %p139
    %p142 = scmp.ne.s32.totalorder %s125, %s141
    %p143 = scmp.eq.s32.totalorder %s16, 0
    %p144 = por %p142, %p143
    %s145 = ssub.s32 %s18, %s32
    %s146 = ssub.s32 %s17, %s36
    %s147 = sor.u32 %s145, %s146
    %p148 = scmp.eq.s32.totalorder %s147, 0
    %s150 = sadd.s32 %s149, 1
    %s151 = scalar_select %p148, %s149, %s150
    %p154 = pneg %p148
    %p155 = scmp.eq.s32.totalorder %s10, 1
    %p156 = por %p154, %p155
    %p157 = scmp.ne.s32.totalorder %s149, %s152
    %p158 = scmp.eq.s32.totalorder %s10, 0
    %p159 = por %p157, %p158
    %p160 = scmp.ne.s32.totalorder %s149, %s152
    %p161 = scmp.eq.s32.totalorder %s15, 1
    %p162 = por %p160, %p161
    %p163 = scmp.ne.s32.totalorder %s152, %s153
    %p164 = scmp.eq.s32.totalorder %s15, 0
    %p165 = por %p163, %p164
    %p166 = scmp.ne.s32.totalorder %s152, %s153
    %p167 = scmp.eq.s32.totalorder %s16, 1
    %p168 = por %p166, %p167
    %p170 = scmp.ne.s32.totalorder %s153, %s169
    %p171 = scmp.eq.s32.totalorder %s16, 0
    %p172 = por %p170, %p171
    %p173 = scmp.le.s32.totalorder 1, %s10
    %p174 = scmp.lt.s32.totalorder %s10, 3
    %p175 = pnand %p173, %p174
    %p176 = pneg %p175
    // Predicated region
    $region9: #{_lambda_.11} parent=5 // pred_check
      _
    $region10: #{_lambda_.11} parent=5 // pred_check_branch
      %178 = sbr.rel (%p175) target = $region12
    $region11: #{_lambda_.11} parent=5 // pred_region
      %s179 = ssub.s32 %s10, 1
      // Predicated region
      $region13: #{_lambda_.11} parent=11 // pred_check
        %p180 = pneg %p85
      $region14: #{_lambda_.11} parent=11 // pred_check_branch
        %182 = sbr.rel (%p180) target = $region16
      $region15: #{_lambda_.11} parent=11 // pred_region
        %s183 = smul.u32 18, %s22
        %p184 = scmp.lt.s32.totalorder %s183, 17
        %s185 = scalar_select %p184, %s183, 17
        %p186 = scmp.lt.s32.totalorder %s20, 0
        %s187 = scalar_select %p186, %s20, 0
        %s188 = sadd.s32 %s187, %s185
        %s189 = smul.addr %s188, 4
        %s190 = scalar_lea.vmem %s1, %s189
        %s191 = smul.u32 18, %s22
      $region16: #{_lambda_.11} parent=11 // pred_fallthru
        _
      // Predicated region
      $region17: #{_lambda_.11} parent=11 // pred_check
        %p192 = pneg %p111
      $region18: #{_lambda_.11} parent=11 // pred_check_branch
        %194 = sbr.rel (%p192) target = $region20
      $region19: #{_lambda_.11} parent=11 // pred_region
        %p195 = scmp.lt.s32.totalorder %s20, 0
        %s196 = scalar_select %p195, %s20, 0
        %s197 = scalar_lea.vmem %s2, %s196
      $region20: #{_lambda_.11} parent=11 // pred_fallthru
        _
      // Predicated region
      $region21: #{_lambda_.11} parent=11 // pred_check
        %p198 = pneg %p137
      $region22: #{_lambda_.11} parent=11 // pred_check_branch
        %200 = sbr.rel (%p198) target = $region24
      $region23: #{_lambda_.11} parent=11 // pred_region
        %p201 = scmp.lt.s32.totalorder %s20, 0
        %s202 = scalar_select %p201, %s20, 0
        %s203 = scalar_lea.vmem %s3, %s202
      $region24: #{_lambda_.11} parent=11 // pred_fallthru
        _
    $region12: #{_lambda_.11} parent=5 // pred_fallthru
      _
    %p204 = scmp.lt.s32.totalorder %s10, 2
    // Predicated region
    $region25: #{_lambda_.11} parent=5 // pred_check
      %p205 = pneg %p204
    $region26: #{_lambda_.11} parent=5 // pred_check_branch
      %207 = sbr.rel (%p205) target = $region28
    $region27: #{_lambda_.11} parent=5 // pred_region
      // Predicated region
      $region29: #{_lambda_.11} parent=27 // pred_check
        %p208 = pneg %p51
      $region30: #{_lambda_.11} parent=27 // pred_check_branch
        %210 = sbr.rel (%p208) target = $region32
      $region31: #{_lambda_.11} parent=27 // pred_region
        %s211 = smul.u32 8, %s18
        %s212 = smul.u32 2, %s19
        %p213 = scmp.lt.s32.totalorder %s211, 15
        %s214 = scalar_select %p213, %s211, 15
        %p215 = scmp.lt.s32.totalorder %s212, 1
        %s216 = scalar_select %p215, %s212, 1
        %s217 = smul.addr %s214, 2
        %s218 = sadd.s32 %s216, %s217
        %s219 = smul.addr %s218, 4
        %s220 = scalar_lea.vmem %s0, %s219
        %s221 = smul.u32 8, %s18
        %s222 = smul.u32 2, %s19
      $region32: #{_lambda_.11} parent=27 // pred_fallthru
        _
    $region28: #{_lambda_.11} parent=5 // pred_fallthru
      _
    %p223 = scmp.le.s32.totalorder 1, %s10
    %p224 = scmp.lt.s32.totalorder %s10, 3
    %p225 = pnand %p223, %p224
    %p226 = pneg %p225
    // Predicated region
    $region33: #{_lambda_.11} parent=5 // pred_check
      _
    $region34: #{_lambda_.11} parent=5 // pred_check_branch
      %228 = sbr.rel (%p225) target = $region36
    $region35: #{_lambda_.11} parent=5 // pred_region
      %s229 = ssub.s32 %s10, 1
      %s230 = smul.u32 8, %s21
      %s231 = smul.u32 2, %s22
      %p232 = scmp.lt.s32.totalorder %s230, 15
      %s233 = scalar_select %p232, %s230, 15
      %p234 = scmp.lt.s32.totalorder %s231, 1
      %s235 = scalar_select %p234, %s231, 1
      %s236 = smul.addr %s233, 2
      %s237 = sadd.s32 %s235, %s236
      %s238 = smul.addr %s237, 4
      %s239 = scalar_lea.vmem %s0, %s238
      %p240 = pneg %p57
      %p241 = pneg %p54
      %s242 = smul.u32 18, %s22
      %p243 = scmp.lt.s32.totalorder %s242, 17
      %s244 = scalar_select %p243, %s242, 17
      %p245 = scmp.lt.s32.totalorder %s20, 0
      %s246 = scalar_select %p245, %s20, 0
      %s247 = sadd.s32 %s246, %s244
      %s248 = smul.addr %s247, 4
      %s249 = scalar_lea.vmem %s1, %s248
      %p250 = pneg %p85
      %p251 = pneg %p82
      %p252 = scmp.lt.s32.totalorder %s20, 0
      %s253 = scalar_select %p252, %s20, 0
      %s254 = scalar_lea.vmem %s2, %s253
      %p255 = pneg %p111
      %p256 = pneg %p108
      %p257 = scmp.lt.s32.totalorder %s20, 0
      %s258 = scalar_select %p257, %s20, 0
      %s259 = scalar_lea.vmem %s3, %s258
      %p260 = pneg %p137
      %p261 = pneg %p134
      %p262 = pneg %p165
      %p263 = pneg %p162
      %s264 = smul.u32 8, %s21
      %p265 = scmp.lt.s32.totalorder %s264, 15
      %s266 = scalar_select %p265, %s264, 15
      %p267 = scmp.lt.s32.totalorder %s20, 0
      %s268 = scalar_select %p267, %s20, 0
      %s269 = sadd.s32 %s268, %s266
      %s270 = smul.addr %s269, 4
      %s271 = scalar_lea.vmem %s4, %s270
      %s272 = smul.u32 8, %s21
      %s273 = smul.u32 2, %s22
      %p274 = scmp.lt.s32.totalorder %s272, 15
      %s275 = scalar_select %p274, %s272, 15
      %p276 = scmp.lt.s32.totalorder %s273, 1
      %s277 = scalar_select %p276, %s273, 1
      %s278 = smul.addr %s275, 2
      %s279 = sadd.s32 %s277, %s278
      %s280 = smul.addr %s279, 4
      %s281 = scalar_lea.vmem %s0, %s280
      %s282 = smul.u32 8, %s21
      %s283 = smul.u32 2, %s22
      %s284 = smul.u32 18, %s22
      %p285 = scmp.lt.s32.totalorder %s284, 17
      %s286 = scalar_select %p285, %s284, 17
      %p287 = scmp.lt.s32.totalorder %s20, 0
      %s288 = scalar_select %p287, %s20, 0
      %s289 = sadd.s32 %s288, %s286
      %s290 = smul.addr %s289, 4
      %s291 = scalar_lea.vmem %s1, %s290
      %s292 = smul.u32 18, %s22
      %p293 = scmp.lt.s32.totalorder %s20, 0
      %s294 = scalar_select %p293, %s20, 0
      %s295 = scalar_lea.vmem %s2, %s294
      %p296 = scmp.lt.s32.totalorder %s20, 0
      %s297 = scalar_select %p296, %s20, 0
      %s298 = scalar_lea.vmem %s3, %s297
      %s299 = smul.u32 8, %s21
      %p300 = scmp.lt.s32.totalorder %s299, 15
      %s301 = scalar_select %p300, %s299, 15
      %p302 = scmp.lt.s32.totalorder %s20, 0
      %s303 = scalar_select %p302, %s20, 0
      %s304 = sadd.s32 %s303, %s301
      %s305 = smul.addr %s304, 4
      %s306 = scalar_lea.vmem %s4, %s305
      %s307 = smul.u32 8, %s21
      %p309 = scmp.eq.s32.totalorder %s22, 0
      // Predicated region
      $region37: #{_lambda_.11} parent=35 // pred_check
        %p310 = pneg %p309
      $region38: #{_lambda_.11} parent=35 // pred_check_branch
        %312 = sbr.rel (%p310) target = $region40
      $region39: #{_lambda_.11} parent=35 // pred_region
        %313 = vst [vmem:[#allocation2] sm:$0xff] 0.0
        %314 = vst [vmem:[#allocation2 + $0x8] sm:$0xff] 0.0
        %315 = vst [vmem:[#allocation2 + $0x10] sm:$0xff] 0.0
        %316 = vst [vmem:[#allocation2 + $0x18] sm:$0xff] 0.0
        %317 = vst [vmem:[#allocation2 + $0x20] sm:$0xff] 0.0
        %318 = vst [vmem:[#allocation2 + $0x28] sm:$0xff] 0.0
        %319 = vst [vmem:[#allocation2 + $0x30] sm:$0xff] 0.0
        %320 = vst [vmem:[#allocation2 + $0x38] sm:$0xff] 0.0
      $region40: #{_lambda_.11} parent=35 // pred_fallthru
        _
      %v321 = vld [vmem:[#allocation2] sm:$0xff]
      %v322 = vld [vmem:[#allocation2 + $0x8] sm:$0xff]
      %v323 = vld [vmem:[#allocation2 + $0x10] sm:$0xff]
      %v324 = vld [vmem:[#allocation2 + $0x18] sm:$0xff]
      %v325 = vld [vmem:[#allocation2 + $0x20] sm:$0xff]
      %v326 = vld [vmem:[#allocation2 + $0x28] sm:$0xff]
      %v327 = vld [vmem:[#allocation2 + $0x30] sm:$0xff]
      %v328 = vld [vmem:[#allocation2 + $0x38] sm:$0xff]
      %v329 = vld [vmem:[%s281] sm:$0xff]
      %v330 = vld [vmem:[%s281 + $0x8] sm:$0xff]
      %v331 = vld [vmem:[%s281 + $0x10] sm:$0xff]
      %v332 = vld [vmem:[%s281 + $0x18] sm:$0xff]
      %v333 = vld [vmem:[%s281 + $0x20] sm:$0xff]
      %v334 = vld [vmem:[%s281 + $0x28] sm:$0xff]
      %v335 = vld [vmem:[%s281 + $0x30] sm:$0xff]
      %v336 = vld [vmem:[%s281 + $0x38] sm:$0xff]
      %v337 = vld [vmem:[%s291] sm:$0xf]
      %v338 = vld [vmem:[%s291 + $0x4] sm:$0xf]
      %v339 = vld [vmem:[%s291 + $0x8] sm:$0xf]
      %v340 = vld [vmem:[%s291 + $0xc] sm:$0xf]
      %v341 = vld [vmem:[%s291 + $0x10] sm:$0xf]
      %v342 = vld [vmem:[%s291 + $0x14] sm:$0xf]
      %v343 = vld [vmem:[%s291 + $0x18] sm:$0xf]
      %v344 = vld [vmem:[%s291 + $0x1c] sm:$0xf]
      %v345 = vld [vmem:[%s291 + $0x20] sm:$0xf]
      %v346 = vld [vmem:[%s291 + $0x24] sm:$0xf]
      %v347 = vld [vmem:[%s291 + $0x28] sm:$0xf]
      %v348 = vld [vmem:[%s291 + $0x2c] sm:$0xf]
      %v349 = vld [vmem:[%s291 + $0x30] sm:$0xf]
      %v350 = vld [vmem:[%s291 + $0x34] sm:$0xf]
      %v351 = vld [vmem:[%s291 + $0x38] sm:$0xf]
      %v352 = vld [vmem:[%s291 + $0x3c] sm:$0xf]
      %v353 = vld [vmem:[%s291 + $0x40] sm:$0xf]
      %v354 = vld [vmem:[%s291 + $0x44] sm:$0xf]
      %v363 = vunpack.c.l.b16 %v329
      %v364 = vunpack.c.h.b16 %v329
      %v365 = vunpack.c.l.b16 %v330
      %v366 = vunpack.c.h.b16 %v330
      %v367 = vunpack.c.l.b16 %v331
      %v368 = vunpack.c.h.b16 %v331
      %v369 = vunpack.c.l.b16 %v332
      %v370 = vunpack.c.h.b16 %v332
      %v371 = vunpack.c.l.b16 %v333
      %v372 = vunpack.c.h.b16 %v333
      %v373 = vunpack.c.l.b16 %v334
      %v374 = vunpack.c.h.b16 %v334
      %v375 = vunpack.c.l.b16 %v335
      %v376 = vunpack.c.h.b16 %v335
      %v377 = vunpack.c.l.b16 %v336
      %v378 = vunpack.c.h.b16 %v336
      %v379 = vpack.c.b16 %v365, %v363
      %v380 = vpack.c.b16 %v366, %v364
      %v381 = vpack.c.b16 %v369, %v367
      %v382 = vpack.c.b16 %v370, %v368
      %v383 = vpack.c.b16 %v373, %v371
      %v384 = vpack.c.b16 %v374, %v372
      %v385 = vpack.c.b16 %v377, %v375
      %v386 = vpack.c.b16 %v378, %v376
      %v409 = vunpack.c.l.b16 %v337
      %v410 = vunpack.c.l.b16 %v338
      %v411 = vunpack.c.l.b16 %v339
      %v412 = vunpack.c.l.b16 %v340
      %v413 = vunpack.c.l.b16 %v341
      %v414 = vunpack.c.l.b16 %v342
      %v415 = vunpack.c.l.b16 %v343
      %v416 = vunpack.c.l.b16 %v344
      %v417 = vunpack.c.l.b16 %v345
      %v418 = vunpack.c.l.b16 %v346
      %v419 = vunpack.c.l.b16 %v347
      %v420 = vunpack.c.l.b16 %v348
      %v421 = vunpack.c.l.b16 %v349
      %v422 = vunpack.c.l.b16 %v350
      %v423 = vunpack.c.l.b16 %v351
      %v424 = vunpack.c.l.b16 %v352
      %v425 = vunpack.c.l.b16 %v353
      %v426 = vunpack.c.l.b16 %v354
      %v427 = vpack.c.b16 %v410, %v409
      %v428 = vpack.c.b16 %v412, %v411
      %v429 = vpack.c.b16 %v414, %v413
      %v430 = vpack.c.b16 %v416, %v415
      %v431 = vpack.c.b16 %v418, %v417
      %v432 = vpack.c.b16 %v420, %v419
      %v433 = vpack.c.b16 %v422, %v421
      %v434 = vpack.c.b16 %v424, %v423
      %v435 = vpack.c.b16 %v426, %v425
      %vm445 = vcmask 130048
      %v447 = vsel %vm445, %v380, 0
      %v450 = vsel %vm445, %v382, 0
      %v453 = vsel %vm445, %v384, 0
      %v456 = vsel %vm445, %v386, 0
      %458 = vmatprep.subr.bf16.mxu0 0
      %459 = vmatpush1.bf16.msra.mxu0 %v427
      %460 = vmatprep.subr.bf16.mxu0 0
      %461 = vmatpush1.bf16.msra.mxu0 %v428
      %462 = vmatprep.subr.bf16.mxu0 0
      %463 = vmatpush1.bf16.msra.mxu0 %v429
      %464 = vmatprep.subr.bf16.mxu0 0
      %465 = vmatpush1.bf16.msra.mxu0 %v430
      %466 = vmatprep.subr.bf16.mxu0 0
      %467 = vmatpush1.bf16.msra.mxu0 %v431
      %468 = vmatprep.subr.bf16.mxu0 0
      %469 = vmatpush1.bf16.msra.mxu0 %v432
      %470 = vmatprep.subr.bf16.mxu0 0
      %471 = vmatpush1.bf16.msra.mxu0 %v433
      %472 = vmatprep.subr.bf16.mxu0 0
      %473 = vmatpush1.bf16.msra.mxu0 %v434
      %474 = vmatprep.subr.bf16.mxu0 0
      %475 = vmatpush1.bf16.msra.mxu0 %v435
      %476 = vmatprep.subr.bf16.mxu0 0
      %477 = vmatpush1.bf16.msra.mxu0 0
      %478 = vmatprep.subr.bf16.mxu0 0
      %479 = vmatpush1.bf16.msra.mxu0 0
      %480 = vmatprep.subr.bf16.mxu0 0
      %481 = vmatpush1.bf16.msra.mxu0 0
      %482 = vmatprep.subr.bf16.mxu0 0
      %483 = vmatpush1.bf16.msra.mxu0 0
      %484 = vmatprep.subr.bf16.mxu0 0
      %485 = vmatpush1.bf16.msra.mxu0 0
      %486 = vmatprep.subr.bf16.mxu0 0
      %487 = vmatpush1.bf16.msra.mxu0 0
      %488 = vmatprep.subr.bf16.mxu0 0
      %489 = vmatpush1.bf16.msra.mxu0 0
      %490 = vmatprep.mubr.bf16.mxu0 %v447
      %491 = vmatmul.mubr.bf16.gmra.mrb[0].mxu0 %v379
      %v492 = vpop.f32.mrb[0].mxu0
      %v493 = vadd.f32 0.0, %v492
      %v494 = vpop.f32.mrb[0].mxu0
      %v495 = vpop.f32.mrb[0].mxu0
      %v496 = vadd.f32 0.0, %v495
      %v497 = vpop.f32.mrb[0].mxu0
      %498 = vmatprep.mubr.bf16.mxu0 %v450
      %499 = vmatmul.mubr.bf16.gmra.mrb[0].mxu0 %v381
      %v500 = vpop.f32.mrb[0].mxu0
      %v501 = vadd.f32 0.0, %v500
      %v502 = vpop.f32.mrb[0].mxu0
      %v503 = vpop.f32.mrb[0].mxu0
      %v504 = vadd.f32 0.0, %v503
      %v505 = vpop.f32.mrb[0].mxu0
      %506 = vmatprep.mubr.bf16.mxu0 %v453
      %507 = vmatmul.mubr.bf16.gmra.mrb[0].mxu0 %v383
      %v508 = vpop.f32.mrb[0].mxu0
      %v509 = vadd.f32 0.0, %v508
      %v510 = vpop.f32.mrb[0].mxu0
      %v511 = vpop.f32.mrb[0].mxu0
      %v512 = vadd.f32 0.0, %v511
      %v513 = vpop.f32.mrb[0].mxu0
      %514 = vmatprep.mubr.bf16.mxu0 %v456
      %515 = vmatmul.mubr.bf16.gmra.mrb[0].mxu0 %v385
      %v516 = vpop.f32.mrb[0].mxu0
      %v517 = vadd.f32 0.0, %v516
      %v518 = vpop.f32.mrb[0].mxu0
      %v519 = vpop.f32.mrb[0].mxu0
      %v520 = vadd.f32 0.0, %v519
      %v521 = vpop.f32.mrb[0].mxu0
      %522 = vdwg.mxu0
      %v523 = vadd.f32 %v321, %v493
      %v524 = vadd.f32 %v322, %v496
      %v525 = vadd.f32 %v323, %v501
      %v526 = vadd.f32 %v324, %v504
      %v527 = vadd.f32 %v325, %v509
      %v528 = vadd.f32 %v326, %v512
      %v529 = vadd.f32 %v327, %v517
      %v530 = vadd.f32 %v328, %v520
      %531 = vst [vmem:[#allocation2] sm:$0xff] %v523
      %532 = vst [vmem:[#allocation2 + $0x8] sm:$0xff] %v524
      %533 = vst [vmem:[#allocation2 + $0x10] sm:$0xff] %v525
      %534 = vst [vmem:[#allocation2 + $0x18] sm:$0xff] %v526
      %535 = vst [vmem:[#allocation2 + $0x20] sm:$0xff] %v527
      %536 = vst [vmem:[#allocation2 + $0x28] sm:$0xff] %v528
      %537 = vst [vmem:[#allocation2 + $0x30] sm:$0xff] %v529
      %538 = vst [vmem:[#allocation2 + $0x38] sm:$0xff] %v530
      // Predicated region
      $region41: #{_lambda_.11} parent=35 // pred_check
        %p539 = pneg %p309
      $region42: #{_lambda_.11} parent=35 // pred_check_branch
        %541 = sbr.rel (%p539) target = $region44
      $region43: #{_lambda_.11} parent=35 // pred_region
        %v542 = vld [vmem:[#allocation2] sm:$0xff]
        %v543 = vld [vmem:[#allocation2 + $0x8] sm:$0xff]
        %v544 = vld [vmem:[#allocation2 + $0x10] sm:$0xff]
        %v545 = vld [vmem:[#allocation2 + $0x18] sm:$0xff]
        %v546 = vld [vmem:[#allocation2 + $0x20] sm:$0xff]
        %v547 = vld [vmem:[#allocation2 + $0x28] sm:$0xff]
        %v548 = vld [vmem:[#allocation2 + $0x30] sm:$0xff]
        %v549 = vld [vmem:[#allocation2 + $0x38] sm:$0xff]
        %v550 = vld [vmem:[%s295] sm:$0x1]
        %v552 = vlaneseq
        %v553 = vshrl.u32 %v552, 7
        %v554 = vsub.s32 0, %v553
        %v555 = vrot.slane %v550, %v554
        %v557 = vmul.f32 %v542, %v555
        %v558 = vmul.f32 %v543, %v555
        %v559 = vmul.f32 %v544, %v555
        %v560 = vmul.f32 %v545, %v555
        %v561 = vmul.f32 %v546, %v555
        %v562 = vmul.f32 %v547, %v555
        %v563 = vmul.f32 %v548, %v555
        %v564 = vmul.f32 %v549, %v555
        %v565 = vld [vmem:[%s298] sm:$0x1]
        %v567 = vlaneseq
        %v568 = vshrl.u32 %v567, 7
        %v569 = vsub.s32 0, %v568
        %v570 = vrot.slane %v565, %v569
        %v572 = vadd.f32 %v557, %v570
        %v573 = vadd.f32 %v558, %v570
        %v574 = vadd.f32 %v559, %v570
        %v575 = vadd.f32 %v560, %v570
        %v576 = vadd.f32 %v561, %v570
        %v577 = vadd.f32 %v562, %v570
        %v578 = vadd.f32 %v563, %v570
        %v579 = vadd.f32 %v564, %v570
        %v580 = vmax.f32 %v572, 0.0
        %v581 = vmax.f32 %v573, 0.0
        %v582 = vmax.f32 %v574, 0.0
        %v583 = vmax.f32 %v575, 0.0
        %v584 = vmax.f32 %v576, 0.0
        %v585 = vmax.f32 %v577, 0.0
        %v586 = vmax.f32 %v578, 0.0
        %v587 = vmax.f32 %v579, 0.0
        %v588 = vpack.c.bf16 %v581, %v580
        %v589 = vpack.c.bf16 %v583, %v582
        %v590 = vpack.c.bf16 %v585, %v584
        %v591 = vpack.c.bf16 %v587, %v586
        %v596 = vunpack.c.l.b16 %v588
        %v597 = vunpack.c.h.b16 %v588
        %v598 = vunpack.c.l.b16 %v589
        %v599 = vunpack.c.h.b16 %v589
        %v600 = vunpack.c.l.b16 %v590
        %v601 = vunpack.c.h.b16 %v590
        %v602 = vunpack.c.l.b16 %v591
        %v603 = vunpack.c.h.b16 %v591
        %v604 = vpack.c.b16 %v596, %v596
        %v605 = vpack.c.b16 %v597, %v597
        %v606 = vpack.c.b16 %v598, %v598
        %v607 = vpack.c.b16 %v599, %v599
        %v608 = vpack.c.b16 %v600, %v600
        %v609 = vpack.c.b16 %v601, %v601
        %v610 = vpack.c.b16 %v602, %v602
        %v611 = vpack.c.b16 %v603, %v603
        %620 = vst [vmem:[%s306] sm:$0xf] %v604
        %621 = vst [vmem:[%s306 + $0x4] sm:$0xf] %v605
        %622 = vst [vmem:[%s306 + $0x8] sm:$0xf] %v606
        %623 = vst [vmem:[%s306 + $0xc] sm:$0xf] %v607
        %624 = vst [vmem:[%s306 + $0x10] sm:$0xf] %v608
        %625 = vst [vmem:[%s306 + $0x14] sm:$0xf] %v609
        %626 = vst [vmem:[%s306 + $0x18] sm:$0xf] %v610
        %627 = vst [vmem:[%s306 + $0x1c] sm:$0xf] %v611
      $region44: #{_lambda_.11} parent=35 // pred_fallthru
        _
      %s628 = smul.u32 8, %s21
      %p629 = scmp.lt.s32.totalorder %s628, 15
      %s630 = scalar_select %p629, %s628, 15
      %p631 = scmp.lt.s32.totalorder %s20, 0
      %s632 = scalar_select %p631, %s20, 0
      %s633 = sadd.s32 %s632, %s630
      %s634 = smul.addr %s633, 4
      %s635 = scalar_lea.vmem %s4, %s634
      // Predicated region
      $region45: #{_lambda_.11} parent=35 // pred_check
        %p636 = pneg %p162
      $region46: #{_lambda_.11} parent=35 // pred_check_branch
        %638 = sbr.rel (%p636) target = $region48
      $region47: #{_lambda_.11} parent=35 // pred_region
        %s639 = smul.u32 8, %s21
      $region48: #{_lambda_.11} parent=35 // pred_fallthru
        _
    $region36: #{_lambda_.11} parent=5 // pred_fallthru
      _
    %p640 = scmp.le.s32.totalorder 2, %s10
    // Predicated region
    $region49: #{_lambda_.11} parent=5 // pred_check
      %p641 = pneg %p640
    $region50: #{_lambda_.11} parent=5 // pred_check_branch
      %643 = sbr.rel (%p641) target = $region52
    $region51: #{_lambda_.11} parent=5 // pred_region
      %s644 = ssub.s32 %s10, 2
      // Predicated region
      $region53: #{_lambda_.11} parent=51 // pred_check
        %p645 = pneg %p168
      $region54: #{_lambda_.11} parent=51 // pred_check_branch
        %647 = sbr.rel (%p645) target = $region56
      $region55: #{_lambda_.11} parent=51 // pred_region
        %s648 = smul.u32 8, %s24
        %p649 = scmp.lt.s32.totalorder %s648, 15
        %s650 = scalar_select %p649, %s648, 15
        %p651 = scmp.lt.s32.totalorder %s23, 0
        %s652 = scalar_select %p651, %s23, 0
        %s653 = sadd.s32 %s652, %s650
        %s654 = smul.addr %s653, 4
        %s655 = scalar_lea.vmem %s4, %s654
      $region56: #{_lambda_.11} parent=51 // pred_fallthru
        _
    $region52: #{_lambda_.11} parent=5 // pred_fallthru
      _
  $region6: #{_lambda_.11} parent=0 // loop_footer
    %s14 = sadd.s32 1, %s10
  $region7: #{_lambda_.11} parent=0 // loop_footer_branch
    %9 = sbr.rel target = $region3
  $region8: #{_lambda_.11} parent=0 // loop_exit
    _

// kernel: _lambda_.13
$region0: #{_lambda_.13}
  #allocation0 [shape = 'u32[]', space=smem, size = 0x4, offset = 0x4, fixed_abs, tag = 'smem constant byte address 0x4 - core index']
  #allocation1 [shape = 'u32[144,128]{1,0:T(1,128)}', space=vmem, size = 0x12000, scoped, tag = 'internal scratch']
  %s0 = inlined_call_operand.vmem [shape: bf16[8,128], index: 0, kind: input, shape index: {}]
  %s1 = inlined_call_operand.vmem [shape: bf16[8,128], index: 1, kind: input, shape index: {}]
  %s2 = inlined_call_operand.vmem [shape: bf16[8,128], index: 2, kind: input, shape index: {}]
  %s3 = inlined_call_operand.vmem [shape: bf16[8,128], index: 3, kind: input, shape index: {}]
  %s4 = inlined_call_operand.vmem [shape: bf16[8,128], index: 4, kind: input, shape index: {}]
  %s5 = inlined_call_operand.vmem [shape: bf16[8,128], index: 5, kind: input, shape index: {}]
  %s6 = inlined_call_operand.vmem [shape: bf16[8,128], index: 6, kind: input, shape index: {}]
  %s7 = inlined_call_operand.vmem [shape: bf16[8,128], index: 7, kind: input, shape index: {}]
  %s8 = inlined_call_operand.vmem [shape: bf16[8,128], index: 8, kind: input, shape index: {}]
  %s9 = inlined_call_operand.vmem [shape: bf16[8,128], index: 9, kind: output, shape index: {}]
  %s10 = sld [smem:[#allocation0]]
  $region46: #{_lambda_.13} parent=0
    _
  %s12 = ssub.s32 1, %s10
  %s13 = scalar_select 0, %s12, %s10
  // Predicated region
  $region2: #{_lambda_.13} parent=0 // pred_check
    _
  $region3: #{_lambda_.13} parent=0 // pred_check_branch
    %15 = sbr.rel (0) target = $region5
  $region4: #{_lambda_.13} parent=0 // pred_region
    _
  $region5: #{_lambda_.13} parent=0 // pred_fallthru
    _
  // Predicated region
  $region6: #{_lambda_.13} parent=0 // pred_check
    _
  $region7: #{_lambda_.13} parent=0 // pred_check_branch
    %17 = sbr.rel (0) target = $region9
  $region8: #{_lambda_.13} parent=0 // pred_region
    _
  $region9: #{_lambda_.13} parent=0 // pred_fallthru
    _
  // Predicated region
  $region10: #{_lambda_.13} parent=0 // pred_check
    _
  $region11: #{_lambda_.13} parent=0 // pred_check_branch
    %19 = sbr.rel (0) target = $region13
  $region12: #{_lambda_.13} parent=0 // pred_region
    _
  $region13: #{_lambda_.13} parent=0 // pred_fallthru
    _
  // Predicated region
  $region14: #{_lambda_.13} parent=0 // pred_check
    _
  $region15: #{_lambda_.13} parent=0 // pred_check_branch
    %21 = sbr.rel (0) target = $region17
  $region16: #{_lambda_.13} parent=0 // pred_region
    _
  $region17: #{_lambda_.13} parent=0 // pred_fallthru
    _
  // Predicated region
  $region18: #{_lambda_.13} parent=0 // pred_check
    _
  $region19: #{_lambda_.13} parent=0 // pred_check_branch
    %23 = sbr.rel (0) target = $region21
  $region20: #{_lambda_.13} parent=0 // pred_region
    _
  $region21: #{_lambda_.13} parent=0 // pred_fallthru
    _
  // Predicated region
  $region22: #{_lambda_.13} parent=0 // pred_check
    _
  $region23: #{_lambda_.13} parent=0 // pred_check_branch
    %25 = sbr.rel (0) target = $region25
  $region24: #{_lambda_.13} parent=0 // pred_region
    _
  $region25: #{_lambda_.13} parent=0 // pred_fallthru
    _
  // Predicated region
  $region26: #{_lambda_.13} parent=0 // pred_check
    _
  $region27: #{_lambda_.13} parent=0 // pred_check_branch
    %27 = sbr.rel (0) target = $region29
  $region28: #{_lambda_.13} parent=0 // pred_region
    _
  $region29: #{_lambda_.13} parent=0 // pred_fallthru
    _
  // Predicated region
  $region30: #{_lambda_.13} parent=0 // pred_check
    _
  $region31: #{_lambda_.13} parent=0 // pred_check_branch
    %29 = sbr.rel (0) target = $region33
  $region32: #{_lambda_.13} parent=0 // pred_region
    _
  $region33: #{_lambda_.13} parent=0 // pred_fallthru
    _
  // Predicated region
  $region34: #{_lambda_.13} parent=0 // pred_check
    _
  $region35: #{_lambda_.13} parent=0 // pred_check_branch
    %31 = sbr.rel (0) target = $region37
  $region36: #{_lambda_.13} parent=0 // pred_region
    _
  $region37: #{_lambda_.13} parent=0 // pred_fallthru
    _
  %v32 = vld [vmem:[%s0] sm:$0xf]
  %v33 = vld [vmem:[%s1] sm:$0xf]
  %v34 = vmax.bf16 %v32, %v33
  %v35 = vld [vmem:[%s2] sm:$0xf]
  %v36 = vmax.bf16 %v34, %v35
  %v37 = vld [vmem:[%s3] sm:$0xf]
  %v38 = vmax.bf16 %v36, %v37
  %v39 = vld [vmem:[%s4] sm:$0xf]
  %v40 = vmax.bf16 %v38, %v39
  %v41 = vld [vmem:[%s5] sm:$0xf]
  %v42 = vmax.bf16 %v40, %v41
  %v43 = vld [vmem:[%s6] sm:$0xf]
  %v44 = vmax.bf16 %v42, %v43
  %v45 = vld [vmem:[%s7] sm:$0xf]
  %v46 = vmax.bf16 %v44, %v45
  %v47 = vld [vmem:[%s8] sm:$0xf]
  %v48 = vmax.bf16 %v46, %v47
  %49 = vst [vmem:[%s9] sm:$0xf] %v48
  // Predicated region
  $region38: #{_lambda_.13} parent=0 // pred_check
    _
  $region39: #{_lambda_.13} parent=0 // pred_check_branch
    %51 = sbr.rel (0) target = $region41
  $region40: #{_lambda_.13} parent=0 // pred_region
    _
  $region41: #{_lambda_.13} parent=0 // pred_fallthru
    _
  // Predicated region
  $region42: #{_lambda_.13} parent=0 // pred_check
    _
  $region43: #{_lambda_.13} parent=0 // pred_check_branch
    %53 = sbr.rel (0) target = $region45
  $region44: #{_lambda_.13} parent=0 // pred_region
    _
  $region45: #{_lambda_.13} parent=0 // pred_fallthru
    _

// kernel: _lambda_.15
$region0: #{_lambda_.15}
  #allocation0 [shape = 'u32[]', space=smem, size = 0x4, offset = 0x4, fixed_abs, tag = 'smem constant byte address 0x4 - core index']
  #allocation1 [shape = 'u32[144,128]{1,0:T(1,128)}', space=vmem, size = 0x12000, scoped, tag = 'internal scratch']
  #allocation2 [shape = 'f32[16,128]{1,0:T(8,128)}', space=vmem, size = 0x2000, scoped, tag = 'scratch operand']
  %s0 = inlined_call_operand.vmem [shape: bf16[32,288], index: 0, kind: input, shape index: {}]
  %s1 = inlined_call_operand.vmem [shape: bf16[288,128], index: 1, kind: input, shape index: {}]
  %s2 = inlined_call_operand.vmem [shape: f32[1,128], index: 2, kind: input, shape index: {}]
  %s3 = inlined_call_operand.vmem [shape: f32[1,128], index: 3, kind: input, shape index: {}]
  %s4 = inlined_call_operand.vmem [shape: bf16[32,128], index: 4, kind: input, shape index: {}]
  %s5 = inlined_call_operand.vmem [shape: bf16[32,128], index: 5, kind: output, shape index: {}]
  %s6 = sld [smem:[#allocation0]]
  $region61: #{_lambda_.15} parent=0
    _
  %s8 = ssub.s32 1, %s6
  %s9 = scalar_select 0, %s8, %s6
  loop: start=0, step=1, limit=4
  $region2: #{_lambda_.15} parent=0 // loop_pre_header
    _
  $region3: #{_lambda_.15} parent=0 // loop_header
    %s11 = sphi 0, %s15
    %p12 = scmp.ge.s32.totalorder %s11, 4
    %s18 = sphi 0, %s37
    %s19 = sphi 0, %s33
    %s20 = sphi 0, %s29
    %s21 = sphi 0, %s18
    %s22 = sphi 0, %s19
    %s23 = sphi 0, %s20
    %s24 = sphi 0, %s21
    %s25 = sphi 0, %s22
    %s26 = sphi 0, %s23
    %s42 = sphi 0, %s44
    %s45 = sphi 0, %s42
    %s46 = sphi 0, %s45
    %s62 = sphi 0, %s46
    %s70 = sphi 0, %s72
    %s73 = sphi 0, %s70
    %s74 = sphi 0, %s73
    %s90 = sphi 0, %s74
    %s96 = sphi 0, %s98
    %s99 = sphi 0, %s96
    %s100 = sphi 0, %s99
    %s116 = sphi 0, %s100
    %s122 = sphi 0, %s124
    %s125 = sphi 0, %s122
    %s126 = sphi 0, %s125
    %s142 = sphi 0, %s126
    %s150 = sphi 0, %s152
    %s153 = sphi 0, %s150
    %s154 = sphi 0, %s153
    %s170 = sphi 0, %s154
    %s178 = sphi 0, %s180
    %s181 = sphi 0, %s178
    %s182 = sphi 0, %s181
    %s198 = sphi 0, %s182
  $region4: #{_lambda_.15} parent=0 // loop_header_branch
    %14 = sbr.rel (%p12) target = $region8
  $region5: #{_lambda_.15} parent=0 // loop_body
    %s16 = ssub.s32 %s11, 1
    %s17 = ssub.s32 %s11, 2
    %s27 = sadd.s32 1, %s20
    %p28 = scmp.ge.s32.totalorder %s27, 1
    %s29 = scalar_select %p28, 0, %s27
    %s30 = sadd.s32 1, %s19
    %s31 = scalar_select %p28, %s30, %s19
    %p32 = scmp.ge.s32.totalorder %s31, 2
    %s33 = scalar_select %p32, 0, %s31
    %s34 = sadd.s32 1, %s18
    %s35 = scalar_select %p32, %s34, %s18
    %p36 = scmp.ge.s32.totalorder %s35, 1
    %s37 = scalar_select %p36, 0, %s35
    %s38 = ssub.s32 %s19, %s33
    %s39 = ssub.s32 %s20, %s29
    %s40 = sor.u32 %s38, %s39
    %p41 = scmp.eq.s32.totalorder %s40, 0
    %s43 = sadd.s32 %s42, 1
    %s44 = scalar_select %p41, %s42, %s43
    %p47 = pneg %p41
    %p48 = scmp.eq.s32.totalorder %s11, 1
    %p49 = por %p47, %p48
    %p50 = scmp.ne.s32.totalorder %s42, %s45
    %p51 = scmp.eq.s32.totalorder %s11, 0
    %p52 = por %p50, %p51
    %p53 = scmp.ne.s32.totalorder %s42, %s45
    %p54 = scmp.eq.s32.totalorder %s16, 1
    %p55 = por %p53, %p54
    %p56 = scmp.ne.s32.totalorder %s45, %s46
    %p57 = scmp.eq.s32.totalorder %s16, 0
    %p58 = por %p56, %p57
    %p59 = scmp.ne.s32.totalorder %s45, %s46
    %p60 = scmp.eq.s32.totalorder %s17, 1
    %p61 = por %p59, %p60
    %p63 = scmp.ne.s32.totalorder %s46, %s62
    %p64 = scmp.eq.s32.totalorder %s17, 0
    %p65 = por %p63, %p64
    %s66 = ssub.s32 %s20, %s29
    %s67 = ssub.s32 %s18, %s37
    %s68 = sor.u32 %s66, %s67
    %p69 = scmp.eq.s32.totalorder %s68, 0
    %s71 = sadd.s32 %s70, 1
    %s72 = scalar_select %p69, %s70, %s71
    %p75 = pneg %p69
    %p76 = scmp.eq.s32.totalorder %s11, 1
    %p77 = por %p75, %p76
    %p78 = scmp.ne.s32.totalorder %s70, %s73
    %p79 = scmp.eq.s32.totalorder %s11, 0
    %p80 = por %p78, %p79
    %p81 = scmp.ne.s32.totalorder %s70, %s73
    %p82 = scmp.eq.s32.totalorder %s16, 1
    %p83 = por %p81, %p82
    %p84 = scmp.ne.s32.totalorder %s73, %s74
    %p85 = scmp.eq.s32.totalorder %s16, 0
    %p86 = por %p84, %p85
    %p87 = scmp.ne.s32.totalorder %s73, %s74
    %p88 = scmp.eq.s32.totalorder %s17, 1
    %p89 = por %p87, %p88
    %p91 = scmp.ne.s32.totalorder %s74, %s90
    %p92 = scmp.eq.s32.totalorder %s17, 0
    %p93 = por %p91, %p92
    %s94 = ssub.s32 %s18, %s37
    %p95 = scmp.eq.s32.totalorder %s94, 0
    %s97 = sadd.s32 %s96, 1
    %s98 = scalar_select %p95, %s96, %s97
    %p101 = pneg %p95
    %p102 = scmp.eq.s32.totalorder %s11, 1
    %p103 = por %p101, %p102
    %p104 = scmp.ne.s32.totalorder %s96, %s99
    %p105 = scmp.eq.s32.totalorder %s11, 0
    %p106 = por %p104, %p105
    %p107 = scmp.ne.s32.totalorder %s96, %s99
    %p108 = scmp.eq.s32.totalorder %s16, 1
    %p109 = por %p107, %p108
    %p110 = scmp.ne.s32.totalorder %s99, %s100
    %p111 = scmp.eq.s32.totalorder %s16, 0
    %p112 = por %p110, %p111
    %p113 = scmp.ne.s32.totalorder %s99, %s100
    %p114 = scmp.eq.s32.totalorder %s17, 1
    %p115 = por %p113, %p114
    %p117 = scmp.ne.s32.totalorder %s100, %s116
    %p118 = scmp.eq.s32.totalorder %s17, 0
    %p119 = por %p117, %p118
    %s120 = ssub.s32 %s18, %s37
    %p121 = scmp.eq.s32.totalorder %s120, 0
    %s123 = sadd.s32 %s122, 1
    %s124 = scalar_select %p121, %s122, %s123
    %p127 = pneg %p121
    %p128 = scmp.eq.s32.totalorder %s11, 1
    %p129 = por %p127, %p128
    %p130 = scmp.ne.s32.totalorder %s122, %s125
    %p131 = scmp.eq.s32.totalorder %s11, 0
    %p132 = por %p130, %p131
    %p133 = scmp.ne.s32.totalorder %s122, %s125
    %p134 = scmp.eq.s32.totalorder %s16, 1
    %p135 = por %p133, %p134
    %p136 = scmp.ne.s32.totalorder %s125, %s126
    %p137 = scmp.eq.s32.totalorder %s16, 0
    %p138 = por %p136, %p137
    %p139 = scmp.ne.s32.totalorder %s125, %s126
    %p140 = scmp.eq.s32.totalorder %s17, 1
    %p141 = por %p139, %p140
    %p143 = scmp.ne.s32.totalorder %s126, %s142
    %p144 = scmp.eq.s32.totalorder %s17, 0
    %p145 = por %p143, %p144
    %s146 = ssub.s32 %s19, %s33
    %s147 = ssub.s32 %s18, %s37
    %s148 = sor.u32 %s146, %s147
    %p149 = scmp.eq.s32.totalorder %s148, 0
    %s151 = sadd.s32 %s150, 1
    %s152 = scalar_select %p149, %s150, %s151
    %p155 = pneg %p149
    %p156 = scmp.eq.s32.totalorder %s11, 1
    %p157 = por %p155, %p156
    %p158 = scmp.ne.s32.totalorder %s150, %s153
    %p159 = scmp.eq.s32.totalorder %s11, 0
    %p160 = por %p158, %p159
    %p161 = scmp.ne.s32.totalorder %s150, %s153
    %p162 = scmp.eq.s32.totalorder %s16, 1
    %p163 = por %p161, %p162
    %p164 = scmp.ne.s32.totalorder %s153, %s154
    %p165 = scmp.eq.s32.totalorder %s16, 0
    %p166 = por %p164, %p165
    %p167 = scmp.ne.s32.totalorder %s153, %s154
    %p168 = scmp.eq.s32.totalorder %s17, 1
    %p169 = por %p167, %p168
    %p171 = scmp.ne.s32.totalorder %s154, %s170
    %p172 = scmp.eq.s32.totalorder %s17, 0
    %p173 = por %p171, %p172
    %s174 = ssub.s32 %s19, %s33
    %s175 = ssub.s32 %s18, %s37
    %s176 = sor.u32 %s174, %s175
    %p177 = scmp.eq.s32.totalorder %s176, 0
    %s179 = sadd.s32 %s178, 1
    %s180 = scalar_select %p177, %s178, %s179
    %p183 = pneg %p177
    %p184 = scmp.eq.s32.totalorder %s11, 1
    %p185 = por %p183, %p184
    %p186 = scmp.ne.s32.totalorder %s178, %s181
    %p187 = scmp.eq.s32.totalorder %s11, 0
    %p188 = por %p186, %p187
    %p189 = scmp.ne.s32.totalorder %s178, %s181
    %p190 = scmp.eq.s32.totalorder %s16, 1
    %p191 = por %p189, %p190
    %p192 = scmp.ne.s32.totalorder %s181, %s182
    %p193 = scmp.eq.s32.totalorder %s16, 0
    %p194 = por %p192, %p193
    %p195 = scmp.ne.s32.totalorder %s181, %s182
    %p196 = scmp.eq.s32.totalorder %s17, 1
    %p197 = por %p195, %p196
    %p199 = scmp.ne.s32.totalorder %s182, %s198
    %p200 = scmp.eq.s32.totalorder %s17, 0
    %p201 = por %p199, %p200
    %p202 = scmp.le.s32.totalorder 1, %s11
    %p203 = scmp.lt.s32.totalorder %s11, 3
    %p204 = pnand %p202, %p203
    %p205 = pneg %p204
    // Predicated region
    $region9: #{_lambda_.15} parent=5 // pred_check
      _
    $region10: #{_lambda_.15} parent=5 // pred_check_branch
      %207 = sbr.rel (%p204) target = $region12
    $region11: #{_lambda_.15} parent=5 // pred_region
      %s208 = ssub.s32 %s11, 1
      // Predicated region
      $region13: #{_lambda_.15} parent=11 // pred_check
        %p209 = pneg %p86
      $region14: #{_lambda_.15} parent=11 // pred_check_branch
        %211 = sbr.rel (%p209) target = $region16
      $region15: #{_lambda_.15} parent=11 // pred_region
        %s212 = smul.u32 36, %s23
        %p213 = scmp.lt.s32.totalorder %s212, 35
        %s214 = scalar_select %p213, %s212, 35
        %p215 = scmp.lt.s32.totalorder %s21, 0
        %s216 = scalar_select %p215, %s21, 0
        %s217 = sadd.s32 %s216, %s214
        %s218 = smul.addr %s217, 4
        %s219 = scalar_lea.vmem %s1, %s218
        %s220 = smul.u32 36, %s23
      $region16: #{_lambda_.15} parent=11 // pred_fallthru
        _
      // Predicated region
      $region17: #{_lambda_.15} parent=11 // pred_check
        %p221 = pneg %p112
      $region18: #{_lambda_.15} parent=11 // pred_check_branch
        %223 = sbr.rel (%p221) target = $region20
      $region19: #{_lambda_.15} parent=11 // pred_region
        %p224 = scmp.lt.s32.totalorder %s21, 0
        %s225 = scalar_select %p224, %s21, 0
        %s226 = scalar_lea.vmem %s2, %s225
      $region20: #{_lambda_.15} parent=11 // pred_fallthru
        _
      // Predicated region
      $region21: #{_lambda_.15} parent=11 // pred_check
        %p227 = pneg %p138
      $region22: #{_lambda_.15} parent=11 // pred_check_branch
        %229 = sbr.rel (%p227) target = $region24
      $region23: #{_lambda_.15} parent=11 // pred_region
        %p230 = scmp.lt.s32.totalorder %s21, 0
        %s231 = scalar_select %p230, %s21, 0
        %s232 = scalar_lea.vmem %s3, %s231
      $region24: #{_lambda_.15} parent=11 // pred_fallthru
        _
    $region12: #{_lambda_.15} parent=5 // pred_fallthru
      _
    %p233 = scmp.lt.s32.totalorder %s11, 2
    // Predicated region
    $region25: #{_lambda_.15} parent=5 // pred_check
      %p234 = pneg %p233
    $region26: #{_lambda_.15} parent=5 // pred_check_branch
      %236 = sbr.rel (%p234) target = $region28
    $region27: #{_lambda_.15} parent=5 // pred_region
      // Predicated region
      $region29: #{_lambda_.15} parent=27 // pred_check
        %p237 = pneg %p52
      $region30: #{_lambda_.15} parent=27 // pred_check_branch
        %239 = sbr.rel (%p237) target = $region32
      $region31: #{_lambda_.15} parent=27 // pred_region
        %s240 = smul.u32 2, %s19
        %s241 = smul.u32 3, %s20
        %p242 = scmp.lt.s32.totalorder %s240, 3
        %s243 = scalar_select %p242, %s240, 3
        %p244 = scmp.lt.s32.totalorder %s241, 2
        %s245 = scalar_select %p244, %s241, 2
        %s246 = smul.addr %s243, 3
        %s247 = sadd.s32 %s245, %s246
        %s248 = smul.addr %s247, 4
        %s249 = scalar_lea.vmem %s0, %s248
        %s250 = smul.u32 2, %s19
        %s251 = smul.u32 3, %s20
      $region32: #{_lambda_.15} parent=27 // pred_fallthru
        _
      // Predicated region
      $region33: #{_lambda_.15} parent=27 // pred_check
        %p252 = pneg %p160
      $region34: #{_lambda_.15} parent=27 // pred_check_branch
        %254 = sbr.rel (%p252) target = $region36
      $region35: #{_lambda_.15} parent=27 // pred_region
        %s255 = smul.u32 2, %s19
        %p256 = scmp.lt.s32.totalorder %s255, 3
        %s257 = scalar_select %p256, %s255, 3
        %p258 = scmp.lt.s32.totalorder %s18, 0
        %s259 = scalar_select %p258, %s18, 0
        %s260 = sadd.s32 %s259, %s257
        %s261 = smul.addr %s260, 4
        %s262 = scalar_lea.vmem %s4, %s261
        %s263 = smul.u32 2, %s19
      $region36: #{_lambda_.15} parent=27 // pred_fallthru
        _
    $region28: #{_lambda_.15} parent=5 // pred_fallthru
      _
    %p264 = scmp.le.s32.totalorder 1, %s11
    %p265 = scmp.lt.s32.totalorder %s11, 3
    %p266 = pnand %p264, %p265
    %p267 = pneg %p266
    // Predicated region
    $region37: #{_lambda_.15} parent=5 // pred_check
      _
    $region38: #{_lambda_.15} parent=5 // pred_check_branch
      %269 = sbr.rel (%p266) target = $region40
    $region39: #{_lambda_.15} parent=5 // pred_region
      %s270 = ssub.s32 %s11, 1
      %s271 = smul.u32 2, %s22
      %s272 = smul.u32 3, %s23
      %p273 = scmp.lt.s32.totalorder %s271, 3
      %s274 = scalar_select %p273, %s271, 3
      %p275 = scmp.lt.s32.totalorder %s272, 2
      %s276 = scalar_select %p275, %s272, 2
      %s277 = smul.addr %s274, 3
      %s278 = sadd.s32 %s276, %s277
      %s279 = smul.addr %s278, 4
      %s280 = scalar_lea.vmem %s0, %s279
      %p281 = pneg %p58
      %p282 = pneg %p55
      %s283 = smul.u32 36, %s23
      %p284 = scmp.lt.s32.totalorder %s283, 35
      %s285 = scalar_select %p284, %s283, 35
      %p286 = scmp.lt.s32.totalorder %s21, 0
      %s287 = scalar_select %p286, %s21, 0
      %s288 = sadd.s32 %s287, %s285
      %s289 = smul.addr %s288, 4
      %s290 = scalar_lea.vmem %s1, %s289
      %p291 = pneg %p86
      %p292 = pneg %p83
      %p293 = scmp.lt.s32.totalorder %s21, 0
      %s294 = scalar_select %p293, %s21, 0
      %s295 = scalar_lea.vmem %s2, %s294
      %p296 = pneg %p112
      %p297 = pneg %p109
      %p298 = scmp.lt.s32.totalorder %s21, 0
      %s299 = scalar_select %p298, %s21, 0
      %s300 = scalar_lea.vmem %s3, %s299
      %p301 = pneg %p138
      %p302 = pneg %p135
      %s303 = smul.u32 2, %s22
      %p304 = scmp.lt.s32.totalorder %s303, 3
      %s305 = scalar_select %p304, %s303, 3
      %p306 = scmp.lt.s32.totalorder %s21, 0
      %s307 = scalar_select %p306, %s21, 0
      %s308 = sadd.s32 %s307, %s305
      %s309 = smul.addr %s308, 4
      %s310 = scalar_lea.vmem %s4, %s309
      %p311 = pneg %p166
      %p312 = pneg %p163
      %p313 = pneg %p194
      %p314 = pneg %p191
      %s315 = smul.u32 2, %s22
      %p316 = scmp.lt.s32.totalorder %s315, 3
      %s317 = scalar_select %p316, %s315, 3
      %p318 = scmp.lt.s32.totalorder %s21, 0
      %s319 = scalar_select %p318, %s21, 0
      %s320 = sadd.s32 %s319, %s317
      %s321 = smul.addr %s320, 4
      %s322 = scalar_lea.vmem %s5, %s321
      %s323 = smul.u32 2, %s22
      %s324 = smul.u32 3, %s23
      %p325 = scmp.lt.s32.totalorder %s323, 3
      %s326 = scalar_select %p325, %s323, 3
      %p327 = scmp.lt.s32.totalorder %s324, 2
      %s328 = scalar_select %p327, %s324, 2
      %s329 = smul.addr %s326, 3
      %s330 = sadd.s32 %s328, %s329
      %s331 = smul.addr %s330, 4
      %s332 = scalar_lea.vmem %s0, %s331
      %s333 = smul.u32 2, %s22
      %s334 = smul.u32 3, %s23
      %s335 = smul.u32 36, %s23
      %p336 = scmp.lt.s32.totalorder %s335, 35
      %s337 = scalar_select %p336, %s335, 35
      %p338 = scmp.lt.s32.totalorder %s21, 0
      %s339 = scalar_select %p338, %s21, 0
      %s340 = sadd.s32 %s339, %s337
      %s341 = smul.addr %s340, 4
      %s342 = scalar_lea.vmem %s1, %s341
      %s343 = smul.u32 36, %s23
      %p344 = scmp.lt.s32.totalorder %s21, 0
      %s345 = scalar_select %p344, %s21, 0
      %s346 = scalar_lea.vmem %s2, %s345
      %p347 = scmp.lt.s32.totalorder %s21, 0
      %s348 = scalar_select %p347, %s21, 0
      %s349 = scalar_lea.vmem %s3, %s348
      %s350 = smul.u32 2, %s22
      %p351 = scmp.lt.s32.totalorder %s350, 3
      %s352 = scalar_select %p351, %s350, 3
      %p353 = scmp.lt.s32.totalorder %s21, 0
      %s354 = scalar_select %p353, %s21, 0
      %s355 = sadd.s32 %s354, %s352
      %s356 = smul.addr %s355, 4
      %s357 = scalar_lea.vmem %s4, %s356
      %s358 = smul.u32 2, %s22
      %s359 = smul.u32 2, %s22
      %p360 = scmp.lt.s32.totalorder %s359, 3
      %s361 = scalar_select %p360, %s359, 3
      %p362 = scmp.lt.s32.totalorder %s21, 0
      %s363 = scalar_select %p362, %s21, 0
      %s364 = sadd.s32 %s363, %s361
      %s365 = smul.addr %s364, 4
      %s366 = scalar_lea.vmem %s5, %s365
      %s367 = smul.u32 2, %s22
      %p369 = scmp.eq.s32.totalorder %s23, 0
      // Predicated region
      $region41: #{_lambda_.15} parent=39 // pred_check
        %p370 = pneg %p369
      $region42: #{_lambda_.15} parent=39 // pred_check_branch
        %372 = sbr.rel (%p370) target = $region44
      $region43: #{_lambda_.15} parent=39 // pred_region
        %373 = vst [vmem:[#allocation2] sm:$0xff] 0.0
        %374 = vst [vmem:[#allocation2 + $0x8] sm:$0xff] 0.0
      $region44: #{_lambda_.15} parent=39 // pred_fallthru
        _
      %v375 = vld [vmem:[#allocation2] sm:$0xff]
      %v376 = vld [vmem:[#allocation2 + $0x8] sm:$0xff]
      %v377 = vld [vmem:[%s332] sm:$0xff]
      %v378 = vld [vmem:[%s332 + $0x8] sm:$0xf]
      %v379 = vld [vmem:[%s332 + $0xc] sm:$0xff]
      %v380 = vld [vmem:[%s332 + $0x14] sm:$0xf]
      %v381 = vld [vmem:[%s342] sm:$0xf]
      %v382 = vld [vmem:[%s342 + $0x4] sm:$0xf]
      %v383 = vld [vmem:[%s342 + $0x8] sm:$0xf]
      %v384 = vld [vmem:[%s342 + $0xc] sm:$0xf]
      %v385 = vld [vmem:[%s342 + $0x10] sm:$0xf]
      %v386 = vld [vmem:[%s342 + $0x14] sm:$0xf]
      %v387 = vld [vmem:[%s342 + $0x18] sm:$0xf]
      %v388 = vld [vmem:[%s342 + $0x1c] sm:$0xf]
      %v389 = vld [vmem:[%s342 + $0x20] sm:$0xf]
      %v390 = vld [vmem:[%s342 + $0x24] sm:$0xf]
      %v391 = vld [vmem:[%s342 + $0x28] sm:$0xf]
      %v392 = vld [vmem:[%s342 + $0x2c] sm:$0xf]
      %v393 = vld [vmem:[%s342 + $0x30] sm:$0xf]
      %v394 = vld [vmem:[%s342 + $0x34] sm:$0xf]
      %v395 = vld [vmem:[%s342 + $0x38] sm:$0xf]
      %v396 = vld [vmem:[%s342 + $0x3c] sm:$0xf]
      %v397 = vld [vmem:[%s342 + $0x40] sm:$0xf]
      %v398 = vld [vmem:[%s342 + $0x44] sm:$0xf]
      %v399 = vld [vmem:[%s342 + $0x48] sm:$0xf]
      %v400 = vld [vmem:[%s342 + $0x4c] sm:$0xf]
      %v401 = vld [vmem:[%s342 + $0x50] sm:$0xf]
      %v402 = vld [vmem:[%s342 + $0x54] sm:$0xf]
      %v403 = vld [vmem:[%s342 + $0x58] sm:$0xf]
      %v404 = vld [vmem:[%s342 + $0x5c] sm:$0xf]
      %v405 = vld [vmem:[%s342 + $0x60] sm:$0xf]
      %v406 = vld [vmem:[%s342 + $0x64] sm:$0xf]
      %v407 = vld [vmem:[%s342 + $0x68] sm:$0xf]
      %v408 = vld [vmem:[%s342 + $0x6c] sm:$0xf]
      %v409 = vld [vmem:[%s342 + $0x70] sm:$0xf]
      %v410 = vld [vmem:[%s342 + $0x74] sm:$0xf]
      %v411 = vld [vmem:[%s342 + $0x78] sm:$0xf]
      %v412 = vld [vmem:[%s342 + $0x7c] sm:$0xf]
      %v413 = vld [vmem:[%s342 + $0x80] sm:$0xf]
      %v414 = vld [vmem:[%s342 + $0x84] sm:$0xf]
      %v415 = vld [vmem:[%s342 + $0x88] sm:$0xf]
      %v416 = vld [vmem:[%s342 + $0x8c] sm:$0xf]
      %v421 = vunpack.c.l.b16 %v377
      %v422 = vunpack.c.h.b16 %v377
      %v423 = vunpack.c.l.b16 %v378
      %v424 = vunpack.c.l.b16 %v379
      %v425 = vunpack.c.h.b16 %v379
      %v426 = vunpack.c.l.b16 %v380
      %v427 = vpack.c.b16 %v424, %v421
      %v428 = vpack.c.b16 %v425, %v422
      %v429 = vpack.c.b16 %v426, %v423
      %v468 = vunpack.c.l.b16 %v381
      %v469 = vunpack.c.l.b16 %v382
      %v470 = vunpack.c.l.b16 %v383
      %v471 = vunpack.c.l.b16 %v384
      %v472 = vunpack.c.l.b16 %v385
      %v473 = vunpack.c.l.b16 %v386
      %v474 = vunpack.c.l.b16 %v387
      %v475 = vunpack.c.l.b16 %v388
      %v476 = vunpack.c.l.b16 %v389
      %v477 = vunpack.c.l.b16 %v390
      %v478 = vunpack.c.l.b16 %v391
      %v479 = vunpack.c.l.b16 %v392
      %v480 = vunpack.c.l.b16 %v393
      %v481 = vunpack.c.l.b16 %v394
      %v482 = vunpack.c.l.b16 %v395
      %v483 = vunpack.c.l.b16 %v396
      %v484 = vunpack.c.l.b16 %v397
      %v485 = vunpack.c.l.b16 %v398
      %v486 = vunpack.c.l.b16 %v399
      %v487 = vunpack.c.l.b16 %v400
      %v488 = vunpack.c.l.b16 %v401
      %v489 = vunpack.c.l.b16 %v402
      %v490 = vunpack.c.l.b16 %v403
      %v491 = vunpack.c.l.b16 %v404
      %v492 = vunpack.c.l.b16 %v405
      %v493 = vunpack.c.l.b16 %v406
      %v494 = vunpack.c.l.b16 %v407
      %v495 = vunpack.c.l.b16 %v408
      %v496 = vunpack.c.l.b16 %v409
      %v497 = vunpack.c.l.b16 %v410
      %v498 = vunpack.c.l.b16 %v411
      %v499 = vunpack.c.l.b16 %v412
      %v500 = vunpack.c.l.b16 %v413
      %v501 = vunpack.c.l.b16 %v414
      %v502 = vunpack.c.l.b16 %v415
      %v503 = vunpack.c.l.b16 %v416
      %v504 = vpack.c.b16 %v469, %v468
      %v505 = vpack.c.b16 %v471, %v470
      %v506 = vpack.c.b16 %v473, %v472
      %v507 = vpack.c.b16 %v475, %v474
      %v508 = vpack.c.b16 %v477, %v476
      %v509 = vpack.c.b16 %v479, %v478
      %v510 = vpack.c.b16 %v481, %v480
      %v511 = vpack.c.b16 %v483, %v482
      %v512 = vpack.c.b16 %v485, %v484
      %v513 = vpack.c.b16 %v487, %v486
      %v514 = vpack.c.b16 %v489, %v488
      %v515 = vpack.c.b16 %v491, %v490
      %v516 = vpack.c.b16 %v493, %v492
      %v517 = vpack.c.b16 %v495, %v494
      %v518 = vpack.c.b16 %v497, %v496
      %v519 = vpack.c.b16 %v499, %v498
      %v520 = vpack.c.b16 %v501, %v500
      %v521 = vpack.c.b16 %v503, %v502
      %vm540 = vcmask 261120
      %v542 = vsel %vm540, %v429, 0
      %544 = vmatprep.subr.bf16.mxu0 0
      %545 = vmatpush1.bf16.msra.mxu0 %v504
      %546 = vmatprep.subr.bf16.mxu0 0
      %547 = vmatpush1.bf16.msra.mxu0 %v505
      %548 = vmatprep.subr.bf16.mxu0 0
      %549 = vmatpush1.bf16.msra.mxu0 %v506
      %550 = vmatprep.subr.bf16.mxu0 0
      %551 = vmatpush1.bf16.msra.mxu0 %v507
      %552 = vmatprep.subr.bf16.mxu0 0
      %553 = vmatpush1.bf16.msra.mxu0 %v508
      %554 = vmatprep.subr.bf16.mxu0 0
      %555 = vmatpush1.bf16.msra.mxu0 %v509
      %556 = vmatprep.subr.bf16.mxu0 0
      %557 = vmatpush1.bf16.msra.mxu0 %v510
      %558 = vmatprep.subr.bf16.mxu0 0
      %559 = vmatpush1.bf16.msra.mxu0 %v511
      %560 = vmatprep.subr.bf16.mxu0 0
      %561 = vmatpush1.bf16.msra.mxu0 %v512
      %562 = vmatprep.subr.bf16.mxu0 0
      %563 = vmatpush1.bf16.msra.mxu0 %v513
      %564 = vmatprep.subr.bf16.mxu0 0
      %565 = vmatpush1.bf16.msra.mxu0 %v514
      %566 = vmatprep.subr.bf16.mxu0 0
      %567 = vmatpush1.bf16.msra.mxu0 %v515
      %568 = vmatprep.subr.bf16.mxu0 0
      %569 = vmatpush1.bf16.msra.mxu0 %v516
      %570 = vmatprep.subr.bf16.mxu0 0
      %571 = vmatpush1.bf16.msra.mxu0 %v517
      %572 = vmatprep.subr.bf16.mxu0 0
      %573 = vmatpush1.bf16.msra.mxu0 %v518
      %574 = vmatprep.subr.bf16.mxu0 0
      %575 = vmatpush1.bf16.msra.mxu0 %v519
      %576 = vmatprep.mubr.bf16.mxu0 %v428
      %577 = vmatmul.mubr.bf16.gmra.mrb[0].mxu0 %v427
      %v578 = vpop.f32.mrb[0].mxu0
      %v579 = vadd.f32 0.0, %v578
      %v580 = vpop.f32.mrb[0].mxu0
      %v581 = vpop.f32.mrb[0].mxu0
      %v582 = vadd.f32 0.0, %v581
      %v583 = vpop.f32.mrb[0].mxu0
      %584 = vdwg.mxu0
      %585 = vmatprep.subr.bf16.mxu0 0
      %586 = vmatpush1.bf16.msra.mxu0 %v520
      %587 = vmatprep.subr.bf16.mxu0 0
      %588 = vmatpush1.bf16.msra.mxu0 %v521
      %589 = vmatprep.subr.bf16.mxu0 0
      %590 = vmatpush1.bf16.msra.mxu0 0
      %591 = vmatprep.subr.bf16.mxu0 0
      %592 = vmatpush1.bf16.msra.mxu0 0
      %593 = vmatprep.subr.bf16.mxu0 0
      %594 = vmatpush1.bf16.msra.mxu0 0
      %595 = vmatprep.subr.bf16.mxu0 0
      %596 = vmatpush1.bf16.msra.mxu0 0
      %597 = vmatprep.subr.bf16.mxu0 0
      %598 = vmatpush1.bf16.msra.mxu0 0
      %599 = vmatprep.subr.bf16.mxu0 0
      %600 = vmatpush1.bf16.msra.mxu0 0
      %601 = vmatprep.subr.bf16.mxu0 0
      %602 = vmatpush1.bf16.msra.mxu0 0
      %603 = vmatprep.subr.bf16.mxu0 0
      %604 = vmatpush1.bf16.msra.mxu0 0
      %605 = vmatprep.subr.bf16.mxu0 0
      %606 = vmatpush1.bf16.msra.mxu0 0
      %607 = vmatprep.subr.bf16.mxu0 0
      %608 = vmatpush1.bf16.msra.mxu0 0
      %609 = vmatprep.subr.bf16.mxu0 0
      %610 = vmatpush1.bf16.msra.mxu0 0
      %611 = vmatprep.subr.bf16.mxu0 0
      %612 = vmatpush1.bf16.msra.mxu0 0
      %613 = vmatprep.subr.bf16.mxu0 0
      %614 = vmatpush1.bf16.msra.mxu0 0
      %615 = vmatprep.subr.bf16.mxu0 0
      %616 = vmatpush1.bf16.msra.mxu0 0
      %617 = vmatprep.mubr.bf16.mxu0 0
      %618 = vmatmul.mubr.bf16.gmra.mrb[0].mxu0 %v542
      %v619 = vpop.f32.mrb[0].mxu0
      %v620 = vadd.f32 %v579, %v619
      %v621 = vpop.f32.mrb[0].mxu0
      %v622 = vpop.f32.mrb[0].mxu0
      %v623 = vadd.f32 %v582, %v622
      %v624 = vpop.f32.mrb[0].mxu0
      %625 = vdwg.mxu0
      %v626 = vadd.f32 %v375, %v620
      %v627 = vadd.f32 %v376, %v623
      %628 = vst [vmem:[#allocation2] sm:$0xff] %v626
      %629 = vst [vmem:[#allocation2 + $0x8] sm:$0xff] %v627
      // Predicated region
      $region45: #{_lambda_.15} parent=39 // pred_check
        %p630 = pneg %p369
      $region46: #{_lambda_.15} parent=39 // pred_check_branch
        %632 = sbr.rel (%p630) target = $region48
      $region47: #{_lambda_.15} parent=39 // pred_region
        %v633 = vld [vmem:[#allocation2] sm:$0xff]
        %v634 = vld [vmem:[#allocation2 + $0x8] sm:$0xff]
        %v635 = vld [vmem:[%s346] sm:$0x1]
        %v637 = vlaneseq
        %v638 = vshrl.u32 %v637, 7
        %v639 = vsub.s32 0, %v638
        %v640 = vrot.slane %v635, %v639
        %v642 = vmul.f32 %v633, %v640
        %v643 = vmul.f32 %v634, %v640
        %v644 = vld [vmem:[%s349] sm:$0x1]
        %v646 = vlaneseq
        %v647 = vshrl.u32 %v646, 7
        %v648 = vsub.s32 0, %v647
        %v649 = vrot.slane %v644, %v648
        %v651 = vadd.f32 %v642, %v649
        %v652 = vadd.f32 %v643, %v649
        %v653 = vld [vmem:[%s357] sm:$0xf]
        %v654 = vld [vmem:[%s357 + $0x4] sm:$0xf]
        %v655 = vunpack.c.l.bf16 %v653
        %v656 = vunpack.c.l.bf16 %v654
        %v657 = vadd.f32 %v651, %v655
        %v658 = vadd.f32 %v652, %v656
        %v659 = vmax.f32 %v657, 0.0
        %v660 = vmax.f32 %v658, 0.0
        %v661 = vpack.c.bf16 %v660, %v659
        %v663 = vunpack.c.l.b16 %v661
        %v664 = vunpack.c.h.b16 %v661
        %v665 = vpack.c.b16 %v663, %v663
        %v666 = vpack.c.b16 %v664, %v664
        %669 = vst [vmem:[%s366] sm:$0xf] %v665
        %670 = vst [vmem:[%s366 + $0x4] sm:$0xf] %v666
      $region48: #{_lambda_.15} parent=39 // pred_fallthru
        _
      %s671 = smul.u32 2, %s22
      %p672 = scmp.lt.s32.totalorder %s671, 3
      %s673 = scalar_select %p672, %s671, 3
      %p674 = scmp.lt.s32.totalorder %s21, 0
      %s675 = scalar_select %p674, %s21, 0
      %s676 = sadd.s32 %s675, %s673
      %s677 = smul.addr %s676, 4
      %s678 = scalar_lea.vmem %s5, %s677
      // Predicated region
      $region49: #{_lambda_.15} parent=39 // pred_check
        %p679 = pneg %p191
      $region50: #{_lambda_.15} parent=39 // pred_check_branch
        %681 = sbr.rel (%p679) target = $region52
      $region51: #{_lambda_.15} parent=39 // pred_region
        %s682 = smul.u32 2, %s22
      $region52: #{_lambda_.15} parent=39 // pred_fallthru
        _
    $region40: #{_lambda_.15} parent=5 // pred_fallthru
      _
    %p683 = scmp.le.s32.totalorder 2, %s11
    // Predicated region
    $region53: #{_lambda_.15} parent=5 // pred_check
      %p684 = pneg %p683
    $region54: #{_lambda_.15} parent=5 // pred_check_branch
      %686 = sbr.rel (%p684) target = $region56
    $region55: #{_lambda_.15} parent=5 // pred_region
      %s687 = ssub.s32 %s11, 2
      // Predicated region
      $region57: #{_lambda_.15} parent=55 // pred_check
        %p688 = pneg %p197
      $region58: #{_lambda_.15} parent=55 // pred_check_branch
        %690 = sbr.rel (%p688) target = $region60
      $region59: #{_lambda_.15} parent=55 // pred_region
        %s691 = smul.u32 2, %s25
        %p692 = scmp.lt.s32.totalorder %s691, 3
        %s693 = scalar_select %p692, %s691, 3
        %p694 = scmp.lt.s32.totalorder %s24, 0
        %s695 = scalar_select %p694, %s24, 0
        %s696 = sadd.s32 %s695, %s693
        %s697 = smul.addr %s696, 4
        %s698 = scalar_lea.vmem %s5, %s697
      $region60: #{_lambda_.15} parent=55 // pred_fallthru
        _
    $region56: #{_lambda_.15} parent=5 // pred_fallthru
      _
  $region6: #{_lambda_.15} parent=0 // loop_footer
    %s15 = sadd.s32 1, %s11
  $region7: #{_lambda_.15} parent=0 // loop_footer_branch
    %10 = sbr.rel target = $region3
  $region8: #{_lambda_.15} parent=0 // loop_exit
    _

// kernel: _lambda_.14
$region0: #{_lambda_.14}
  #allocation0 [shape = 'u32[]', space=smem, size = 0x4, offset = 0x4, fixed_abs, tag = 'smem constant byte address 0x4 - core index']
  #allocation1 [shape = 'u32[144,128]{1,0:T(1,128)}', space=vmem, size = 0x12000, scoped, tag = 'internal scratch']
  #allocation2 [shape = 'f32[16,128]{1,0:T(8,128)}', space=vmem, size = 0x2000, scoped, tag = 'scratch operand']
  %s0 = inlined_call_operand.vmem [shape: bf16[32,288], index: 0, kind: input, shape index: {}]
  %s1 = inlined_call_operand.vmem [shape: bf16[288,128], index: 1, kind: input, shape index: {}]
  %s2 = inlined_call_operand.vmem [shape: f32[1,128], index: 2, kind: input, shape index: {}]
  %s3 = inlined_call_operand.vmem [shape: f32[1,128], index: 3, kind: input, shape index: {}]
  %s4 = inlined_call_operand.vmem [shape: bf16[32,128], index: 4, kind: output, shape index: {}]
  %s5 = sld [smem:[#allocation0]]
  $region57: #{_lambda_.14} parent=0
    _
  %s7 = ssub.s32 1, %s5
  %s8 = scalar_select 0, %s7, %s5
  loop: start=0, step=1, limit=4
  $region2: #{_lambda_.14} parent=0 // loop_pre_header
    _
  $region3: #{_lambda_.14} parent=0 // loop_header
    %s10 = sphi 0, %s14
    %p11 = scmp.ge.s32.totalorder %s10, 4
    %s17 = sphi 0, %s36
    %s18 = sphi 0, %s32
    %s19 = sphi 0, %s28
    %s20 = sphi 0, %s17
    %s21 = sphi 0, %s18
    %s22 = sphi 0, %s19
    %s23 = sphi 0, %s20
    %s24 = sphi 0, %s21
    %s25 = sphi 0, %s22
    %s41 = sphi 0, %s43
    %s44 = sphi 0, %s41
    %s45 = sphi 0, %s44
    %s61 = sphi 0, %s45
    %s69 = sphi 0, %s71
    %s72 = sphi 0, %s69
    %s73 = sphi 0, %s72
    %s89 = sphi 0, %s73
    %s95 = sphi 0, %s97
    %s98 = sphi 0, %s95
    %s99 = sphi 0, %s98
    %s115 = sphi 0, %s99
    %s121 = sphi 0, %s123
    %s124 = sphi 0, %s121
    %s125 = sphi 0, %s124
    %s141 = sphi 0, %s125
    %s149 = sphi 0, %s151
    %s152 = sphi 0, %s149
    %s153 = sphi 0, %s152
    %s169 = sphi 0, %s153
  $region4: #{_lambda_.14} parent=0 // loop_header_branch
    %13 = sbr.rel (%p11) target = $region8
  $region5: #{_lambda_.14} parent=0 // loop_body
    %s15 = ssub.s32 %s10, 1
    %s16 = ssub.s32 %s10, 2
    %s26 = sadd.s32 1, %s19
    %p27 = scmp.ge.s32.totalorder %s26, 1
    %s28 = scalar_select %p27, 0, %s26
    %s29 = sadd.s32 1, %s18
    %s30 = scalar_select %p27, %s29, %s18
    %p31 = scmp.ge.s32.totalorder %s30, 2
    %s32 = scalar_select %p31, 0, %s30
    %s33 = sadd.s32 1, %s17
    %s34 = scalar_select %p31, %s33, %s17
    %p35 = scmp.ge.s32.totalorder %s34, 1
    %s36 = scalar_select %p35, 0, %s34
    %s37 = ssub.s32 %s18, %s32
    %s38 = ssub.s32 %s19, %s28
    %s39 = sor.u32 %s37, %s38
    %p40 = scmp.eq.s32.totalorder %s39, 0
    %s42 = sadd.s32 %s41, 1
    %s43 = scalar_select %p40, %s41, %s42
    %p46 = pneg %p40
    %p47 = scmp.eq.s32.totalorder %s10, 1
    %p48 = por %p46, %p47
    %p49 = scmp.ne.s32.totalorder %s41, %s44
    %p50 = scmp.eq.s32.totalorder %s10, 0
    %p51 = por %p49, %p50
    %p52 = scmp.ne.s32.totalorder %s41, %s44
    %p53 = scmp.eq.s32.totalorder %s15, 1
    %p54 = por %p52, %p53
    %p55 = scmp.ne.s32.totalorder %s44, %s45
    %p56 = scmp.eq.s32.totalorder %s15, 0
    %p57 = por %p55, %p56
    %p58 = scmp.ne.s32.totalorder %s44, %s45
    %p59 = scmp.eq.s32.totalorder %s16, 1
    %p60 = por %p58, %p59
    %p62 = scmp.ne.s32.totalorder %s45, %s61
    %p63 = scmp.eq.s32.totalorder %s16, 0
    %p64 = por %p62, %p63
    %s65 = ssub.s32 %s19, %s28
    %s66 = ssub.s32 %s17, %s36
    %s67 = sor.u32 %s65, %s66
    %p68 = scmp.eq.s32.totalorder %s67, 0
    %s70 = sadd.s32 %s69, 1
    %s71 = scalar_select %p68, %s69, %s70
    %p74 = pneg %p68
    %p75 = scmp.eq.s32.totalorder %s10, 1
    %p76 = por %p74, %p75
    %p77 = scmp.ne.s32.totalorder %s69, %s72
    %p78 = scmp.eq.s32.totalorder %s10, 0
    %p79 = por %p77, %p78
    %p80 = scmp.ne.s32.totalorder %s69, %s72
    %p81 = scmp.eq.s32.totalorder %s15, 1
    %p82 = por %p80, %p81
    %p83 = scmp.ne.s32.totalorder %s72, %s73
    %p84 = scmp.eq.s32.totalorder %s15, 0
    %p85 = por %p83, %p84
    %p86 = scmp.ne.s32.totalorder %s72, %s73
    %p87 = scmp.eq.s32.totalorder %s16, 1
    %p88 = por %p86, %p87
    %p90 = scmp.ne.s32.totalorder %s73, %s89
    %p91 = scmp.eq.s32.totalorder %s16, 0
    %p92 = por %p90, %p91
    %s93 = ssub.s32 %s17, %s36
    %p94 = scmp.eq.s32.totalorder %s93, 0
    %s96 = sadd.s32 %s95, 1
    %s97 = scalar_select %p94, %s95, %s96
    %p100 = pneg %p94
    %p101 = scmp.eq.s32.totalorder %s10, 1
    %p102 = por %p100, %p101
    %p103 = scmp.ne.s32.totalorder %s95, %s98
    %p104 = scmp.eq.s32.totalorder %s10, 0
    %p105 = por %p103, %p104
    %p106 = scmp.ne.s32.totalorder %s95, %s98
    %p107 = scmp.eq.s32.totalorder %s15, 1
    %p108 = por %p106, %p107
    %p109 = scmp.ne.s32.totalorder %s98, %s99
    %p110 = scmp.eq.s32.totalorder %s15, 0
    %p111 = por %p109, %p110
    %p112 = scmp.ne.s32.totalorder %s98, %s99
    %p113 = scmp.eq.s32.totalorder %s16, 1
    %p114 = por %p112, %p113
    %p116 = scmp.ne.s32.totalorder %s99, %s115
    %p117 = scmp.eq.s32.totalorder %s16, 0
    %p118 = por %p116, %p117
    %s119 = ssub.s32 %s17, %s36
    %p120 = scmp.eq.s32.totalorder %s119, 0
    %s122 = sadd.s32 %s121, 1
    %s123 = scalar_select %p120, %s121, %s122
    %p126 = pneg %p120
    %p127 = scmp.eq.s32.totalorder %s10, 1
    %p128 = por %p126, %p127
    %p129 = scmp.ne.s32.totalorder %s121, %s124
    %p130 = scmp.eq.s32.totalorder %s10, 0
    %p131 = por %p129, %p130
    %p132 = scmp.ne.s32.totalorder %s121, %s124
    %p133 = scmp.eq.s32.totalorder %s15, 1
    %p134 = por %p132, %p133
    %p135 = scmp.ne.s32.totalorder %s124, %s125
    %p136 = scmp.eq.s32.totalorder %s15, 0
    %p137 = por %p135, %p136
    %p138 = scmp.ne.s32.totalorder %s124, %s125
    %p139 = scmp.eq.s32.totalorder %s16, 1
    %p140 = por %p138, %p139
    %p142 = scmp.ne.s32.totalorder %s125, %s141
    %p143 = scmp.eq.s32.totalorder %s16, 0
    %p144 = por %p142, %p143
    %s145 = ssub.s32 %s18, %s32
    %s146 = ssub.s32 %s17, %s36
    %s147 = sor.u32 %s145, %s146
    %p148 = scmp.eq.s32.totalorder %s147, 0
    %s150 = sadd.s32 %s149, 1
    %s151 = scalar_select %p148, %s149, %s150
    %p154 = pneg %p148
    %p155 = scmp.eq.s32.totalorder %s10, 1
    %p156 = por %p154, %p155
    %p157 = scmp.ne.s32.totalorder %s149, %s152
    %p158 = scmp.eq.s32.totalorder %s10, 0
    %p159 = por %p157, %p158
    %p160 = scmp.ne.s32.totalorder %s149, %s152
    %p161 = scmp.eq.s32.totalorder %s15, 1
    %p162 = por %p160, %p161
    %p163 = scmp.ne.s32.totalorder %s152, %s153
    %p164 = scmp.eq.s32.totalorder %s15, 0
    %p165 = por %p163, %p164
    %p166 = scmp.ne.s32.totalorder %s152, %s153
    %p167 = scmp.eq.s32.totalorder %s16, 1
    %p168 = por %p166, %p167
    %p170 = scmp.ne.s32.totalorder %s153, %s169
    %p171 = scmp.eq.s32.totalorder %s16, 0
    %p172 = por %p170, %p171
    %p173 = scmp.le.s32.totalorder 1, %s10
    %p174 = scmp.lt.s32.totalorder %s10, 3
    %p175 = pnand %p173, %p174
    %p176 = pneg %p175
    // Predicated region
    $region9: #{_lambda_.14} parent=5 // pred_check
      _
    $region10: #{_lambda_.14} parent=5 // pred_check_branch
      %178 = sbr.rel (%p175) target = $region12
    $region11: #{_lambda_.14} parent=5 // pred_region
      %s179 = ssub.s32 %s10, 1
      // Predicated region
      $region13: #{_lambda_.14} parent=11 // pred_check
        %p180 = pneg %p85
      $region14: #{_lambda_.14} parent=11 // pred_check_branch
        %182 = sbr.rel (%p180) target = $region16
      $region15: #{_lambda_.14} parent=11 // pred_region
        %s183 = smul.u32 36, %s22
        %p184 = scmp.lt.s32.totalorder %s183, 35
        %s185 = scalar_select %p184, %s183, 35
        %p186 = scmp.lt.s32.totalorder %s20, 0
        %s187 = scalar_select %p186, %s20, 0
        %s188 = sadd.s32 %s187, %s185
        %s189 = smul.addr %s188, 4
        %s190 = scalar_lea.vmem %s1, %s189
        %s191 = smul.u32 36, %s22
      $region16: #{_lambda_.14} parent=11 // pred_fallthru
        _
      // Predicated region
      $region17: #{_lambda_.14} parent=11 // pred_check
        %p192 = pneg %p111
      $region18: #{_lambda_.14} parent=11 // pred_check_branch
        %194 = sbr.rel (%p192) target = $region20
      $region19: #{_lambda_.14} parent=11 // pred_region
        %p195 = scmp.lt.s32.totalorder %s20, 0
        %s196 = scalar_select %p195, %s20, 0
        %s197 = scalar_lea.vmem %s2, %s196
      $region20: #{_lambda_.14} parent=11 // pred_fallthru
        _
      // Predicated region
      $region21: #{_lambda_.14} parent=11 // pred_check
        %p198 = pneg %p137
      $region22: #{_lambda_.14} parent=11 // pred_check_branch
        %200 = sbr.rel (%p198) target = $region24
      $region23: #{_lambda_.14} parent=11 // pred_region
        %p201 = scmp.lt.s32.totalorder %s20, 0
        %s202 = scalar_select %p201, %s20, 0
        %s203 = scalar_lea.vmem %s3, %s202
      $region24: #{_lambda_.14} parent=11 // pred_fallthru
        _
    $region12: #{_lambda_.14} parent=5 // pred_fallthru
      _
    %p204 = scmp.lt.s32.totalorder %s10, 2
    // Predicated region
    $region25: #{_lambda_.14} parent=5 // pred_check
      %p205 = pneg %p204
    $region26: #{_lambda_.14} parent=5 // pred_check_branch
      %207 = sbr.rel (%p205) target = $region28
    $region27: #{_lambda_.14} parent=5 // pred_region
      // Predicated region
      $region29: #{_lambda_.14} parent=27 // pred_check
        %p208 = pneg %p51
      $region30: #{_lambda_.14} parent=27 // pred_check_branch
        %210 = sbr.rel (%p208) target = $region32
      $region31: #{_lambda_.14} parent=27 // pred_region
        %s211 = smul.u32 2, %s18
        %s212 = smul.u32 3, %s19
        %p213 = scmp.lt.s32.totalorder %s211, 3
        %s214 = scalar_select %p213, %s211, 3
        %p215 = scmp.lt.s32.totalorder %s212, 2
        %s216 = scalar_select %p215, %s212, 2
        %s217 = smul.addr %s214, 3
        %s218 = sadd.s32 %s216, %s217
        %s219 = smul.addr %s218, 4
        %s220 = scalar_lea.vmem %s0, %s219
        %s221 = smul.u32 2, %s18
        %s222 = smul.u32 3, %s19
      $region32: #{_lambda_.14} parent=27 // pred_fallthru
        _
    $region28: #{_lambda_.14} parent=5 // pred_fallthru
      _
    %p223 = scmp.le.s32.totalorder 1, %s10
    %p224 = scmp.lt.s32.totalorder %s10, 3
    %p225 = pnand %p223, %p224
    %p226 = pneg %p225
    // Predicated region
    $region33: #{_lambda_.14} parent=5 // pred_check
      _
    $region34: #{_lambda_.14} parent=5 // pred_check_branch
      %228 = sbr.rel (%p225) target = $region36
    $region35: #{_lambda_.14} parent=5 // pred_region
      %s229 = ssub.s32 %s10, 1
      %s230 = smul.u32 2, %s21
      %s231 = smul.u32 3, %s22
      %p232 = scmp.lt.s32.totalorder %s230, 3
      %s233 = scalar_select %p232, %s230, 3
      %p234 = scmp.lt.s32.totalorder %s231, 2
      %s235 = scalar_select %p234, %s231, 2
      %s236 = smul.addr %s233, 3
      %s237 = sadd.s32 %s235, %s236
      %s238 = smul.addr %s237, 4
      %s239 = scalar_lea.vmem %s0, %s238
      %p240 = pneg %p57
      %p241 = pneg %p54
      %s242 = smul.u32 36, %s22
      %p243 = scmp.lt.s32.totalorder %s242, 35
      %s244 = scalar_select %p243, %s242, 35
      %p245 = scmp.lt.s32.totalorder %s20, 0
      %s246 = scalar_select %p245, %s20, 0
      %s247 = sadd.s32 %s246, %s244
      %s248 = smul.addr %s247, 4
      %s249 = scalar_lea.vmem %s1, %s248
      %p250 = pneg %p85
      %p251 = pneg %p82
      %p252 = scmp.lt.s32.totalorder %s20, 0
      %s253 = scalar_select %p252, %s20, 0
      %s254 = scalar_lea.vmem %s2, %s253
      %p255 = pneg %p111
      %p256 = pneg %p108
      %p257 = scmp.lt.s32.totalorder %s20, 0
      %s258 = scalar_select %p257, %s20, 0
      %s259 = scalar_lea.vmem %s3, %s258
      %p260 = pneg %p137
      %p261 = pneg %p134
      %p262 = pneg %p165
      %p263 = pneg %p162
      %s264 = smul.u32 2, %s21
      %p265 = scmp.lt.s32.totalorder %s264, 3
      %s266 = scalar_select %p265, %s264, 3
      %p267 = scmp.lt.s32.totalorder %s20, 0
      %s268 = scalar_select %p267, %s20, 0
      %s269 = sadd.s32 %s268, %s266
      %s270 = smul.addr %s269, 4
      %s271 = scalar_lea.vmem %s4, %s270
      %s272 = smul.u32 2, %s21
      %s273 = smul.u32 3, %s22
      %p274 = scmp.lt.s32.totalorder %s272, 3
      %s275 = scalar_select %p274, %s272, 3
      %p276 = scmp.lt.s32.totalorder %s273, 2
      %s277 = scalar_select %p276, %s273, 2
      %s278 = smul.addr %s275, 3
      %s279 = sadd.s32 %s277, %s278
      %s280 = smul.addr %s279, 4
      %s281 = scalar_lea.vmem %s0, %s280
      %s282 = smul.u32 2, %s21
      %s283 = smul.u32 3, %s22
      %s284 = smul.u32 36, %s22
      %p285 = scmp.lt.s32.totalorder %s284, 35
      %s286 = scalar_select %p285, %s284, 35
      %p287 = scmp.lt.s32.totalorder %s20, 0
      %s288 = scalar_select %p287, %s20, 0
      %s289 = sadd.s32 %s288, %s286
      %s290 = smul.addr %s289, 4
      %s291 = scalar_lea.vmem %s1, %s290
      %s292 = smul.u32 36, %s22
      %p293 = scmp.lt.s32.totalorder %s20, 0
      %s294 = scalar_select %p293, %s20, 0
      %s295 = scalar_lea.vmem %s2, %s294
      %p296 = scmp.lt.s32.totalorder %s20, 0
      %s297 = scalar_select %p296, %s20, 0
      %s298 = scalar_lea.vmem %s3, %s297
      %s299 = smul.u32 2, %s21
      %p300 = scmp.lt.s32.totalorder %s299, 3
      %s301 = scalar_select %p300, %s299, 3
      %p302 = scmp.lt.s32.totalorder %s20, 0
      %s303 = scalar_select %p302, %s20, 0
      %s304 = sadd.s32 %s303, %s301
      %s305 = smul.addr %s304, 4
      %s306 = scalar_lea.vmem %s4, %s305
      %s307 = smul.u32 2, %s21
      %p309 = scmp.eq.s32.totalorder %s22, 0
      // Predicated region
      $region37: #{_lambda_.14} parent=35 // pred_check
        %p310 = pneg %p309
      $region38: #{_lambda_.14} parent=35 // pred_check_branch
        %312 = sbr.rel (%p310) target = $region40
      $region39: #{_lambda_.14} parent=35 // pred_region
        %313 = vst [vmem:[#allocation2] sm:$0xff] 0.0
        %314 = vst [vmem:[#allocation2 + $0x8] sm:$0xff] 0.0
      $region40: #{_lambda_.14} parent=35 // pred_fallthru
        _
      %v315 = vld [vmem:[#allocation2] sm:$0xff]
      %v316 = vld [vmem:[#allocation2 + $0x8] sm:$0xff]
      %v317 = vld [vmem:[%s281] sm:$0xff]
      %v318 = vld [vmem:[%s281 + $0x8] sm:$0xf]
      %v319 = vld [vmem:[%s281 + $0xc] sm:$0xff]
      %v320 = vld [vmem:[%s281 + $0x14] sm:$0xf]
      %v321 = vld [vmem:[%s291] sm:$0xf]
      %v322 = vld [vmem:[%s291 + $0x4] sm:$0xf]
      %v323 = vld [vmem:[%s291 + $0x8] sm:$0xf]
      %v324 = vld [vmem:[%s291 + $0xc] sm:$0xf]
      %v325 = vld [vmem:[%s291 + $0x10] sm:$0xf]
      %v326 = vld [vmem:[%s291 + $0x14] sm:$0xf]
      %v327 = vld [vmem:[%s291 + $0x18] sm:$0xf]
      %v328 = vld [vmem:[%s291 + $0x1c] sm:$0xf]
      %v329 = vld [vmem:[%s291 + $0x20] sm:$0xf]
      %v330 = vld [vmem:[%s291 + $0x24] sm:$0xf]
      %v331 = vld [vmem:[%s291 + $0x28] sm:$0xf]
      %v332 = vld [vmem:[%s291 + $0x2c] sm:$0xf]
      %v333 = vld [vmem:[%s291 + $0x30] sm:$0xf]
      %v334 = vld [vmem:[%s291 + $0x34] sm:$0xf]
      %v335 = vld [vmem:[%s291 + $0x38] sm:$0xf]
      %v336 = vld [vmem:[%s291 + $0x3c] sm:$0xf]
      %v337 = vld [vmem:[%s291 + $0x40] sm:$0xf]
      %v338 = vld [vmem:[%s291 + $0x44] sm:$0xf]
      %v339 = vld [vmem:[%s291 + $0x48] sm:$0xf]
      %v340 = vld [vmem:[%s291 + $0x4c] sm:$0xf]
      %v341 = vld [vmem:[%s291 + $0x50] sm:$0xf]
      %v342 = vld [vmem:[%s291 + $0x54] sm:$0xf]
      %v343 = vld [vmem:[%s291 + $0x58] sm:$0xf]
      %v344 = vld [vmem:[%s291 + $0x5c] sm:$0xf]
      %v345 = vld [vmem:[%s291 + $0x60] sm:$0xf]
      %v346 = vld [vmem:[%s291 + $0x64] sm:$0xf]
      %v347 = vld [vmem:[%s291 + $0x68] sm:$0xf]
      %v348 = vld [vmem:[%s291 + $0x6c] sm:$0xf]
      %v349 = vld [vmem:[%s291 + $0x70] sm:$0xf]
      %v350 = vld [vmem:[%s291 + $0x74] sm:$0xf]
      %v351 = vld [vmem:[%s291 + $0x78] sm:$0xf]
      %v352 = vld [vmem:[%s291 + $0x7c] sm:$0xf]
      %v353 = vld [vmem:[%s291 + $0x80] sm:$0xf]
      %v354 = vld [vmem:[%s291 + $0x84] sm:$0xf]
      %v355 = vld [vmem:[%s291 + $0x88] sm:$0xf]
      %v356 = vld [vmem:[%s291 + $0x8c] sm:$0xf]
      %v361 = vunpack.c.l.b16 %v317
      %v362 = vunpack.c.h.b16 %v317
      %v363 = vunpack.c.l.b16 %v318
      %v364 = vunpack.c.l.b16 %v319
      %v365 = vunpack.c.h.b16 %v319
      %v366 = vunpack.c.l.b16 %v320
      %v367 = vpack.c.b16 %v364, %v361
      %v368 = vpack.c.b16 %v365, %v362
      %v369 = vpack.c.b16 %v366, %v363
      %v408 = vunpack.c.l.b16 %v321
      %v409 = vunpack.c.l.b16 %v322
      %v410 = vunpack.c.l.b16 %v323
      %v411 = vunpack.c.l.b16 %v324
      %v412 = vunpack.c.l.b16 %v325
      %v413 = vunpack.c.l.b16 %v326
      %v414 = vunpack.c.l.b16 %v327
      %v415 = vunpack.c.l.b16 %v328
      %v416 = vunpack.c.l.b16 %v329
      %v417 = vunpack.c.l.b16 %v330
      %v418 = vunpack.c.l.b16 %v331
      %v419 = vunpack.c.l.b16 %v332
      %v420 = vunpack.c.l.b16 %v333
      %v421 = vunpack.c.l.b16 %v334
      %v422 = vunpack.c.l.b16 %v335
      %v423 = vunpack.c.l.b16 %v336
      %v424 = vunpack.c.l.b16 %v337
      %v425 = vunpack.c.l.b16 %v338
      %v426 = vunpack.c.l.b16 %v339
      %v427 = vunpack.c.l.b16 %v340
      %v428 = vunpack.c.l.b16 %v341
      %v429 = vunpack.c.l.b16 %v342
      %v430 = vunpack.c.l.b16 %v343
      %v431 = vunpack.c.l.b16 %v344
      %v432 = vunpack.c.l.b16 %v345
      %v433 = vunpack.c.l.b16 %v346
      %v434 = vunpack.c.l.b16 %v347
      %v435 = vunpack.c.l.b16 %v348
      %v436 = vunpack.c.l.b16 %v349
      %v437 = vunpack.c.l.b16 %v350
      %v438 = vunpack.c.l.b16 %v351
      %v439 = vunpack.c.l.b16 %v352
      %v440 = vunpack.c.l.b16 %v353
      %v441 = vunpack.c.l.b16 %v354
      %v442 = vunpack.c.l.b16 %v355
      %v443 = vunpack.c.l.b16 %v356
      %v444 = vpack.c.b16 %v409, %v408
      %v445 = vpack.c.b16 %v411, %v410
      %v446 = vpack.c.b16 %v413, %v412
      %v447 = vpack.c.b16 %v415, %v414
      %v448 = vpack.c.b16 %v417, %v416
      %v449 = vpack.c.b16 %v419, %v418
      %v450 = vpack.c.b16 %v421, %v420
      %v451 = vpack.c.b16 %v423, %v422
      %v452 = vpack.c.b16 %v425, %v424
      %v453 = vpack.c.b16 %v427, %v426
      %v454 = vpack.c.b16 %v429, %v428
      %v455 = vpack.c.b16 %v431, %v430
      %v456 = vpack.c.b16 %v433, %v432
      %v457 = vpack.c.b16 %v435, %v434
      %v458 = vpack.c.b16 %v437, %v436
      %v459 = vpack.c.b16 %v439, %v438
      %v460 = vpack.c.b16 %v441, %v440
      %v461 = vpack.c.b16 %v443, %v442
      %vm480 = vcmask 261120
      %v482 = vsel %vm480, %v369, 0
      %484 = vmatprep.subr.bf16.mxu0 0
      %485 = vmatpush1.bf16.msra.mxu0 %v444
      %486 = vmatprep.subr.bf16.mxu0 0
      %487 = vmatpush1.bf16.msra.mxu0 %v445
      %488 = vmatprep.subr.bf16.mxu0 0
      %489 = vmatpush1.bf16.msra.mxu0 %v446
      %490 = vmatprep.subr.bf16.mxu0 0
      %491 = vmatpush1.bf16.msra.mxu0 %v447
      %492 = vmatprep.subr.bf16.mxu0 0
      %493 = vmatpush1.bf16.msra.mxu0 %v448
      %494 = vmatprep.subr.bf16.mxu0 0
      %495 = vmatpush1.bf16.msra.mxu0 %v449
      %496 = vmatprep.subr.bf16.mxu0 0
      %497 = vmatpush1.bf16.msra.mxu0 %v450
      %498 = vmatprep.subr.bf16.mxu0 0
      %499 = vmatpush1.bf16.msra.mxu0 %v451
      %500 = vmatprep.subr.bf16.mxu0 0
      %501 = vmatpush1.bf16.msra.mxu0 %v452
      %502 = vmatprep.subr.bf16.mxu0 0
      %503 = vmatpush1.bf16.msra.mxu0 %v453
      %504 = vmatprep.subr.bf16.mxu0 0
      %505 = vmatpush1.bf16.msra.mxu0 %v454
      %506 = vmatprep.subr.bf16.mxu0 0
      %507 = vmatpush1.bf16.msra.mxu0 %v455
      %508 = vmatprep.subr.bf16.mxu0 0
      %509 = vmatpush1.bf16.msra.mxu0 %v456
      %510 = vmatprep.subr.bf16.mxu0 0
      %511 = vmatpush1.bf16.msra.mxu0 %v457
      %512 = vmatprep.subr.bf16.mxu0 0
      %513 = vmatpush1.bf16.msra.mxu0 %v458
      %514 = vmatprep.subr.bf16.mxu0 0
      %515 = vmatpush1.bf16.msra.mxu0 %v459
      %516 = vmatprep.mubr.bf16.mxu0 %v368
      %517 = vmatmul.mubr.bf16.gmra.mrb[0].mxu0 %v367
      %v518 = vpop.f32.mrb[0].mxu0
      %v519 = vadd.f32 0.0, %v518
      %v520 = vpop.f32.mrb[0].mxu0
      %v521 = vpop.f32.mrb[0].mxu0
      %v522 = vadd.f32 0.0, %v521
      %v523 = vpop.f32.mrb[0].mxu0
      %524 = vdwg.mxu0
      %525 = vmatprep.subr.bf16.mxu0 0
      %526 = vmatpush1.bf16.msra.mxu0 %v460
      %527 = vmatprep.subr.bf16.mxu0 0
      %528 = vmatpush1.bf16.msra.mxu0 %v461
      %529 = vmatprep.subr.bf16.mxu0 0
      %530 = vmatpush1.bf16.msra.mxu0 0
      %531 = vmatprep.subr.bf16.mxu0 0
      %532 = vmatpush1.bf16.msra.mxu0 0
      %533 = vmatprep.subr.bf16.mxu0 0
      %534 = vmatpush1.bf16.msra.mxu0 0
      %535 = vmatprep.subr.bf16.mxu0 0
      %536 = vmatpush1.bf16.msra.mxu0 0
      %537 = vmatprep.subr.bf16.mxu0 0
      %538 = vmatpush1.bf16.msra.mxu0 0
      %539 = vmatprep.subr.bf16.mxu0 0
      %540 = vmatpush1.bf16.msra.mxu0 0
      %541 = vmatprep.subr.bf16.mxu0 0
      %542 = vmatpush1.bf16.msra.mxu0 0
      %543 = vmatprep.subr.bf16.mxu0 0
      %544 = vmatpush1.bf16.msra.mxu0 0
      %545 = vmatprep.subr.bf16.mxu0 0
      %546 = vmatpush1.bf16.msra.mxu0 0
      %547 = vmatprep.subr.bf16.mxu0 0
      %548 = vmatpush1.bf16.msra.mxu0 0
      %549 = vmatprep.subr.bf16.mxu0 0
      %550 = vmatpush1.bf16.msra.mxu0 0
      %551 = vmatprep.subr.bf16.mxu0 0
      %552 = vmatpush1.bf16.msra.mxu0 0
      %553 = vmatprep.subr.bf16.mxu0 0
      %554 = vmatpush1.bf16.msra.mxu0 0
      %555 = vmatprep.subr.bf16.mxu0 0
      %556 = vmatpush1.bf16.msra.mxu0 0
      %557 = vmatprep.mubr.bf16.mxu0 0
      %558 = vmatmul.mubr.bf16.gmra.mrb[0].mxu0 %v482
      %v559 = vpop.f32.mrb[0].mxu0
      %v560 = vadd.f32 %v519, %v559
      %v561 = vpop.f32.mrb[0].mxu0
      %v562 = vpop.f32.mrb[0].mxu0
      %v563 = vadd.f32 %v522, %v562
      %v564 = vpop.f32.mrb[0].mxu0
      %565 = vdwg.mxu0
      %v566 = vadd.f32 %v315, %v560
      %v567 = vadd.f32 %v316, %v563
      %568 = vst [vmem:[#allocation2] sm:$0xff] %v566
      %569 = vst [vmem:[#allocation2 + $0x8] sm:$0xff] %v567
      // Predicated region
      $region41: #{_lambda_.14} parent=35 // pred_check
        %p570 = pneg %p309
      $region42: #{_lambda_.14} parent=35 // pred_check_branch
        %572 = sbr.rel (%p570) target = $region44
      $region43: #{_lambda_.14} parent=35 // pred_region
        %v573 = vld [vmem:[#allocation2] sm:$0xff]
        %v574 = vld [vmem:[#allocation2 + $0x8] sm:$0xff]
        %v575 = vld [vmem:[%s295] sm:$0x1]
        %v577 = vlaneseq
        %v578 = vshrl.u32 %v577, 7
        %v579 = vsub.s32 0, %v578
        %v580 = vrot.slane %v575, %v579
        %v582 = vmul.f32 %v573, %v580
        %v583 = vmul.f32 %v574, %v580
        %v584 = vld [vmem:[%s298] sm:$0x1]
        %v586 = vlaneseq
        %v587 = vshrl.u32 %v586, 7
        %v588 = vsub.s32 0, %v587
        %v589 = vrot.slane %v584, %v588
        %v591 = vadd.f32 %v582, %v589
        %v592 = vadd.f32 %v583, %v589
        %v593 = vmax.f32 %v591, 0.0
        %v594 = vmax.f32 %v592, 0.0
        %v595 = vpack.c.bf16 %v594, %v593
        %v597 = vunpack.c.l.b16 %v595
        %v598 = vunpack.c.h.b16 %v595
        %v599 = vpack.c.b16 %v597, %v597
        %v600 = vpack.c.b16 %v598, %v598
        %603 = vst [vmem:[%s306] sm:$0xf] %v599
        %604 = vst [vmem:[%s306 + $0x4] sm:$0xf] %v600
      $region44: #{_lambda_.14} parent=35 // pred_fallthru
        _
      %s605 = smul.u32 2, %s21
      %p606 = scmp.lt.s32.totalorder %s605, 3
      %s607 = scalar_select %p606, %s605, 3
      %p608 = scmp.lt.s32.totalorder %s20, 0
      %s609 = scalar_select %p608, %s20, 0
      %s610 = sadd.s32 %s609, %s607
      %s611 = smul.addr %s610, 4
      %s612 = scalar_lea.vmem %s4, %s611
      // Predicated region
      $region45: #{_lambda_.14} parent=35 // pred_check
        %p613 = pneg %p162
      $region46: #{_lambda_.14} parent=35 // pred_check_branch
        %615 = sbr.rel (%p613) target = $region48
      $region47: #{_lambda_.14} parent=35 // pred_region
        %s616 = smul.u32 2, %s21
      $region48: #{_lambda_.14} parent=35 // pred_fallthru
        _
    $region36: #{_lambda_.14} parent=5 // pred_fallthru
      _
    %p617 = scmp.le.s32.totalorder 2, %s10
    // Predicated region
    $region49: #{_lambda_.14} parent=5 // pred_check
      %p618 = pneg %p617
    $region50: #{_lambda_.14} parent=5 // pred_check_branch
      %620 = sbr.rel (%p618) target = $region52
    $region51: #{_lambda_.14} parent=5 // pred_region
      %s621 = ssub.s32 %s10, 2
      // Predicated region
      $region53: #{_lambda_.14} parent=51 // pred_check
        %p622 = pneg %p168
      $region54: #{_lambda_.14} parent=51 // pred_check_branch
        %624 = sbr.rel (%p622) target = $region56
      $region55: #{_lambda_.14} parent=51 // pred_region
        %s625 = smul.u32 2, %s24
        %p626 = scmp.lt.s32.totalorder %s625, 3
        %s627 = scalar_select %p626, %s625, 3
        %p628 = scmp.lt.s32.totalorder %s23, 0
        %s629 = scalar_select %p628, %s23, 0
        %s630 = sadd.s32 %s629, %s627
        %s631 = smul.addr %s630, 4
        %s632 = scalar_lea.vmem %s4, %s631
      $region56: #{_lambda_.14} parent=51 // pred_fallthru
        _
    $region52: #{_lambda_.14} parent=5 // pred_fallthru
      _
  $region6: #{_lambda_.14} parent=0 // loop_footer
    %s14 = sadd.s32 1, %s10
  $region7: #{_lambda_.14} parent=0 // loop_footer_branch
    %9 = sbr.rel target = $region3
  $region8: #{_lambda_.14} parent=0 // loop_exit
    _

// kernel: _lambda_.18
$region0: #{_lambda_.18}
  #allocation0 [shape = 'u32[]', space=smem, size = 0x4, offset = 0x4, fixed_abs, tag = 'smem constant byte address 0x4 - core index']
  #allocation1 [shape = 'u32[144,128]{1,0:T(1,128)}', space=vmem, size = 0x12000, scoped, tag = 'internal scratch']
  #allocation2 [shape = 'f32[16,128]{1,0:T(8,128)}', space=vmem, size = 0x2000, scoped, tag = 'scratch operand']
  %s0 = inlined_call_operand.vmem [shape: bf16[16,1024], index: 0, kind: input, shape index: {}]
  %s1 = inlined_call_operand.vmem [shape: bf16[1024,128], index: 1, kind: input, shape index: {}]
  %s2 = inlined_call_operand.vmem [shape: f32[1,128], index: 2, kind: input, shape index: {}]
  %s3 = inlined_call_operand.vmem [shape: f32[1,128], index: 3, kind: input, shape index: {}]
  %s4 = inlined_call_operand.vmem [shape: bf16[16,128], index: 4, kind: input, shape index: {}]
  %s5 = inlined_call_operand.vmem [shape: bf16[16,128], index: 5, kind: output, shape index: {}]
  %s6 = sld [smem:[#allocation0]]
  $region84: #{_lambda_.18} parent=0
    _
  %s8 = ssub.s32 1, %s6
  %s9 = scalar_select 0, %s8, %s6
  $region1: #{_lambda_.18} parent=0
    #allocation3 [shape = 'u8[32768]{0}', space=vmem, size = 0x8000, scoped, tag = 'input window, operand 0']
    loop: start=0, step=1, limit=4
    $region2: #{_lambda_.18} parent=1 // loop_pre_header
      _
    $region3: #{_lambda_.18} parent=1 // loop_header
      %s11 = sphi 0, %s15
      %p12 = scmp.ge.s32.totalorder %s11, 4
      %s18 = sphi 0, %s37
      %s19 = sphi 0, %s33
      %s20 = sphi 0, %s29
      %s21 = sphi 0, %s18
      %s22 = sphi 0, %s19
      %s23 = sphi 0, %s20
      %s24 = sphi 0, %s21
      %s25 = sphi 0, %s22
      %s26 = sphi 0, %s23
      %s42 = sphi 0, %s44
      %s45 = sphi 0, %s42
      %s46 = sphi 0, %s45
      %s62 = sphi 0, %s46
      %s70 = sphi 0, %s72
      %s73 = sphi 0, %s70
      %s74 = sphi 0, %s73
      %s90 = sphi 0, %s74
      %s96 = sphi 0, %s98
      %s99 = sphi 0, %s96
      %s100 = sphi 0, %s99
      %s116 = sphi 0, %s100
      %s122 = sphi 0, %s124
      %s125 = sphi 0, %s122
      %s126 = sphi 0, %s125
      %s142 = sphi 0, %s126
      %s150 = sphi 0, %s152
      %s153 = sphi 0, %s150
      %s154 = sphi 0, %s153
      %s170 = sphi 0, %s154
      %s178 = sphi 0, %s180
      %s181 = sphi 0, %s178
      %s182 = sphi 0, %s181
      %s198 = sphi 0, %s182
    $region4: #{_lambda_.18} parent=1 // loop_header_branch
      %14 = sbr.rel (%p12) target = $region8
    $region5: #{_lambda_.18} parent=1 // loop_body
      %s16 = ssub.s32 %s11, 1
      %s17 = ssub.s32 %s11, 2
      %s27 = sadd.s32 1, %s20
      %p28 = scmp.ge.s32.totalorder %s27, 2
      %s29 = scalar_select %p28, 0, %s27
      %s30 = sadd.s32 1, %s19
      %s31 = scalar_select %p28, %s30, %s19
      %p32 = scmp.ge.s32.totalorder %s31, 1
      %s33 = scalar_select %p32, 0, %s31
      %s34 = sadd.s32 1, %s18
      %s35 = scalar_select %p32, %s34, %s18
      %p36 = scmp.ge.s32.totalorder %s35, 1
      %s37 = scalar_select %p36, 0, %s35
      %s38 = ssub.s32 %s18, %s37
      %s39 = ssub.s32 %s20, %s29
      %s40 = sor.u32 %s38, %s39
      %p41 = scmp.eq.s32.totalorder %s40, 0
      %s43 = sadd.s32 %s42, 1
      %s44 = scalar_select %p41, %s42, %s43
      %p47 = pneg %p41
      %p48 = scmp.eq.s32.totalorder %s11, 1
      %p49 = por %p47, %p48
      %p50 = scmp.ne.s32.totalorder %s42, %s45
      %p51 = scmp.eq.s32.totalorder %s11, 0
      %p52 = por %p50, %p51
      %p53 = scmp.ne.s32.totalorder %s42, %s45
      %p54 = scmp.eq.s32.totalorder %s16, 1
      %p55 = por %p53, %p54
      %p56 = scmp.ne.s32.totalorder %s45, %s46
      %p57 = scmp.eq.s32.totalorder %s16, 0
      %p58 = por %p56, %p57
      %p59 = scmp.ne.s32.totalorder %s45, %s46
      %p60 = scmp.eq.s32.totalorder %s17, 1
      %p61 = por %p59, %p60
      %p63 = scmp.ne.s32.totalorder %s46, %s62
      %p64 = scmp.eq.s32.totalorder %s17, 0
      %p65 = por %p63, %p64
      %s66 = ssub.s32 %s20, %s29
      %s67 = ssub.s32 %s19, %s33
      %s68 = sor.u32 %s66, %s67
      %p69 = scmp.eq.s32.totalorder %s68, 0
      %s71 = sadd.s32 %s70, 1
      %s72 = scalar_select %p69, %s70, %s71
      %p75 = pneg %p69
      %p76 = scmp.eq.s32.totalorder %s11, 1
      %p77 = por %p75, %p76
      %p78 = scmp.ne.s32.totalorder %s70, %s73
      %p79 = scmp.eq.s32.totalorder %s11, 0
      %p80 = por %p78, %p79
      %p81 = scmp.ne.s32.totalorder %s70, %s73
      %p82 = scmp.eq.s32.totalorder %s16, 1
      %p83 = por %p81, %p82
      %p84 = scmp.ne.s32.totalorder %s73, %s74
      %p85 = scmp.eq.s32.totalorder %s16, 0
      %p86 = por %p84, %p85
      %p87 = scmp.ne.s32.totalorder %s73, %s74
      %p88 = scmp.eq.s32.totalorder %s17, 1
      %p89 = por %p87, %p88
      %p91 = scmp.ne.s32.totalorder %s74, %s90
      %p92 = scmp.eq.s32.totalorder %s17, 0
      %p93 = por %p91, %p92
      %s94 = ssub.s32 %s19, %s33
      %p95 = scmp.eq.s32.totalorder %s94, 0
      %s97 = sadd.s32 %s96, 1
      %s98 = scalar_select %p95, %s96, %s97
      %p101 = pneg %p95
      %p102 = scmp.eq.s32.totalorder %s11, 1
      %p103 = por %p101, %p102
      %p104 = scmp.ne.s32.totalorder %s96, %s99
      %p105 = scmp.eq.s32.totalorder %s11, 0
      %p106 = por %p104, %p105
      %p107 = scmp.ne.s32.totalorder %s96, %s99
      %p108 = scmp.eq.s32.totalorder %s16, 1
      %p109 = por %p107, %p108
      %p110 = scmp.ne.s32.totalorder %s99, %s100
      %p111 = scmp.eq.s32.totalorder %s16, 0
      %p112 = por %p110, %p111
      %p113 = scmp.ne.s32.totalorder %s99, %s100
      %p114 = scmp.eq.s32.totalorder %s17, 1
      %p115 = por %p113, %p114
      %p117 = scmp.ne.s32.totalorder %s100, %s116
      %p118 = scmp.eq.s32.totalorder %s17, 0
      %p119 = por %p117, %p118
      %s120 = ssub.s32 %s19, %s33
      %p121 = scmp.eq.s32.totalorder %s120, 0
      %s123 = sadd.s32 %s122, 1
      %s124 = scalar_select %p121, %s122, %s123
      %p127 = pneg %p121
      %p128 = scmp.eq.s32.totalorder %s11, 1
      %p129 = por %p127, %p128
      %p130 = scmp.ne.s32.totalorder %s122, %s125
      %p131 = scmp.eq.s32.totalorder %s11, 0
      %p132 = por %p130, %p131
      %p133 = scmp.ne.s32.totalorder %s122, %s125
      %p134 = scmp.eq.s32.totalorder %s16, 1
      %p135 = por %p133, %p134
      %p136 = scmp.ne.s32.totalorder %s125, %s126
      %p137 = scmp.eq.s32.totalorder %s16, 0
      %p138 = por %p136, %p137
      %p139 = scmp.ne.s32.totalorder %s125, %s126
      %p140 = scmp.eq.s32.totalorder %s17, 1
      %p141 = por %p139, %p140
      %p143 = scmp.ne.s32.totalorder %s126, %s142
      %p144 = scmp.eq.s32.totalorder %s17, 0
      %p145 = por %p143, %p144
      %s146 = ssub.s32 %s18, %s37
      %s147 = ssub.s32 %s19, %s33
      %s148 = sor.u32 %s146, %s147
      %p149 = scmp.eq.s32.totalorder %s148, 0
      %s151 = sadd.s32 %s150, 1
      %s152 = scalar_select %p149, %s150, %s151
      %p155 = pneg %p149
      %p156 = scmp.eq.s32.totalorder %s11, 1
      %p157 = por %p155, %p156
      %p158 = scmp.ne.s32.totalorder %s150, %s153
      %p159 = scmp.eq.s32.totalorder %s11, 0
      %p160 = por %p158, %p159
      %p161 = scmp.ne.s32.totalorder %s150, %s153
      %p162 = scmp.eq.s32.totalorder %s16, 1
      %p163 = por %p161, %p162
      %p164 = scmp.ne.s32.totalorder %s153, %s154
      %p165 = scmp.eq.s32.totalorder %s16, 0
      %p166 = por %p164, %p165
      %p167 = scmp.ne.s32.totalorder %s153, %s154
      %p168 = scmp.eq.s32.totalorder %s17, 1
      %p169 = por %p167, %p168
      %p171 = scmp.ne.s32.totalorder %s154, %s170
      %p172 = scmp.eq.s32.totalorder %s17, 0
      %p173 = por %p171, %p172
      %s174 = ssub.s32 %s18, %s37
      %s175 = ssub.s32 %s19, %s33
      %s176 = sor.u32 %s174, %s175
      %p177 = scmp.eq.s32.totalorder %s176, 0
      %s179 = sadd.s32 %s178, 1
      %s180 = scalar_select %p177, %s178, %s179
      %p183 = pneg %p177
      %p184 = scmp.eq.s32.totalorder %s11, 1
      %p185 = por %p183, %p184
      %p186 = scmp.ne.s32.totalorder %s178, %s181
      %p187 = scmp.eq.s32.totalorder %s11, 0
      %p188 = por %p186, %p187
      %p189 = scmp.ne.s32.totalorder %s178, %s181
      %p190 = scmp.eq.s32.totalorder %s16, 1
      %p191 = por %p189, %p190
      %p192 = scmp.ne.s32.totalorder %s181, %s182
      %p193 = scmp.eq.s32.totalorder %s16, 0
      %p194 = por %p192, %p193
      %p195 = scmp.ne.s32.totalorder %s181, %s182
      %p196 = scmp.eq.s32.totalorder %s17, 1
      %p197 = por %p195, %p196
      %p199 = scmp.ne.s32.totalorder %s182, %s198
      %p200 = scmp.eq.s32.totalorder %s17, 0
      %p201 = por %p199, %p200
      %p202 = scmp.le.s32.totalorder 1, %s11
      %p203 = scmp.lt.s32.totalorder %s11, 3
      %p204 = pnand %p202, %p203
      %p205 = pneg %p204
      // Predicated region
      $region9: #{_lambda_.18} parent=5 // pred_check
        _
      $region10: #{_lambda_.18} parent=5 // pred_check_branch
        %207 = sbr.rel (%p204) target = $region12
      $region11: #{_lambda_.18} parent=5 // pred_region
        %s208 = ssub.s32 %s11, 1
        // Predicated region
        $region13: #{_lambda_.18} parent=11 // pred_check
          %p209 = pneg %p112
        $region14: #{_lambda_.18} parent=11 // pred_check_branch
          %211 = sbr.rel (%p209) target = $region16
        $region15: #{_lambda_.18} parent=11 // pred_region
          %p212 = scmp.lt.s32.totalorder %s22, 0
          %s213 = scalar_select %p212, %s22, 0
          %s214 = scalar_lea.vmem %s2, %s213
        $region16: #{_lambda_.18} parent=11 // pred_fallthru
          _
        // Predicated region
        $region17: #{_lambda_.18} parent=11 // pred_check
          %p215 = pneg %p138
        $region18: #{_lambda_.18} parent=11 // pred_check_branch
          %217 = sbr.rel (%p215) target = $region20
        $region19: #{_lambda_.18} parent=11 // pred_region
          %p218 = scmp.lt.s32.totalorder %s22, 0
          %s219 = scalar_select %p218, %s22, 0
          %s220 = scalar_lea.vmem %s3, %s219
        $region20: #{_lambda_.18} parent=11 // pred_fallthru
          _
        // Predicated region
        $region21: #{_lambda_.18} parent=11 // pred_check
          %p221 = pneg %p166
        $region22: #{_lambda_.18} parent=11 // pred_check_branch
          %223 = sbr.rel (%p221) target = $region24
        $region23: #{_lambda_.18} parent=11 // pred_region
          %s224 = smul.u32 2, %s21
          %p225 = scmp.lt.s32.totalorder %s224, 1
          %s226 = scalar_select %p225, %s224, 1
          %p227 = scmp.lt.s32.totalorder %s22, 0
          %s228 = scalar_select %p227, %s22, 0
          %s229 = sadd.s32 %s228, %s226
          %s230 = smul.addr %s229, 4
          %s231 = scalar_lea.vmem %s4, %s230
          %s232 = smul.u32 2, %s21
        $region24: #{_lambda_.18} parent=11 // pred_fallthru
          _
      $region12: #{_lambda_.18} parent=5 // pred_fallthru
        _
      %p233 = scmp.lt.s32.totalorder %s11, 2
      // Predicated region
      $region25: #{_lambda_.18} parent=5 // pred_check
        %p234 = pneg %p233
      $region26: #{_lambda_.18} parent=5 // pred_check_branch
        %236 = sbr.rel (%p234) target = $region28
      $region27: #{_lambda_.18} parent=5 // pred_region
        // Predicated region
        $region29: #{_lambda_.18} parent=27 // pred_check
          %p237 = pneg %p52
        $region30: #{_lambda_.18} parent=27 // pred_check_branch
          %239 = sbr.rel (%p237) target = $region32
        $region31: #{_lambda_.18} parent=27 // pred_region
          %s240 = sand.u32 %s42, 1
          %s241 = sand.u32 %s42, 1
          %s242 = smul.addr %s241, 32
          %s243 = scalar_lea.vmem [#allocation3], %s242
          %s244 = smul.u32 2, %s18
          %s245 = smul.u32 4, %s20
          %s246 = smul.addr %s244, 8
          %s247 = sadd.s32 %s245, %s246
          %s248 = smul.addr %s247, 4
          %s249 = scalar_lea.vmem %s0, %s248
          // Predicated region
          $region33: #{_lambda_.18} parent=31 // pred_check
            _
          $region34: #{_lambda_.18} parent=31 // pred_check_branch
            %251 = sbr.rel (0) target = $region36
          $region35: #{_lambda_.18} parent=31 // pred_region
            // Predicated region
            $region37: #{_lambda_.18} parent=35 // pred_check
              _
            $region38: #{_lambda_.18} parent=35 // pred_check_branch
              %253 = sbr.rel (0) target = $region40
            $region39: #{_lambda_.18} parent=35 // pred_region
              loop: start=0, step=1, limit=1
              $region41: #{_lambda_.18} parent=39 // loop_pre_header
                _
              $region42: #{_lambda_.18} parent=39 // loop_header
                %s255 = sphi 0, %s259
                %p256 = scmp.ge.s32.totalorder %s255, 1
                %s260 = sphi %s249, %s249
                %s261 = sphi %s243, %s243
              $region43: #{_lambda_.18} parent=39 // loop_header_branch
                %258 = sbr.rel (%p256) target = $region47
              $region44: #{_lambda_.18} parent=39 // loop_body
                %v262 = vld [vmem:[%s260] sm:$0xff]
                %263 = vst [vmem:[%s261] sm:$0xff] %v262
                %v264 = vld [vmem:[%s260 + $0x8] sm:$0xff]
                %265 = vst [vmem:[%s261 + $0x8] sm:$0xff] %v264
                %v266 = vld [vmem:[%s260 + $0x20] sm:$0xff]
                %267 = vst [vmem:[%s261 + $0x10] sm:$0xff] %v266
                %v268 = vld [vmem:[%s260 + $0x28] sm:$0xff]
                %269 = vst [vmem:[%s261 + $0x18] sm:$0xff] %v268
              $region45: #{_lambda_.18} parent=39 // loop_footer
                %s259 = sadd.s32 1, %s255
              $region46: #{_lambda_.18} parent=39 // loop_footer_branch
                %254 = sbr.rel target = $region42
              $region47: #{_lambda_.18} parent=39 // loop_exit
                _
            $region40: #{_lambda_.18} parent=35 // pred_fallthru
              _
            // Predicated region
            $region48: #{_lambda_.18} parent=35 // pred_check
              _
            $region49: #{_lambda_.18} parent=35 // pred_check_branch
              %271 = sbr.rel target = $region51
            $region50: #{_lambda_.18} parent=35 // pred_region
              _
            $region51: #{_lambda_.18} parent=35 // pred_fallthru
              _
          $region36: #{_lambda_.18} parent=31 // pred_fallthru
            _
          %272 = vnop
        $region32: #{_lambda_.18} parent=27 // pred_fallthru
          _
        // Predicated region
        $region52: #{_lambda_.18} parent=27 // pred_check
          %p273 = pneg %p80
        $region53: #{_lambda_.18} parent=27 // pred_check_branch
          %275 = sbr.rel (%p273) target = $region55
        $region54: #{_lambda_.18} parent=27 // pred_region
          %s276 = smul.u32 64, %s20
          %p277 = scmp.lt.s32.totalorder %s276, 127
          %s278 = scalar_select %p277, %s276, 127
          %p279 = scmp.lt.s32.totalorder %s19, 0
          %s280 = scalar_select %p279, %s19, 0
          %s281 = sadd.s32 %s280, %s278
          %s282 = smul.addr %s281, 4
          %s283 = scalar_lea.vmem %s1, %s282
          %s284 = smul.u32 64, %s20
        $region55: #{_lambda_.18} parent=27 // pred_fallthru
          _
      $region28: #{_lambda_.18} parent=5 // pred_fallthru
        _
      %p285 = scmp.le.s32.totalorder 1, %s11
      %p286 = scmp.lt.s32.totalorder %s11, 3
      %p287 = pnand %p285, %p286
      %p288 = pneg %p287
      // Predicated region
      $region56: #{_lambda_.18} parent=5 // pred_check
        _
      $region57: #{_lambda_.18} parent=5 // pred_check_branch
        %290 = sbr.rel (%p287) target = $region59
      $region58: #{_lambda_.18} parent=5 // pred_region
        %s291 = ssub.s32 %s11, 1
        %s292 = sand.u32 %s45, 1
        %s293 = sand.u32 %s45, 1
        %s294 = smul.addr %s293, 32
        %s295 = scalar_lea.vmem [#allocation3], %s294
        // Predicated region
        $region60: #{_lambda_.18} parent=58 // pred_check
          %p296 = pneg %p58
        $region61: #{_lambda_.18} parent=58 // pred_check_branch
          %298 = sbr.rel (%p296) target = $region63
        $region62: #{_lambda_.18} parent=58 // pred_region
          _
        $region63: #{_lambda_.18} parent=58 // pred_fallthru
          _
        %s299 = sand.u32 %s45, 1
        %s300 = sand.u32 %s45, 1
        %s301 = smul.addr %s300, 32
        %s302 = scalar_lea.vmem [#allocation3], %s301
        %p303 = pneg %p58
        %p304 = pneg %p55
        %s305 = smul.u32 64, %s23
        %p306 = scmp.lt.s32.totalorder %s305, 127
        %s307 = scalar_select %p306, %s305, 127
        %p308 = scmp.lt.s32.totalorder %s22, 0
        %s309 = scalar_select %p308, %s22, 0
        %s310 = sadd.s32 %s309, %s307
        %s311 = smul.addr %s310, 4
        %s312 = scalar_lea.vmem %s1, %s311
        %p313 = pneg %p86
        %p314 = pneg %p83
        %p315 = scmp.lt.s32.totalorder %s22, 0
        %s316 = scalar_select %p315, %s22, 0
        %s317 = scalar_lea.vmem %s2, %s316
        %p318 = pneg %p112
        %p319 = pneg %p109
        %p320 = scmp.lt.s32.totalorder %s22, 0
        %s321 = scalar_select %p320, %s22, 0
        %s322 = scalar_lea.vmem %s3, %s321
        %p323 = pneg %p138
        %p324 = pneg %p135
        %s325 = smul.u32 2, %s21
        %p326 = scmp.lt.s32.totalorder %s325, 1
        %s327 = scalar_select %p326, %s325, 1
        %p328 = scmp.lt.s32.totalorder %s22, 0
        %s329 = scalar_select %p328, %s22, 0
        %s330 = sadd.s32 %s329, %s327
        %s331 = smul.addr %s330, 4
        %s332 = scalar_lea.vmem %s4, %s331
        %p333 = pneg %p166
        %p334 = pneg %p163
        %p335 = pneg %p194
        %p336 = pneg %p191
        %s337 = smul.u32 2, %s21
        %p338 = scmp.lt.s32.totalorder %s337, 1
        %s339 = scalar_select %p338, %s337, 1
        %p340 = scmp.lt.s32.totalorder %s22, 0
        %s341 = scalar_select %p340, %s22, 0
        %s342 = sadd.s32 %s341, %s339
        %s343 = smul.addr %s342, 4
        %s344 = scalar_lea.vmem %s5, %s343
        %s345 = smul.u32 2, %s21
        %s346 = smul.u32 4, %s23
        %s347 = smul.u32 64, %s23
        %p348 = scmp.lt.s32.totalorder %s347, 127
        %s349 = scalar_select %p348, %s347, 127
        %p350 = scmp.lt.s32.totalorder %s22, 0
        %s351 = scalar_select %p350, %s22, 0
        %s352 = sadd.s32 %s351, %s349
        %s353 = smul.addr %s352, 4
        %s354 = scalar_lea.vmem %s1, %s353
        %s355 = smul.u32 64, %s23
        %p356 = scmp.lt.s32.totalorder %s22, 0
        %s357 = scalar_select %p356, %s22, 0
        %s358 = scalar_lea.vmem %s2, %s357
        %p359 = scmp.lt.s32.totalorder %s22, 0
        %s360 = scalar_select %p359, %s22, 0
        %s361 = scalar_lea.vmem %s3, %s360
        %s362 = smul.u32 2, %s21
        %p363 = scmp.lt.s32.totalorder %s362, 1
        %s364 = scalar_select %p363, %s362, 1
        %p365 = scmp.lt.s32.totalorder %s22, 0
        %s366 = scalar_select %p365, %s22, 0
        %s367 = sadd.s32 %s366, %s364
        %s368 = smul.addr %s367, 4
        %s369 = scalar_lea.vmem %s4, %s368
        %s370 = smul.u32 2, %s21
        %s371 = smul.u32 2, %s21
        %p372 = scmp.lt.s32.totalorder %s371, 1
        %s373 = scalar_select %p372, %s371, 1
        %p374 = scmp.lt.s32.totalorder %s22, 0
        %s375 = scalar_select %p374, %s22, 0
        %s376 = sadd.s32 %s375, %s373
        %s377 = smul.addr %s376, 4
        %s378 = scalar_lea.vmem %s5, %s377
        %s379 = smul.u32 2, %s21
        %p381 = scmp.eq.s32.totalorder %s23, 0
        // Predicated region
        $region64: #{_lambda_.18} parent=58 // pred_check
          %p382 = pneg %p381
        $region65: #{_lambda_.18} parent=58 // pred_check_branch
          %384 = sbr.rel (%p382) target = $region67
        $region66: #{_lambda_.18} parent=58 // pred_region
          %385 = vst [vmem:[#allocation2] sm:$0xff] 0.0
          %386 = vst [vmem:[#allocation2 + $0x8] sm:$0xff] 0.0
        $region67: #{_lambda_.18} parent=58 // pred_fallthru
          _
        %v387 = vld [vmem:[#allocation2] sm:$0xff]
        %v388 = vld [vmem:[#allocation2 + $0x8] sm:$0xff]
        %v389 = vld [vmem:[%s295] sm:$0xff]
        %v390 = vld [vmem:[%s295 + $0x8] sm:$0xff]
        %v391 = vld [vmem:[%s295 + $0x10] sm:$0xff]
        %v392 = vld [vmem:[%s295 + $0x18] sm:$0xff]
        %v393 = vld [vmem:[%s354] sm:$0xf]
        %v394 = vld [vmem:[%s354 + $0x4] sm:$0xf]
        %v395 = vld [vmem:[%s354 + $0x8] sm:$0xf]
        %v396 = vld [vmem:[%s354 + $0xc] sm:$0xf]
        %v397 = vld [vmem:[%s354 + $0x10] sm:$0xf]
        %v398 = vld [vmem:[%s354 + $0x14] sm:$0xf]
        %v399 = vld [vmem:[%s354 + $0x18] sm:$0xf]
        %v400 = vld [vmem:[%s354 + $0x1c] sm:$0xf]
        %v401 = vld [vmem:[%s354 + $0x20] sm:$0xf]
        %v402 = vld [vmem:[%s354 + $0x24] sm:$0xf]
        %v403 = vld [vmem:[%s354 + $0x28] sm:$0xf]
        %v404 = vld [vmem:[%s354 + $0x2c] sm:$0xf]
        %v405 = vld [vmem:[%s354 + $0x30] sm:$0xf]
        %v406 = vld [vmem:[%s354 + $0x34] sm:$0xf]
        %v407 = vld [vmem:[%s354 + $0x38] sm:$0xf]
        %v408 = vld [vmem:[%s354 + $0x3c] sm:$0xf]
        %v409 = vld [vmem:[%s354 + $0x40] sm:$0xf]
        %v410 = vld [vmem:[%s354 + $0x44] sm:$0xf]
        %v411 = vld [vmem:[%s354 + $0x48] sm:$0xf]
        %v412 = vld [vmem:[%s354 + $0x4c] sm:$0xf]
        %v413 = vld [vmem:[%s354 + $0x50] sm:$0xf]
        %v414 = vld [vmem:[%s354 + $0x54] sm:$0xf]
        %v415 = vld [vmem:[%s354 + $0x58] sm:$0xf]
        %v416 = vld [vmem:[%s354 + $0x5c] sm:$0xf]
        %v417 = vld [vmem:[%s354 + $0x60] sm:$0xf]
        %v418 = vld [vmem:[%s354 + $0x64] sm:$0xf]
        %v419 = vld [vmem:[%s354 + $0x68] sm:$0xf]
        %v420 = vld [vmem:[%s354 + $0x6c] sm:$0xf]
        %v421 = vld [vmem:[%s354 + $0x70] sm:$0xf]
        %v422 = vld [vmem:[%s354 + $0x74] sm:$0xf]
        %v423 = vld [vmem:[%s354 + $0x78] sm:$0xf]
        %v424 = vld [vmem:[%s354 + $0x7c] sm:$0xf]
        %v425 = vld [vmem:[%s354 + $0x80] sm:$0xf]
        %v426 = vld [vmem:[%s354 + $0x84] sm:$0xf]
        %v427 = vld [vmem:[%s354 + $0x88] sm:$0xf]
        %v428 = vld [vmem:[%s354 + $0x8c] sm:$0xf]
        %v429 = vld [vmem:[%s354 + $0x90] sm:$0xf]
        %v430 = vld [vmem:[%s354 + $0x94] sm:$0xf]
        %v431 = vld [vmem:[%s354 + $0x98] sm:$0xf]
        %v432 = vld [vmem:[%s354 + $0x9c] sm:$0xf]
        %v433 = vld [vmem:[%s354 + $0xa0] sm:$0xf]
        %v434 = vld [vmem:[%s354 + $0xa4] sm:$0xf]
        %v435 = vld [vmem:[%s354 + $0xa8] sm:$0xf]
        %v436 = vld [vmem:[%s354 + $0xac] sm:$0xf]
        %v437 = vld [vmem:[%s354 + $0xb0] sm:$0xf]
        %v438 = vld [vmem:[%s354 + $0xb4] sm:$0xf]
        %v439 = vld [vmem:[%s354 + $0xb8] sm:$0xf]
        %v440 = vld [vmem:[%s354 + $0xbc] sm:$0xf]
        %v441 = vld [vmem:[%s354 + $0xc0] sm:$0xf]
        %v442 = vld [vmem:[%s354 + $0xc4] sm:$0xf]
        %v443 = vld [vmem:[%s354 + $0xc8] sm:$0xf]
        %v444 = vld [vmem:[%s354 + $0xcc] sm:$0xf]
        %v445 = vld [vmem:[%s354 + $0xd0] sm:$0xf]
        %v446 = vld [vmem:[%s354 + $0xd4] sm:$0xf]
        %v447 = vld [vmem:[%s354 + $0xd8] sm:$0xf]
        %v448 = vld [vmem:[%s354 + $0xdc] sm:$0xf]
        %v449 = vld [vmem:[%s354 + $0xe0] sm:$0xf]
        %v450 = vld [vmem:[%s354 + $0xe4] sm:$0xf]
        %v451 = vld [vmem:[%s354 + $0xe8] sm:$0xf]
        %v452 = vld [vmem:[%s354 + $0xec] sm:$0xf]
        %v453 = vld [vmem:[%s354 + $0xf0] sm:$0xf]
        %v454 = vld [vmem:[%s354 + $0xf4] sm:$0xf]
        %v455 = vld [vmem:[%s354 + $0xf8] sm:$0xf]
        %v456 = vld [vmem:[%s354 + $0xfc] sm:$0xf]
        %v461 = vunpack.c.l.b16 %v389
        %v462 = vunpack.c.h.b16 %v389
        %v463 = vunpack.c.l.b16 %v390
        %v464 = vunpack.c.h.b16 %v390
        %v465 = vunpack.c.l.b16 %v391
        %v466 = vunpack.c.h.b16 %v391
        %v467 = vunpack.c.l.b16 %v392
        %v468 = vunpack.c.h.b16 %v392
        %v469 = vpack.c.b16 %v465, %v461
        %v470 = vpack.c.b16 %v466, %v462
        %v471 = vpack.c.b16 %v467, %v463
        %v472 = vpack.c.b16 %v468, %v464
        %v541 = vunpack.c.l.b16 %v393
        %v542 = vunpack.c.l.b16 %v394
        %v543 = vunpack.c.l.b16 %v395
        %v544 = vunpack.c.l.b16 %v396
        %v545 = vunpack.c.l.b16 %v397
        %v546 = vunpack.c.l.b16 %v398
        %v547 = vunpack.c.l.b16 %v399
        %v548 = vunpack.c.l.b16 %v400
        %v549 = vunpack.c.l.b16 %v401
        %v550 = vunpack.c.l.b16 %v402
        %v551 = vunpack.c.l.b16 %v403
        %v552 = vunpack.c.l.b16 %v404
        %v553 = vunpack.c.l.b16 %v405
        %v554 = vunpack.c.l.b16 %v406
        %v555 = vunpack.c.l.b16 %v407
        %v556 = vunpack.c.l.b16 %v408
        %v557 = vunpack.c.l.b16 %v409
        %v558 = vunpack.c.l.b16 %v410
        %v559 = vunpack.c.l.b16 %v411
        %v560 = vunpack.c.l.b16 %v412
        %v561 = vunpack.c.l.b16 %v413
        %v562 = vunpack.c.l.b16 %v414
        %v563 = vunpack.c.l.b16 %v415
        %v564 = vunpack.c.l.b16 %v416
        %v565 = vunpack.c.l.b16 %v417
        %v566 = vunpack.c.l.b16 %v418
        %v567 = vunpack.c.l.b16 %v419
        %v568 = vunpack.c.l.b16 %v420
        %v569 = vunpack.c.l.b16 %v421
        %v570 = vunpack.c.l.b16 %v422
        %v571 = vunpack.c.l.b16 %v423
        %v572 = vunpack.c.l.b16 %v424
        %v573 = vunpack.c.l.b16 %v425
        %v574 = vunpack.c.l.b16 %v426
        %v575 = vunpack.c.l.b16 %v427
        %v576 = vunpack.c.l.b16 %v428
        %v577 = vunpack.c.l.b16 %v429
        %v578 = vunpack.c.l.b16 %v430
        %v579 = vunpack.c.l.b16 %v431
        %v580 = vunpack.c.l.b16 %v432
        %v581 = vunpack.c.l.b16 %v433
        %v582 = vunpack.c.l.b16 %v434
        %v583 = vunpack.c.l.b16 %v435
        %v584 = vunpack.c.l.b16 %v436
        %v585 = vunpack.c.l.b16 %v437
        %v586 = vunpack.c.l.b16 %v438
        %v587 = vunpack.c.l.b16 %v439
        %v588 = vunpack.c.l.b16 %v440
        %v589 = vunpack.c.l.b16 %v441
        %v590 = vunpack.c.l.b16 %v442
        %v591 = vunpack.c.l.b16 %v443
        %v592 = vunpack.c.l.b16 %v444
        %v593 = vunpack.c.l.b16 %v445
        %v594 = vunpack.c.l.b16 %v446
        %v595 = vunpack.c.l.b16 %v447
        %v596 = vunpack.c.l.b16 %v448
        %v597 = vunpack.c.l.b16 %v449
        %v598 = vunpack.c.l.b16 %v450
        %v599 = vunpack.c.l.b16 %v451
        %v600 = vunpack.c.l.b16 %v452
        %v601 = vunpack.c.l.b16 %v453
        %v602 = vunpack.c.l.b16 %v454
        %v603 = vunpack.c.l.b16 %v455
        %v604 = vunpack.c.l.b16 %v456
        %v605 = vpack.c.b16 %v542, %v541
        %v606 = vpack.c.b16 %v544, %v543
        %v607 = vpack.c.b16 %v546, %v545
        %v608 = vpack.c.b16 %v548, %v547
        %v609 = vpack.c.b16 %v550, %v549
        %v610 = vpack.c.b16 %v552, %v551
        %v611 = vpack.c.b16 %v554, %v553
        %v612 = vpack.c.b16 %v556, %v555
        %v613 = vpack.c.b16 %v558, %v557
        %v614 = vpack.c.b16 %v560, %v559
        %v615 = vpack.c.b16 %v562, %v561
        %v616 = vpack.c.b16 %v564, %v563
        %v617 = vpack.c.b16 %v566, %v565
        %v618 = vpack.c.b16 %v568, %v567
        %v619 = vpack.c.b16 %v570, %v569
        %v620 = vpack.c.b16 %v572, %v571
        %v621 = vpack.c.b16 %v574, %v573
        %v622 = vpack.c.b16 %v576, %v575
        %v623 = vpack.c.b16 %v578, %v577
        %v624 = vpack.c.b16 %v580, %v579
        %v625 = vpack.c.b16 %v582, %v581
        %v626 = vpack.c.b16 %v584, %v583
        %v627 = vpack.c.b16 %v586, %v585
        %v628 = vpack.c.b16 %v588, %v587
        %v629 = vpack.c.b16 %v590, %v589
        %v630 = vpack.c.b16 %v592, %v591
        %v631 = vpack.c.b16 %v594, %v593
        %v632 = vpack.c.b16 %v596, %v595
        %v633 = vpack.c.b16 %v598, %v597
        %v634 = vpack.c.b16 %v600, %v599
        %v635 = vpack.c.b16 %v602, %v601
        %v636 = vpack.c.b16 %v604, %v603
        %669 = vmatprep.subr.bf16.mxu0 0
        %670 = vmatpush1.bf16.msra.mxu0 %v605
        %671 = vmatprep.subr.bf16.mxu0 0
        %672 = vmatpush1.bf16.msra.mxu0 %v606
        %673 = vmatprep.subr.bf16.mxu0 0
        %674 = vmatpush1.bf16.msra.mxu0 %v607
        %675 = vmatprep.subr.bf16.mxu0 0
        %676 = vmatpush1.bf16.msra.mxu0 %v608
        %677 = vmatprep.subr.bf16.mxu0 0
        %678 = vmatpush1.bf16.msra.mxu0 %v609
        %679 = vmatprep.subr.bf16.mxu0 0
        %680 = vmatpush1.bf16.msra.mxu0 %v610
        %681 = vmatprep.subr.bf16.mxu0 0
        %682 = vmatpush1.bf16.msra.mxu0 %v611
        %683 = vmatprep.subr.bf16.mxu0 0
        %684 = vmatpush1.bf16.msra.mxu0 %v612
        %685 = vmatprep.subr.bf16.mxu0 0
        %686 = vmatpush1.bf16.msra.mxu0 %v613
        %687 = vmatprep.subr.bf16.mxu0 0
        %688 = vmatpush1.bf16.msra.mxu0 %v614
        %689 = vmatprep.subr.bf16.mxu0 0
        %690 = vmatpush1.bf16.msra.mxu0 %v615
        %691 = vmatprep.subr.bf16.mxu0 0
        %692 = vmatpush1.bf16.msra.mxu0 %v616
        %693 = vmatprep.subr.bf16.mxu0 0
        %694 = vmatpush1.bf16.msra.mxu0 %v617
        %695 = vmatprep.subr.bf16.mxu0 0
        %696 = vmatpush1.bf16.msra.mxu0 %v618
        %697 = vmatprep.subr.bf16.mxu0 0
        %698 = vmatpush1.bf16.msra.mxu0 %v619
        %699 = vmatprep.subr.bf16.mxu0 0
        %700 = vmatpush1.bf16.msra.mxu0 %v620
        %701 = vmatprep.mubr.bf16.mxu0 %v470
        %702 = vmatmul.mubr.bf16.gmra.mrb[0].mxu0 %v469
        %v703 = vpop.f32.mrb[0].mxu0
        %v704 = vadd.f32 0.0, %v703
        %v705 = vpop.f32.mrb[0].mxu0
        %v706 = vpop.f32.mrb[0].mxu0
        %v707 = vadd.f32 0.0, %v706
        %v708 = vpop.f32.mrb[0].mxu0
        %709 = vdwg.mxu0
        %710 = vmatprep.subr.bf16.mxu0 0
        %711 = vmatpush1.bf16.msra.mxu0 %v621
        %712 = vmatprep.subr.bf16.mxu0 0
        %713 = vmatpush1.bf16.msra.mxu0 %v622
        %714 = vmatprep.subr.bf16.mxu0 0
        %715 = vmatpush1.bf16.msra.mxu0 %v623
        %716 = vmatprep.subr.bf16.mxu0 0
        %717 = vmatpush1.bf16.msra.mxu0 %v624
        %718 = vmatprep.subr.bf16.mxu0 0
        %719 = vmatpush1.bf16.msra.mxu0 %v625
        %720 = vmatprep.subr.bf16.mxu0 0
        %721 = vmatpush1.bf16.msra.mxu0 %v626
        %722 = vmatprep.subr.bf16.mxu0 0
        %723 = vmatpush1.bf16.msra.mxu0 %v627
        %724 = vmatprep.subr.bf16.mxu0 0
        %725 = vmatpush1.bf16.msra.mxu0 %v628
        %726 = vmatprep.subr.bf16.mxu0 0
        %727 = vmatpush1.bf16.msra.mxu0 %v629
        %728 = vmatprep.subr.bf16.mxu0 0
        %729 = vmatpush1.bf16.msra.mxu0 %v630
        %730 = vmatprep.subr.bf16.mxu0 0
        %731 = vmatpush1.bf16.msra.mxu0 %v631
        %732 = vmatprep.subr.bf16.mxu0 0
        %733 = vmatpush1.bf16.msra.mxu0 %v632
        %734 = vmatprep.subr.bf16.mxu0 0
        %735 = vmatpush1.bf16.msra.mxu0 %v633
        %736 = vmatprep.subr.bf16.mxu0 0
        %737 = vmatpush1.bf16.msra.mxu0 %v634
        %738 = vmatprep.subr.bf16.mxu0 0
        %739 = vmatpush1.bf16.msra.mxu0 %v635
        %740 = vmatprep.subr.bf16.mxu0 0
        %741 = vmatpush1.bf16.msra.mxu0 %v636
        %742 = vmatprep.mubr.bf16.mxu0 %v472
        %743 = vmatmul.mubr.bf16.gmra.mrb[0].mxu0 %v471
        %v744 = vpop.f32.mrb[0].mxu0
        %v745 = vadd.f32 %v704, %v744
        %v746 = vpop.f32.mrb[0].mxu0
        %v747 = vpop.f32.mrb[0].mxu0
        %v748 = vadd.f32 %v707, %v747
        %v749 = vpop.f32.mrb[0].mxu0
        %750 = vdwg.mxu0
        %v751 = vadd.f32 %v387, %v745
        %v752 = vadd.f32 %v388, %v748
        %753 = vst [vmem:[#allocation2] sm:$0xff] %v751
        %754 = vst [vmem:[#allocation2 + $0x8] sm:$0xff] %v752
        %p755 = scmp.eq.s32.totalorder %s23, 1
        // Predicated region
        $region68: #{_lambda_.18} parent=58 // pred_check
          %p756 = pneg %p755
        $region69: #{_lambda_.18} parent=58 // pred_check_branch
          %758 = sbr.rel (%p756) target = $region71
        $region70: #{_lambda_.18} parent=58 // pred_region
          %v759 = vld [vmem:[#allocation2] sm:$0xff]
          %v760 = vld [vmem:[#allocation2 + $0x8] sm:$0xff]
          %v761 = vld [vmem:[%s358] sm:$0x1]
          %v763 = vlaneseq
          %v764 = vshrl.u32 %v763, 7
          %v765 = vsub.s32 0, %v764
          %v766 = vrot.slane %v761, %v765
          %v768 = vmul.f32 %v759, %v766
          %v769 = vmul.f32 %v760, %v766
          %v770 = vld [vmem:[%s361] sm:$0x1]
          %v772 = vlaneseq
          %v773 = vshrl.u32 %v772, 7
          %v774 = vsub.s32 0, %v773
          %v775 = vrot.slane %v770, %v774
          %v777 = vadd.f32 %v768, %v775
          %v778 = vadd.f32 %v769, %v775
          %v779 = vld [vmem:[%s369] sm:$0xf]
          %v780 = vld [vmem:[%s369 + $0x4] sm:$0xf]
          %v781 = vunpack.c.l.bf16 %v779
          %v782 = vunpack.c.l.bf16 %v780
          %v783 = vadd.f32 %v777, %v781
          %v784 = vadd.f32 %v778, %v782
          %v785 = vmax.f32 %v783, 0.0
          %v786 = vmax.f32 %v784, 0.0
          %v787 = vpack.c.bf16 %v786, %v785
          %v789 = vunpack.c.l.b16 %v787
          %v790 = vunpack.c.h.b16 %v787
          %v791 = vpack.c.b16 %v789, %v789
          %v792 = vpack.c.b16 %v790, %v790
          %795 = vst [vmem:[%s378] sm:$0xf] %v791
          %796 = vst [vmem:[%s378 + $0x4] sm:$0xf] %v792
        $region71: #{_lambda_.18} parent=58 // pred_fallthru
          _
        %s797 = smul.u32 2, %s21
        %p798 = scmp.lt.s32.totalorder %s797, 1
        %s799 = scalar_select %p798, %s797, 1
        %p800 = scmp.lt.s32.totalorder %s22, 0
        %s801 = scalar_select %p800, %s22, 0
        %s802 = sadd.s32 %s801, %s799
        %s803 = smul.addr %s802, 4
        %s804 = scalar_lea.vmem %s5, %s803
        // Predicated region
        $region72: #{_lambda_.18} parent=58 // pred_check
          %p805 = pneg %p191
        $region73: #{_lambda_.18} parent=58 // pred_check_branch
          %807 = sbr.rel (%p805) target = $region75
        $region74: #{_lambda_.18} parent=58 // pred_region
          %s808 = smul.u32 2, %s21
        $region75: #{_lambda_.18} parent=58 // pred_fallthru
          _
        // Predicated region
        $region76: #{_lambda_.18} parent=58 // pred_check
          %p809 = pneg %p191
        $region77: #{_lambda_.18} parent=58 // pred_check_branch
          %811 = sbr.rel (%p809) target = $region79
        $region78: #{_lambda_.18} parent=58 // pred_region
          %s812 = smul.u32 2, %s21
          %p813 = scmp.lt.s32.totalorder %s812, 1
          %s814 = scalar_select %p813, %s812, 1
          %p815 = scmp.lt.s32.totalorder %s22, 0
          %s816 = scalar_select %p815, %s22, 0
          %s817 = sadd.s32 %s816, %s814
          %s818 = smul.addr %s817, 4
          %s819 = scalar_lea.vmem %s5, %s818
        $region79: #{_lambda_.18} parent=58 // pred_fallthru
          _
      $region59: #{_lambda_.18} parent=5 // pred_fallthru
        _
      %p820 = scmp.le.s32.totalorder 2, %s11
      // Predicated region
      $region80: #{_lambda_.18} parent=5 // pred_check
        %p821 = pneg %p820
      $region81: #{_lambda_.18} parent=5 // pred_check_branch
        %823 = sbr.rel (%p821) target = $region83
      $region82: #{_lambda_.18} parent=5 // pred_region
        %s824 = ssub.s32 %s11, 2
      $region83: #{_lambda_.18} parent=5 // pred_fallthru
        _
    $region6: #{_lambda_.18} parent=1 // loop_footer
      %s15 = sadd.s32 1, %s11
    $region7: #{_lambda_.18} parent=1 // loop_footer_branch
      %10 = sbr.rel target = $region3
    $region8: #{_lambda_.18} parent=1 // loop_exit
      _

// kernel: _lambda_.16
$region0: #{_lambda_.16}
  #allocation0 [shape = 'u32[]', space=smem, size = 0x4, offset = 0x4, fixed_abs, tag = 'smem constant byte address 0x4 - core index']
  #allocation1 [shape = 'u32[144,128]{1,0:T(1,128)}', space=vmem, size = 0x12000, scoped, tag = 'internal scratch']
  #allocation2 [shape = 'f32[16,128]{1,0:T(8,128)}', space=vmem, size = 0x2000, scoped, tag = 'scratch operand']
  %s0 = inlined_call_operand.vmem [shape: bf16[16,288], index: 0, kind: input, shape index: {}]
  %s1 = inlined_call_operand.vmem [shape: bf16[288,128], index: 1, kind: input, shape index: {}]
  %s2 = inlined_call_operand.vmem [shape: f32[1,128], index: 2, kind: input, shape index: {}]
  %s3 = inlined_call_operand.vmem [shape: f32[1,128], index: 3, kind: input, shape index: {}]
  %s4 = inlined_call_operand.vmem [shape: bf16[16,128], index: 4, kind: output, shape index: {}]
  %s5 = sld [smem:[#allocation0]]
  $region34: #{_lambda_.16} parent=0
    _
  %s7 = ssub.s32 1, %s5
  %s8 = scalar_select 0, %s7, %s5
  // Predicated region
  $region2: #{_lambda_.16} parent=0 // pred_check
    _
  $region3: #{_lambda_.16} parent=0 // pred_check_branch
    %10 = sbr.rel (0) target = $region5
  $region4: #{_lambda_.16} parent=0 // pred_region
    _
  $region5: #{_lambda_.16} parent=0 // pred_fallthru
    _
  // Predicated region
  $region6: #{_lambda_.16} parent=0 // pred_check
    _
  $region7: #{_lambda_.16} parent=0 // pred_check_branch
    %12 = sbr.rel (0) target = $region9
  $region8: #{_lambda_.16} parent=0 // pred_region
    _
  $region9: #{_lambda_.16} parent=0 // pred_fallthru
    _
  // Predicated region
  $region10: #{_lambda_.16} parent=0 // pred_check
    _
  $region11: #{_lambda_.16} parent=0 // pred_check_branch
    %14 = sbr.rel (0) target = $region13
  $region12: #{_lambda_.16} parent=0 // pred_region
    _
  $region13: #{_lambda_.16} parent=0 // pred_fallthru
    _
  // Predicated region
  $region14: #{_lambda_.16} parent=0 // pred_check
    _
  $region15: #{_lambda_.16} parent=0 // pred_check_branch
    %16 = sbr.rel (0) target = $region17
  $region16: #{_lambda_.16} parent=0 // pred_region
    _
  $region17: #{_lambda_.16} parent=0 // pred_fallthru
    _
  %p18 = scmp.eq.s32.totalorder 0, 0
  // Predicated region
  $region18: #{_lambda_.16} parent=0 // pred_check
    %p19 = pneg %p18
  $region19: #{_lambda_.16} parent=0 // pred_check_branch
    %21 = sbr.rel (%p19) target = $region21
  $region20: #{_lambda_.16} parent=0 // pred_region
    %22 = vst [vmem:[#allocation2] sm:$0xff] 0.0
    %23 = vst [vmem:[#allocation2 + $0x8] sm:$0xff] 0.0
  $region21: #{_lambda_.16} parent=0 // pred_fallthru
    _
  %v24 = vld [vmem:[#allocation2] sm:$0xff]
  %v25 = vld [vmem:[#allocation2 + $0x8] sm:$0xff]
  %v26 = vld [vmem:[%s0] sm:$0xff]
  %v27 = vld [vmem:[%s0 + $0x8] sm:$0xf]
  %v28 = vld [vmem:[%s0 + $0xc] sm:$0xff]
  %v29 = vld [vmem:[%s0 + $0x14] sm:$0xf]
  %v30 = vld [vmem:[%s1] sm:$0xf]
  %v31 = vld [vmem:[%s1 + $0x4] sm:$0xf]
  %v32 = vld [vmem:[%s1 + $0x8] sm:$0xf]
  %v33 = vld [vmem:[%s1 + $0xc] sm:$0xf]
  %v34 = vld [vmem:[%s1 + $0x10] sm:$0xf]
  %v35 = vld [vmem:[%s1 + $0x14] sm:$0xf]
  %v36 = vld [vmem:[%s1 + $0x18] sm:$0xf]
  %v37 = vld [vmem:[%s1 + $0x1c] sm:$0xf]
  %v38 = vld [vmem:[%s1 + $0x20] sm:$0xf]
  %v39 = vld [vmem:[%s1 + $0x24] sm:$0xf]
  %v40 = vld [vmem:[%s1 + $0x28] sm:$0xf]
  %v41 = vld [vmem:[%s1 + $0x2c] sm:$0xf]
  %v42 = vld [vmem:[%s1 + $0x30] sm:$0xf]
  %v43 = vld [vmem:[%s1 + $0x34] sm:$0xf]
  %v44 = vld [vmem:[%s1 + $0x38] sm:$0xf]
  %v45 = vld [vmem:[%s1 + $0x3c] sm:$0xf]
  %v46 = vld [vmem:[%s1 + $0x40] sm:$0xf]
  %v47 = vld [vmem:[%s1 + $0x44] sm:$0xf]
  %v48 = vld [vmem:[%s1 + $0x48] sm:$0xf]
  %v49 = vld [vmem:[%s1 + $0x4c] sm:$0xf]
  %v50 = vld [vmem:[%s1 + $0x50] sm:$0xf]
  %v51 = vld [vmem:[%s1 + $0x54] sm:$0xf]
  %v52 = vld [vmem:[%s1 + $0x58] sm:$0xf]
  %v53 = vld [vmem:[%s1 + $0x5c] sm:$0xf]
  %v54 = vld [vmem:[%s1 + $0x60] sm:$0xf]
  %v55 = vld [vmem:[%s1 + $0x64] sm:$0xf]
  %v56 = vld [vmem:[%s1 + $0x68] sm:$0xf]
  %v57 = vld [vmem:[%s1 + $0x6c] sm:$0xf]
  %v58 = vld [vmem:[%s1 + $0x70] sm:$0xf]
  %v59 = vld [vmem:[%s1 + $0x74] sm:$0xf]
  %v60 = vld [vmem:[%s1 + $0x78] sm:$0xf]
  %v61 = vld [vmem:[%s1 + $0x7c] sm:$0xf]
  %v62 = vld [vmem:[%s1 + $0x80] sm:$0xf]
  %v63 = vld [vmem:[%s1 + $0x84] sm:$0xf]
  %v64 = vld [vmem:[%s1 + $0x88] sm:$0xf]
  %v65 = vld [vmem:[%s1 + $0x8c] sm:$0xf]
  %v70 = vunpack.c.l.b16 %v26
  %v71 = vunpack.c.h.b16 %v26
  %v72 = vunpack.c.l.b16 %v27
  %v73 = vunpack.c.l.b16 %v28
  %v74 = vunpack.c.h.b16 %v28
  %v75 = vunpack.c.l.b16 %v29
  %v76 = vpack.c.b16 %v73, %v70
  %v77 = vpack.c.b16 %v74, %v71
  %v78 = vpack.c.b16 %v75, %v72
  %v117 = vunpack.c.l.b16 %v30
  %v118 = vunpack.c.l.b16 %v31
  %v119 = vunpack.c.l.b16 %v32
  %v120 = vunpack.c.l.b16 %v33
  %v121 = vunpack.c.l.b16 %v34
  %v122 = vunpack.c.l.b16 %v35
  %v123 = vunpack.c.l.b16 %v36
  %v124 = vunpack.c.l.b16 %v37
  %v125 = vunpack.c.l.b16 %v38
  %v126 = vunpack.c.l.b16 %v39
  %v127 = vunpack.c.l.b16 %v40
  %v128 = vunpack.c.l.b16 %v41
  %v129 = vunpack.c.l.b16 %v42
  %v130 = vunpack.c.l.b16 %v43
  %v131 = vunpack.c.l.b16 %v44
  %v132 = vunpack.c.l.b16 %v45
  %v133 = vunpack.c.l.b16 %v46
  %v134 = vunpack.c.l.b16 %v47
  %v135 = vunpack.c.l.b16 %v48
  %v136 = vunpack.c.l.b16 %v49
  %v137 = vunpack.c.l.b16 %v50
  %v138 = vunpack.c.l.b16 %v51
  %v139 = vunpack.c.l.b16 %v52
  %v140 = vunpack.c.l.b16 %v53
  %v141 = vunpack.c.l.b16 %v54
  %v142 = vunpack.c.l.b16 %v55
  %v143 = vunpack.c.l.b16 %v56
  %v144 = vunpack.c.l.b16 %v57
  %v145 = vunpack.c.l.b16 %v58
  %v146 = vunpack.c.l.b16 %v59
  %v147 = vunpack.c.l.b16 %v60
  %v148 = vunpack.c.l.b16 %v61
  %v149 = vunpack.c.l.b16 %v62
  %v150 = vunpack.c.l.b16 %v63
  %v151 = vunpack.c.l.b16 %v64
  %v152 = vunpack.c.l.b16 %v65
  %v153 = vpack.c.b16 %v118, %v117
  %v154 = vpack.c.b16 %v120, %v119
  %v155 = vpack.c.b16 %v122, %v121
  %v156 = vpack.c.b16 %v124, %v123
  %v157 = vpack.c.b16 %v126, %v125
  %v158 = vpack.c.b16 %v128, %v127
  %v159 = vpack.c.b16 %v130, %v129
  %v160 = vpack.c.b16 %v132, %v131
  %v161 = vpack.c.b16 %v134, %v133
  %v162 = vpack.c.b16 %v136, %v135
  %v163 = vpack.c.b16 %v138, %v137
  %v164 = vpack.c.b16 %v140, %v139
  %v165 = vpack.c.b16 %v142, %v141
  %v166 = vpack.c.b16 %v144, %v143
  %v167 = vpack.c.b16 %v146, %v145
  %v168 = vpack.c.b16 %v148, %v147
  %v169 = vpack.c.b16 %v150, %v149
  %v170 = vpack.c.b16 %v152, %v151
  %vm189 = vcmask 261120
  %v191 = vsel %vm189, %v78, 0
  %193 = vmatprep.subr.bf16.mxu0 0
  %194 = vmatpush1.bf16.msra.mxu0 %v153
  %195 = vmatprep.subr.bf16.mxu0 0
  %196 = vmatpush1.bf16.msra.mxu0 %v154
  %197 = vmatprep.subr.bf16.mxu0 0
  %198 = vmatpush1.bf16.msra.mxu0 %v155
  %199 = vmatprep.subr.bf16.mxu0 0
  %200 = vmatpush1.bf16.msra.mxu0 %v156
  %201 = vmatprep.subr.bf16.mxu0 0
  %202 = vmatpush1.bf16.msra.mxu0 %v157
  %203 = vmatprep.subr.bf16.mxu0 0
  %204 = vmatpush1.bf16.msra.mxu0 %v158
  %205 = vmatprep.subr.bf16.mxu0 0
  %206 = vmatpush1.bf16.msra.mxu0 %v159
  %207 = vmatprep.subr.bf16.mxu0 0
  %208 = vmatpush1.bf16.msra.mxu0 %v160
  %209 = vmatprep.subr.bf16.mxu0 0
  %210 = vmatpush1.bf16.msra.mxu0 %v161
  %211 = vmatprep.subr.bf16.mxu0 0
  %212 = vmatpush1.bf16.msra.mxu0 %v162
  %213 = vmatprep.subr.bf16.mxu0 0
  %214 = vmatpush1.bf16.msra.mxu0 %v163
  %215 = vmatprep.subr.bf16.mxu0 0
  %216 = vmatpush1.bf16.msra.mxu0 %v164
  %217 = vmatprep.subr.bf16.mxu0 0
  %218 = vmatpush1.bf16.msra.mxu0 %v165
  %219 = vmatprep.subr.bf16.mxu0 0
  %220 = vmatpush1.bf16.msra.mxu0 %v166
  %221 = vmatprep.subr.bf16.mxu0 0
  %222 = vmatpush1.bf16.msra.mxu0 %v167
  %223 = vmatprep.subr.bf16.mxu0 0
  %224 = vmatpush1.bf16.msra.mxu0 %v168
  %225 = vmatprep.mubr.bf16.mxu0 %v77
  %226 = vmatmul.mubr.bf16.gmra.mrb[0].mxu0 %v76
  %v227 = vpop.f32.mrb[0].mxu0
  %v228 = vadd.f32 0.0, %v227
  %v229 = vpop.f32.mrb[0].mxu0
  %v230 = vpop.f32.mrb[0].mxu0
  %v231 = vadd.f32 0.0, %v230
  %v232 = vpop.f32.mrb[0].mxu0
  %233 = vdwg.mxu0
  %234 = vmatprep.subr.bf16.mxu0 0
  %235 = vmatpush1.bf16.msra.mxu0 %v169
  %236 = vmatprep.subr.bf16.mxu0 0
  %237 = vmatpush1.bf16.msra.mxu0 %v170
  %238 = vmatprep.subr.bf16.mxu0 0
  %239 = vmatpush1.bf16.msra.mxu0 0
  %240 = vmatprep.subr.bf16.mxu0 0
  %241 = vmatpush1.bf16.msra.mxu0 0
  %242 = vmatprep.subr.bf16.mxu0 0
  %243 = vmatpush1.bf16.msra.mxu0 0
  %244 = vmatprep.subr.bf16.mxu0 0
  %245 = vmatpush1.bf16.msra.mxu0 0
  %246 = vmatprep.subr.bf16.mxu0 0
  %247 = vmatpush1.bf16.msra.mxu0 0
  %248 = vmatprep.subr.bf16.mxu0 0
  %249 = vmatpush1.bf16.msra.mxu0 0
  %250 = vmatprep.subr.bf16.mxu0 0
  %251 = vmatpush1.bf16.msra.mxu0 0
  %252 = vmatprep.subr.bf16.mxu0 0
  %253 = vmatpush1.bf16.msra.mxu0 0
  %254 = vmatprep.subr.bf16.mxu0 0
  %255 = vmatpush1.bf16.msra.mxu0 0
  %256 = vmatprep.subr.bf16.mxu0 0
  %257 = vmatpush1.bf16.msra.mxu0 0
  %258 = vmatprep.subr.bf16.mxu0 0
  %259 = vmatpush1.bf16.msra.mxu0 0
  %260 = vmatprep.subr.bf16.mxu0 0
  %261 = vmatpush1.bf16.msra.mxu0 0
  %262 = vmatprep.subr.bf16.mxu0 0
  %263 = vmatpush1.bf16.msra.mxu0 0
  %264 = vmatprep.subr.bf16.mxu0 0
  %265 = vmatpush1.bf16.msra.mxu0 0
  %266 = vmatprep.mubr.bf16.mxu0 0
  %267 = vmatmul.mubr.bf16.gmra.mrb[0].mxu0 %v191
  %v268 = vpop.f32.mrb[0].mxu0
  %v269 = vadd.f32 %v228, %v268
  %v270 = vpop.f32.mrb[0].mxu0
  %v271 = vpop.f32.mrb[0].mxu0
  %v272 = vadd.f32 %v231, %v271
  %v273 = vpop.f32.mrb[0].mxu0
  %274 = vdwg.mxu0
  %v275 = vadd.f32 %v24, %v269
  %v276 = vadd.f32 %v25, %v272
  %277 = vst [vmem:[#allocation2] sm:$0xff] %v275
  %278 = vst [vmem:[#allocation2 + $0x8] sm:$0xff] %v276
  // Predicated region
  $region22: #{_lambda_.16} parent=0 // pred_check
    %p279 = pneg %p18
  $region23: #{_lambda_.16} parent=0 // pred_check_branch
    %281 = sbr.rel (%p279) target = $region25
  $region24: #{_lambda_.16} parent=0 // pred_region
    %v282 = vld [vmem:[#allocation2] sm:$0xff]
    %v283 = vld [vmem:[#allocation2 + $0x8] sm:$0xff]
    %v284 = vld [vmem:[%s2] sm:$0x1]
    %v286 = vlaneseq
    %v287 = vshrl.u32 %v286, 7
    %v288 = vsub.s32 0, %v287
    %v289 = vrot.slane %v284, %v288
    %v291 = vmul.f32 %v282, %v289
    %v292 = vmul.f32 %v283, %v289
    %v293 = vld [vmem:[%s3] sm:$0x1]
    %v295 = vlaneseq
    %v296 = vshrl.u32 %v295, 7
    %v297 = vsub.s32 0, %v296
    %v298 = vrot.slane %v293, %v297
    %v300 = vadd.f32 %v291, %v298
    %v301 = vadd.f32 %v292, %v298
    %v302 = vmax.f32 %v300, 0.0
    %v303 = vmax.f32 %v301, 0.0
    %v304 = vpack.c.bf16 %v303, %v302
    %v306 = vunpack.c.l.b16 %v304
    %v307 = vunpack.c.h.b16 %v304
    %v308 = vpack.c.b16 %v306, %v306
    %v309 = vpack.c.b16 %v307, %v307
    %312 = vst [vmem:[%s4] sm:$0xf] %v308
    %313 = vst [vmem:[%s4 + $0x4] sm:$0xf] %v309
  $region25: #{_lambda_.16} parent=0 // pred_fallthru
    _
  // Predicated region
  $region26: #{_lambda_.16} parent=0 // pred_check
    _
  $region27: #{_lambda_.16} parent=0 // pred_check_branch
    %315 = sbr.rel (0) target = $region29
  $region28: #{_lambda_.16} parent=0 // pred_region
    _
  $region29: #{_lambda_.16} parent=0 // pred_fallthru
    _
  // Predicated region
  $region30: #{_lambda_.16} parent=0 // pred_check
    _
  $region31: #{_lambda_.16} parent=0 // pred_check_branch
    %317 = sbr.rel (0) target = $region33
  $region32: #{_lambda_.16} parent=0 // pred_region
    _
  $region33: #{_lambda_.16} parent=0 // pred_fallthru
    _

// kernel: _lambda_.17
$region0: #{_lambda_.17}
  #allocation0 [shape = 'u32[]', space=smem, size = 0x4, offset = 0x4, fixed_abs, tag = 'smem constant byte address 0x4 - core index']
  #allocation1 [shape = 'u32[144,128]{1,0:T(1,128)}', space=vmem, size = 0x12000, scoped, tag = 'internal scratch']
  #allocation2 [shape = 'f32[16,128]{1,0:T(8,128)}', space=vmem, size = 0x2000, scoped, tag = 'scratch operand']
  %s0 = inlined_call_operand.vmem [shape: bf16[16,32], index: 0, kind: input, shape index: {}]
  %s1 = inlined_call_operand.vmem [shape: bf16[32,128], index: 1, kind: input, shape index: {}]
  %s2 = inlined_call_operand.vmem [shape: f32[1,128], index: 2, kind: input, shape index: {}]
  %s3 = inlined_call_operand.vmem [shape: f32[1,128], index: 3, kind: input, shape index: {}]
  %s4 = inlined_call_operand.vmem [shape: bf16[16,128], index: 4, kind: output, shape index: {}]
  %s5 = sld [smem:[#allocation0]]
  $region34: #{_lambda_.17} parent=0
    _
  %s7 = ssub.s32 1, %s5
  %s8 = scalar_select 0, %s7, %s5
  // Predicated region
  $region2: #{_lambda_.17} parent=0 // pred_check
    _
  $region3: #{_lambda_.17} parent=0 // pred_check_branch
    %10 = sbr.rel (0) target = $region5
  $region4: #{_lambda_.17} parent=0 // pred_region
    _
  $region5: #{_lambda_.17} parent=0 // pred_fallthru
    _
  // Predicated region
  $region6: #{_lambda_.17} parent=0 // pred_check
    _
  $region7: #{_lambda_.17} parent=0 // pred_check_branch
    %12 = sbr.rel (0) target = $region9
  $region8: #{_lambda_.17} parent=0 // pred_region
    _
  $region9: #{_lambda_.17} parent=0 // pred_fallthru
    _
  // Predicated region
  $region10: #{_lambda_.17} parent=0 // pred_check
    _
  $region11: #{_lambda_.17} parent=0 // pred_check_branch
    %14 = sbr.rel (0) target = $region13
  $region12: #{_lambda_.17} parent=0 // pred_region
    _
  $region13: #{_lambda_.17} parent=0 // pred_fallthru
    _
  // Predicated region
  $region14: #{_lambda_.17} parent=0 // pred_check
    _
  $region15: #{_lambda_.17} parent=0 // pred_check_branch
    %16 = sbr.rel (0) target = $region17
  $region16: #{_lambda_.17} parent=0 // pred_region
    _
  $region17: #{_lambda_.17} parent=0 // pred_fallthru
    _
  %p18 = scmp.eq.s32.totalorder 0, 0
  // Predicated region
  $region18: #{_lambda_.17} parent=0 // pred_check
    %p19 = pneg %p18
  $region19: #{_lambda_.17} parent=0 // pred_check_branch
    %21 = sbr.rel (%p19) target = $region21
  $region20: #{_lambda_.17} parent=0 // pred_region
    %22 = vst [vmem:[#allocation2] sm:$0xff] 0.0
    %23 = vst [vmem:[#allocation2 + $0x8] sm:$0xff] 0.0
  $region21: #{_lambda_.17} parent=0 // pred_fallthru
    _
  %v24 = vld [vmem:[#allocation2] sm:$0xff]
  %v25 = vld [vmem:[#allocation2 + $0x8] sm:$0xff]
  %v26 = vld [vmem:[%s0] sm:$0xf]
  %v27 = vld [vmem:[%s0 + $0x4] sm:$0xf]
  %v28 = vld [vmem:[%s1] sm:$0xf]
  %v29 = vld [vmem:[%s1 + $0x4] sm:$0xf]
  %v30 = vld [vmem:[%s1 + $0x8] sm:$0xf]
  %v31 = vld [vmem:[%s1 + $0xc] sm:$0xf]
  %v34 = vunpack.c.l.b16 %v26
  %v35 = vunpack.c.l.b16 %v27
  %v36 = vpack.c.b16 %v35, %v34
  %v41 = vunpack.c.l.b16 %v28
  %v42 = vunpack.c.l.b16 %v29
  %v43 = vunpack.c.l.b16 %v30
  %v44 = vunpack.c.l.b16 %v31
  %v45 = vpack.c.b16 %v42, %v41
  %v46 = vpack.c.b16 %v44, %v43
  %vm49 = vcmask 261120
  %v51 = vsel %vm49, %v36, 0
  %53 = vmatprep.subr.bf16.mxu0 0
  %54 = vmatpush1.bf16.msra.mxu0 %v45
  %55 = vmatprep.subr.bf16.mxu0 0
  %56 = vmatpush1.bf16.msra.mxu0 %v46
  %57 = vmatprep.subr.bf16.mxu0 0
  %58 = vmatpush1.bf16.msra.mxu0 0
  %59 = vmatprep.subr.bf16.mxu0 0
  %60 = vmatpush1.bf16.msra.mxu0 0
  %61 = vmatprep.subr.bf16.mxu0 0
  %62 = vmatpush1.bf16.msra.mxu0 0
  %63 = vmatprep.subr.bf16.mxu0 0
  %64 = vmatpush1.bf16.msra.mxu0 0
  %65 = vmatprep.subr.bf16.mxu0 0
  %66 = vmatpush1.bf16.msra.mxu0 0
  %67 = vmatprep.subr.bf16.mxu0 0
  %68 = vmatpush1.bf16.msra.mxu0 0
  %69 = vmatprep.subr.bf16.mxu0 0
  %70 = vmatpush1.bf16.msra.mxu0 0
  %71 = vmatprep.subr.bf16.mxu0 0
  %72 = vmatpush1.bf16.msra.mxu0 0
  %73 = vmatprep.subr.bf16.mxu0 0
  %74 = vmatpush1.bf16.msra.mxu0 0
  %75 = vmatprep.subr.bf16.mxu0 0
  %76 = vmatpush1.bf16.msra.mxu0 0
  %77 = vmatprep.subr.bf16.mxu0 0
  %78 = vmatpush1.bf16.msra.mxu0 0
  %79 = vmatprep.subr.bf16.mxu0 0
  %80 = vmatpush1.bf16.msra.mxu0 0
  %81 = vmatprep.subr.bf16.mxu0 0
  %82 = vmatpush1.bf16.msra.mxu0 0
  %83 = vmatprep.subr.bf16.mxu0 0
  %84 = vmatpush1.bf16.msra.mxu0 0
  %85 = vmatprep.mubr.bf16.mxu0 0
  %86 = vmatmul.mubr.bf16.gmra.mrb[0].mxu0 %v51
  %v87 = vpop.f32.mrb[0].mxu0
  %v88 = vadd.f32 0.0, %v87
  %v89 = vpop.f32.mrb[0].mxu0
  %v90 = vpop.f32.mrb[0].mxu0
  %v91 = vadd.f32 0.0, %v90
  %v92 = vpop.f32.mrb[0].mxu0
  %93 = vdwg.mxu0
  %v94 = vadd.f32 %v24, %v88
  %v95 = vadd.f32 %v25, %v91
  %96 = vst [vmem:[#allocation2] sm:$0xff] %v94
  %97 = vst [vmem:[#allocation2 + $0x8] sm:$0xff] %v95
  // Predicated region
  $region22: #{_lambda_.17} parent=0 // pred_check
    %p98 = pneg %p18
  $region23: #{_lambda_.17} parent=0 // pred_check_branch
    %100 = sbr.rel (%p98) target = $region25
  $region24: #{_lambda_.17} parent=0 // pred_region
    %v101 = vld [vmem:[#allocation2] sm:$0xff]
    %v102 = vld [vmem:[#allocation2 + $0x8] sm:$0xff]
    %v103 = vld [vmem:[%s2] sm:$0x1]
    %v105 = vlaneseq
    %v106 = vshrl.u32 %v105, 7
    %v107 = vsub.s32 0, %v106
    %v108 = vrot.slane %v103, %v107
    %v110 = vmul.f32 %v101, %v108
    %v111 = vmul.f32 %v102, %v108
    %v112 = vld [vmem:[%s3] sm:$0x1]
    %v114 = vlaneseq
    %v115 = vshrl.u32 %v114, 7
    %v116 = vsub.s32 0, %v115
    %v117 = vrot.slane %v112, %v116
    %v119 = vadd.f32 %v110, %v117
    %v120 = vadd.f32 %v111, %v117
    %v121 = vpack.c.bf16 %v120, %v119
    %v123 = vunpack.c.l.b16 %v121
    %v124 = vunpack.c.h.b16 %v121
    %v125 = vpack.c.b16 %v123, %v123
    %v126 = vpack.c.b16 %v124, %v124
    %129 = vst [vmem:[%s4] sm:$0xf] %v125
    %130 = vst [vmem:[%s4 + $0x4] sm:$0xf] %v126
  $region25: #{_lambda_.17} parent=0 // pred_fallthru
    _
  // Predicated region
  $region26: #{_lambda_.17} parent=0 // pred_check
    _
  $region27: #{_lambda_.17} parent=0 // pred_check_branch
    %132 = sbr.rel (0) target = $region29
  $region28: #{_lambda_.17} parent=0 // pred_region
    _
  $region29: #{_lambda_.17} parent=0 // pred_fallthru
    _
  // Predicated region
  $region30: #{_lambda_.17} parent=0 // pred_check
    _
  $region31: #{_lambda_.17} parent=0 // pred_check_branch
    %134 = sbr.rel (0) target = $region33
  $region32: #{_lambda_.17} parent=0 // pred_region
    _
  $region33: #{_lambda_.17} parent=0 // pred_fallthru
    _

// kernel: _lambda_.19
$region0: #{_lambda_.19}
  #allocation0 [shape = 'u32[]', space=smem, size = 0x4, offset = 0x4, fixed_abs, tag = 'smem constant byte address 0x4 - core index']
  #allocation1 [shape = 'u32[144,128]{1,0:T(1,128)}', space=vmem, size = 0x12000, scoped, tag = 'internal scratch']
  %s0 = inlined_call_operand.vmem [shape: bf16[8,4,64], index: 0, kind: input, shape index: {}]
  %s1 = inlined_call_operand.vmem [shape: bf16[64,128], index: 1, kind: input, shape index: {}]
  %s2 = inlined_call_operand.vmem [shape: f32[1,128], index: 2, kind: input, shape index: {}]
  %s3 = inlined_call_operand.vmem [shape: f32[8,128], index: 3, kind: output, shape index: {}]
  %s4 = sld [smem:[#allocation0]]
  $region22: #{_lambda_.19} parent=0
    _
  %s6 = ssub.s32 1, %s4
  %s7 = scalar_select 0, %s6, %s4
  // Predicated region
  $region2: #{_lambda_.19} parent=0 // pred_check
    _
  $region3: #{_lambda_.19} parent=0 // pred_check_branch
    %9 = sbr.rel (0) target = $region5
  $region4: #{_lambda_.19} parent=0 // pred_region
    _
  $region5: #{_lambda_.19} parent=0 // pred_fallthru
    _
  // Predicated region
  $region6: #{_lambda_.19} parent=0 // pred_check
    _
  $region7: #{_lambda_.19} parent=0 // pred_check_branch
    %11 = sbr.rel (0) target = $region9
  $region8: #{_lambda_.19} parent=0 // pred_region
    _
  $region9: #{_lambda_.19} parent=0 // pred_fallthru
    _
  // Predicated region
  $region10: #{_lambda_.19} parent=0 // pred_check
    _
  $region11: #{_lambda_.19} parent=0 // pred_check_branch
    %13 = sbr.rel (0) target = $region13
  $region12: #{_lambda_.19} parent=0 // pred_region
    _
  $region13: #{_lambda_.19} parent=0 // pred_fallthru
    _
  %v15 = vld [vmem:[%s0] sm:$0x3]
  %v16 = vld [vmem:[%s0 + $0x2] sm:$0x3]
  %v17 = vld [vmem:[%s0 + $0x4] sm:$0x3]
  %v18 = vld [vmem:[%s0 + $0x6] sm:$0x3]
  %v19 = vld [vmem:[%s0 + $0x8] sm:$0x3]
  %v20 = vld [vmem:[%s0 + $0xa] sm:$0x3]
  %v21 = vld [vmem:[%s0 + $0xc] sm:$0x3]
  %v22 = vld [vmem:[%s0 + $0xe] sm:$0x3]
  %v23 = vunpack.c.l.bf16 %v15
  %v24 = vunpack.c.l.bf16 %v16
  %v25 = vunpack.c.l.bf16 %v17
  %v26 = vunpack.c.l.bf16 %v18
  %v27 = vunpack.c.l.bf16 %v19
  %v28 = vunpack.c.l.bf16 %v20
  %v29 = vunpack.c.l.bf16 %v21
  %v30 = vunpack.c.l.bf16 %v22
  %vm31 = vcmask 519168
  %v32 = vsel %vm31, %v23, 0.0
  %v33 = vrot.slane %v32, 4
  %v34 = vadd.f32 %v32, %v33
  %v35 = vrot.slane %v34, 2
  %v36 = vadd.f32 %v34, %v35
  %v37 = vrot.slane %v36, 1
  %v38 = vadd.f32 %v36, %v37
  %v39 = vsel %vm31, %v24, 0.0
  %v40 = vrot.slane %v39, 4
  %v41 = vadd.f32 %v39, %v40
  %v42 = vrot.slane %v41, 2
  %v43 = vadd.f32 %v41, %v42
  %v44 = vrot.slane %v43, 1
  %v45 = vadd.f32 %v43, %v44
  %v46 = vsel %vm31, %v25, 0.0
  %v47 = vrot.slane %v46, 4
  %v48 = vadd.f32 %v46, %v47
  %v49 = vrot.slane %v48, 2
  %v50 = vadd.f32 %v48, %v49
  %v51 = vrot.slane %v50, 1
  %v52 = vadd.f32 %v50, %v51
  %v53 = vsel %vm31, %v26, 0.0
  %v54 = vrot.slane %v53, 4
  %v55 = vadd.f32 %v53, %v54
  %v56 = vrot.slane %v55, 2
  %v57 = vadd.f32 %v55, %v56
  %v58 = vrot.slane %v57, 1
  %v59 = vadd.f32 %v57, %v58
  %v60 = vsel %vm31, %v27, 0.0
  %v61 = vrot.slane %v60, 4
  %v62 = vadd.f32 %v60, %v61
  %v63 = vrot.slane %v62, 2
  %v64 = vadd.f32 %v62, %v63
  %v65 = vrot.slane %v64, 1
  %v66 = vadd.f32 %v64, %v65
  %v67 = vsel %vm31, %v28, 0.0
  %v68 = vrot.slane %v67, 4
  %v69 = vadd.f32 %v67, %v68
  %v70 = vrot.slane %v69, 2
  %v71 = vadd.f32 %v69, %v70
  %v72 = vrot.slane %v71, 1
  %v73 = vadd.f32 %v71, %v72
  %v74 = vsel %vm31, %v29, 0.0
  %v75 = vrot.slane %v74, 4
  %v76 = vadd.f32 %v74, %v75
  %v77 = vrot.slane %v76, 2
  %v78 = vadd.f32 %v76, %v77
  %v79 = vrot.slane %v78, 1
  %v80 = vadd.f32 %v78, %v79
  %v81 = vsel %vm31, %v30, 0.0
  %v82 = vrot.slane %v81, 4
  %v83 = vadd.f32 %v81, %v82
  %v84 = vrot.slane %v83, 2
  %v85 = vadd.f32 %v83, %v84
  %v86 = vrot.slane %v85, 1
  %v87 = vadd.f32 %v85, %v86
  %v88 = vrcp.pop 4.0
  %v89 = vmul.f32 %v38, %v88
  %v90 = vmul.f32 %v45, %v88
  %v91 = vmul.f32 %v52, %v88
  %v92 = vmul.f32 %v59, %v88
  %v93 = vmul.f32 %v66, %v88
  %v94 = vmul.f32 %v73, %v88
  %v95 = vmul.f32 %v80, %v88
  %v96 = vmul.f32 %v87, %v88
  %v97 = vpack.c.bf16 %v89, %v89
  %v98 = vpack.c.bf16 %v90, %v90
  %v99 = vpack.c.bf16 %v91, %v91
  %v100 = vpack.c.bf16 %v92, %v92
  %v101 = vpack.c.bf16 %v93, %v93
  %v102 = vpack.c.bf16 %v94, %v94
  %v103 = vpack.c.bf16 %v95, %v95
  %v104 = vpack.c.bf16 %v96, %v96
  %v105 = vld [vmem:[%s1] sm:$0xf]
  %v106 = vld [vmem:[%s1 + $0x4] sm:$0xf]
  %v107 = vld [vmem:[%s1 + $0x8] sm:$0xf]
  %v108 = vld [vmem:[%s1 + $0xc] sm:$0xf]
  %v109 = vld [vmem:[%s1 + $0x10] sm:$0xf]
  %v110 = vld [vmem:[%s1 + $0x14] sm:$0xf]
  %v111 = vld [vmem:[%s1 + $0x18] sm:$0xf]
  %v112 = vld [vmem:[%s1 + $0x1c] sm:$0xf]
  %v113 = vld [vmem:[%s2] sm:$0x1]
  %v115 = vlaneseq
  %v116 = vshrl.u32 %v115, 7
  %v117 = vsub.s32 0, %v116
  %v118 = vrot.slane %v113, %v117
  %v128 = vunpack.c.l.b16 %v97
  %v129 = vunpack.c.l.b16 %v98
  %v130 = vunpack.c.l.b16 %v99
  %v131 = vunpack.c.l.b16 %v100
  %v132 = vunpack.c.l.b16 %v101
  %v133 = vunpack.c.l.b16 %v102
  %v134 = vunpack.c.l.b16 %v103
  %v135 = vunpack.c.l.b16 %v104
  %vm136 = vcmask 1041409
  %v137 = vsel %vm136, %v129, %v128
  %vm138 = vcmask 1042434
  %v139 = vsel %vm138, %v130, %v137
  %vm140 = vcmask 1043459
  %v141 = vsel %vm140, %v131, %v139
  %vm142 = vcmask 1044484
  %v143 = vsel %vm142, %v132, %v141
  %vm144 = vcmask 1045509
  %v145 = vsel %vm144, %v133, %v143
  %vm146 = vcmask 1046534
  %v147 = vsel %vm146, %v134, %v145
  %vm148 = vcmask 1047559
  %v149 = vsel %vm148, %v135, %v147
  %v150 = vpack.c.b16 %v149, %v149
  %v159 = vunpack.c.l.b16 %v105
  %v160 = vunpack.c.l.b16 %v106
  %v161 = vunpack.c.l.b16 %v107
  %v162 = vunpack.c.l.b16 %v108
  %v163 = vunpack.c.l.b16 %v109
  %v164 = vunpack.c.l.b16 %v110
  %v165 = vunpack.c.l.b16 %v111
  %v166 = vunpack.c.l.b16 %v112
  %v167 = vpack.c.b16 %v160, %v159
  %v168 = vpack.c.b16 %v162, %v161
  %v169 = vpack.c.b16 %v164, %v163
  %v170 = vpack.c.b16 %v166, %v165
  %vm175 = vcmask 523264
  %v177 = vsel %vm175, %v150, 0
  %179 = vmatprep.subr.bf16.mxu0 0
  %180 = vmatpush1.bf16.msra.mxu0 %v167
  %181 = vmatprep.subr.bf16.mxu0 0
  %182 = vmatpush1.bf16.msra.mxu0 %v168
  %183 = vmatprep.subr.bf16.mxu0 0
  %184 = vmatpush1.bf16.msra.mxu0 %v169
  %185 = vmatprep.subr.bf16.mxu0 0
  %186 = vmatpush1.bf16.msra.mxu0 %v170
  %187 = vmatprep.subr.bf16.mxu0 0
  %188 = vmatpush1.bf16.msra.mxu0 0
  %189 = vmatprep.subr.bf16.mxu0 0
  %190 = vmatpush1.bf16.msra.mxu0 0
  %191 = vmatprep.subr.bf16.mxu0 0
  %192 = vmatpush1.bf16.msra.mxu0 0
  %193 = vmatprep.subr.bf16.mxu0 0
  %194 = vmatpush1.bf16.msra.mxu0 0
  %195 = vmatprep.subr.bf16.mxu0 0
  %196 = vmatpush1.bf16.msra.mxu0 0
  %197 = vmatprep.subr.bf16.mxu0 0
  %198 = vmatpush1.bf16.msra.mxu0 0
  %199 = vmatprep.subr.bf16.mxu0 0
  %200 = vmatpush1.bf16.msra.mxu0 0
  %201 = vmatprep.subr.bf16.mxu0 0
  %202 = vmatpush1.bf16.msra.mxu0 0
  %203 = vmatprep.subr.bf16.mxu0 0
  %204 = vmatpush1.bf16.msra.mxu0 0
  %205 = vmatprep.subr.bf16.mxu0 0
  %206 = vmatpush1.bf16.msra.mxu0 0
  %207 = vmatprep.subr.bf16.mxu0 0
  %208 = vmatpush1.bf16.msra.mxu0 0
  %209 = vmatprep.subr.bf16.mxu0 0
  %210 = vmatpush1.bf16.msra.mxu0 0
  %211 = vmatprep.mubr.bf16.mxu0 0
  %212 = vmatmul.mubr.bf16.gmra.mrb[0].mxu0 %v177
  %v213 = vpop.f32.mrb[0].mxu0
  %v214 = vadd.f32 %v118, %v213
  %v215 = vpop.f32.mrb[0].mxu0
  %v216 = vpop.f32.mrb[0].mxu0
  %v217 = vpop.f32.mrb[0].mxu0
  %218 = vdwg.mxu0
  %219 = vst [vmem:[%s3] sm:$0xff] %v214
  // Predicated region
  $region14: #{_lambda_.19} parent=0 // pred_check
    _
  $region15: #{_lambda_.19} parent=0 // pred_check_branch
    %221 = sbr.rel (0) target = $region17
  $region16: #{_lambda_.19} parent=0 // pred_region
    _
  $region17: #{_lambda_.19} parent=0 // pred_fallthru
    _
  // Predicated region
  $region18: #{_lambda_.19} parent=0 // pred_check
    _
  $region19: #{_lambda_.19} parent=0 // pred_check_branch
    %223 = sbr.rel (0) target = $region21
  $region20: #{_lambda_.19} parent=0 // pred_region
    _
  $region21: #{_lambda_.19} parent=0 // pred_fallthru
    _

</llo_original>
